<compile_context>
chip_gen: v5e
topology: v5e:2x2
jax: 0.10.0
libtpu: 0.0.40
codegen_flags: <defaults>
</compile_context>

<pallas_src>
import functools

import jax
import jax.numpy as jnp
from jax import lax
from jax.experimental import pallas as pl
from jax.experimental.pallas import tpu as pltpu


def _round_up(x: int, m: int) -> int:
    return ((x + m - 1) // m) * m


def _nbytes(shape, dtype) -> int:
    n = 1
    for s in shape:
        n *= int(s)
    return n * jnp.dtype(dtype).itemsize


def _vmem_limit_bytes(required: int) -> int:
    """Computed VMEM cap: at least 32 MiB, at most ~90% of physical VMEM."""
    try:
        phys = int(pltpu.get_tpu_info().vmem_capacity_bytes)
    except Exception:
        phys = 64 * 1024 * 1024          # conservative fallback (v7x per-TC)
    return int(min(max(required, 32 * 1024 * 1024), int(0.9 * phys)))


# ----------------------------------------------------------------------------
# Kernel
# ----------------------------------------------------------------------------
def _make_gru_kernel(n_layers: int, seq_len: int, bc: int, hp: int,
                     time_chunk: int, wdt):
    L, T, Bc, Hp, Tc = n_layers, seq_len, bc, hp, time_chunk
    n_chunks = (T + Tc - 1) // Tc

    def kernel(*refs):
        # refs layout (per grid step = one batch chunk):
        #   x_ref    (T*Bc, Dp)  wdt   time-major flattened input chunk
        #   h0_ref   (L, Bc, Hp) f32
        #   per layer l: wih_t (Din_p,3Hp) wdt, whh_t (Hp,3Hp) wdt,
        #                b_rzn (1,3Hp) f32 (layer 0: folded -> unused),
        #                bhn   (1,Hp)  f32 (= b_hn)
        #   fcw_t (Hp,Op) wdt, fcb (1,Op) f32
        #   out_ref (Bc,Op) f32, hout_ref (L,Bc,Hp) f32
        #   gi_ref  (Tc*Bc,3Hp) f32 scratch (chunked input-path gates)
        #   seq_ref (T*Bc,Hp)   wdt scratch (inter-layer sequence)
        x_ref, h0_ref = refs[0], refs[1]
        layer_refs = refs[2:2 + 4 * L]
        fcw_ref = refs[2 + 4 * L]
        fcb_ref = refs[3 + 4 * L]
        out_ref = refs[4 + 4 * L]
        hout_ref = refs[5 + 4 * L]
        gi_ref = refs[6 + 4 * L]
        seq_ref = refs[7 + 4 * L]

        h = None
        for l in range(L):
            wih_t = layer_refs[4 * l + 0][...]             # (Din_p, 3Hp)
            whh_t = layer_refs[4 * l + 1][...]             # (Hp,    3Hp)
            b_rzn = layer_refs[4 * l + 2][...] if l > 0 else None
            bhn = layer_refs[4 * l + 3][...]               # (1, Hp)
            # Hoisted once per layer (JAX does not CSE broadcast_in_dim).
            bhn_b = jnp.broadcast_to(bhn, (Bc, Hp))
            last_layer = l == L - 1
            h = h0_ref[l]                                  # (Bc, Hp) f32

            for c in range(n_chunks):                      # static chunk loop
                t0 = c * Tc
                tc = min(Tc, T - t0)
                rows = tc * Bc

                # ---- chunked batched input projection (one matmul) -------
                x_src = x_ref if l == 0 else seq_ref
                x_chunk = x_src[pl.ds(t0 * Bc, rows), :]
                gi = jnp.dot(x_chunk, wih_t,
                             preferred_element_type=jnp.float32)
                if b_rzn is not None:
                    # Layer-0 bias is folded into wih_t via the x ones lane.
                    gi = gi + b_rzn
                gi_ref[pl.ds(0, rows), :] = gi

                # ---- serial recurrence over this chunk --------------------
                def step(i, h, t0=t0):
                    off = pl.multiple_of(i * Bc, 8)
                    gi_t = gi_ref[pl.ds(off, Bc), :]               # (Bc, 3Hp)
                    gh = jnp.dot(h.astype(wdt), whh_t,
                                 preferred_element_type=jnp.float32)
                    # One EUP call covers both r and z (contiguous 2*Hp).
                    rz = jax.nn.sigmoid(gi_t[:, 0:2 * Hp] + gh[:, 0:2 * Hp])
                    r = rz[:, 0:Hp]
                    z = rz[:, Hp:2 * Hp]
                    n = jnp.tanh(gi_t[:, 2 * Hp:3 * Hp]
                                 + r * (gh[:, 2 * Hp:3 * Hp] + bhn_b))
                    h_new = n + z * (h - n)        # == (1 - z) * n + z * h
                    if not last_layer:
                        soff = pl.multiple_of(t0 * Bc + i * Bc, 8)
                        seq_ref[pl.ds(soff, Bc), :] = h_new.astype(wdt)
                    return h_new

                unroll = True if tc <= 32 else 8
                h = lax.fori_loop(0, tc, step, h, unroll=unroll)

            hout_ref[l] = h

        # out = fc(relu(last-layer h_T)), lane-dense Op output.
        h_relu = jnp.maximum(h, 0.0)
        out_ref[...] = (jnp.dot(h_relu.astype(wdt), fcw_ref[...],
                                preferred_element_type=jnp.float32)
                        + fcb_ref[...])

    return kernel


# ----------------------------------------------------------------------------
# Jitted forward (layout plumbing + pallas_call); weight packing is separate.
# ----------------------------------------------------------------------------
@functools.partial(jax.jit,
                   static_argnames=("out_dim", "batch_chunk", "time_chunk"))
def _gru_forward_impl(x, h0, layer_weights, fc_weights, *, out_dim,
                      batch_chunk, time_chunk):
    B, T, D = x.shape
    L, _, H = h0.shape
    fcw_t, fcb_p = fc_weights
    Dp = layer_weights[0][0].shape[0]
    Hp = layer_weights[0][1].shape[0]
    Op = fcw_t.shape[1]
    O = out_dim
    wdt = layer_weights[0][0].dtype

    # ---- batch / time tiling -----------------------------------------------
    Bp0 = max(8, _round_up(B, 8))
    if batch_chunk is None:
        Bc = Bp0
    else:
        Bc = max(8, _round_up(min(int(batch_chunk), Bp0), 8))
    nb = pl.cdiv(Bp0, Bc)
    Bp = nb * Bc
    Tc = min(T, 64) if time_chunk is None else max(1, min(int(time_chunk), T))

    # ---- inputs: time-major, padded, batch-chunk blocked, ones lane --------
    x_tm = jnp.transpose(x, (1, 0, 2)).astype(jnp.float32)      # (T, B, D)
    x_tm = jnp.pad(x_tm, ((0, 0), (0, Bp - B), (0, Dp - D)))
    x_tm = x_tm.at[:, :, D].set(1.0)        # ones lane: layer-0 bias fold
    x_b = (x_tm.reshape(T, nb, Bc, Dp).transpose(1, 0, 2, 3)
           .reshape(nb, T * Bc, Dp).astype(wdt))
    h0_p = jnp.pad(h0.astype(jnp.float32),
                   ((0, 0), (0, Bp - B), (0, Hp - H)))
    h0_b = h0_p.reshape(L, nb, Bc, Hp).transpose(1, 0, 2, 3)    # (nb,L,Bc,Hp)

    const2 = lambda b: (0, 0)   # weights stay resident across the batch grid
    kernel_args = [x_b, h0_b]
    in_specs = [
        pl.BlockSpec((None, T * Bc, Dp), lambda b: (b, 0, 0)),
        pl.BlockSpec((None, L, Bc, Hp), lambda b: (b, 0, 0, 0)),
    ]
    for lw in layer_weights:
        wih_t, whh_t, b_rzn, bhn = lw
        kernel_args += [wih_t, whh_t, b_rzn, bhn]
        in_specs += [pl.BlockSpec(wih_t.shape, const2),
                     pl.BlockSpec(whh_t.shape, const2),
                     pl.BlockSpec(b_rzn.shape, const2),
                     pl.BlockSpec(bhn.shape, const2)]
    kernel_args += [fcw_t, fcb_p]
    in_specs += [pl.BlockSpec(fcw_t.shape, const2),
                 pl.BlockSpec(fcb_p.shape, const2)]

    out_specs = (
        pl.BlockSpec((None, Bc, Op), lambda b: (b, 0, 0)),
        pl.BlockSpec((None, L, Bc, Hp), lambda b: (b, 0, 0, 0)),
    )
    out_shape = (
        jax.ShapeDtypeStruct((nb, Bc, Op), jnp.float32),
        jax.ShapeDtypeStruct((nb, L, Bc, Hp), jnp.float32),
    )

    # ---- VMEM budget: actual per-block + scratch footprint ------------------
    io_bytes = (_nbytes((T * Bc, Dp), wdt)
                + 2 * _nbytes((L, Bc, Hp), jnp.float32)   # h0 block + hout block
                + _nbytes((Bc, Op), jnp.float32))
    for lw in layer_weights:
        wih_t_, whh_t_, b_rzn_, bhn_ = lw
        io_bytes += (_nbytes(wih_t_.shape, wdt) + _nbytes(whh_t_.shape, wdt)
                     + _nbytes(b_rzn_.shape, jnp.float32)
                     + _nbytes(bhn_.shape, jnp.float32))
    io_bytes += _nbytes(fcw_t.shape, wdt) + _nbytes(fcb_p.shape, jnp.float32)
    scratch_bytes = (_nbytes((Tc * Bc, 3 * Hp), jnp.float32)
                     + _nbytes((T * Bc, Hp), wdt))
    required = 2 * io_bytes + scratch_bytes + (4 << 20)   # 2x: double buffering
    vmem_limit = _vmem_limit_bytes(required)

    out_b, hout_b = pl.pallas_call(
        _make_gru_kernel(L, T, Bc, Hp, Tc, wdt),
        grid=(nb,),
        out_shape=out_shape,
        in_specs=in_specs,
        out_specs=out_specs,
        scratch_shapes=[
            pltpu.VMEM((Tc * Bc, 3 * Hp), jnp.float32),   # chunked gi
            pltpu.VMEM((T * Bc, Hp), wdt),                # inter-layer sequence
        ],
        input_output_aliases={1: 1},                      # h0 -> hout in place
        compiler_params=pltpu.CompilerParams(
            dimension_semantics=("parallel",),
            vmem_limit_bytes=vmem_limit),
    )(*kernel_args)

    out = out_b.reshape(Bp, Op)[:B, :O]
    h_out = hout_b.transpose(1, 0, 2, 3).reshape(L, Bp, Hp)[:, :B, :H]
    return out, h_out


def gru_net_forward(x, h0, packed, *, batch_chunk=None, time_chunk=None):
    """x: (B,T,D) batch-first, h0: (L,B,H). Returns (out (B,O), h (L,B,H))."""
    layer_weights = tuple(tuple(lw) for lw in packed["layers"])
    fc_weights = tuple(packed["fc"])
    return _gru_forward_impl(x, h0, layer_weights, fc_weights,
                             out_dim=packed["out_dim"],
                             batch_chunk=batch_chunk, time_chunk=time_chunk)


# ----------------------------------------------------------------------------
# One-time weight packing (hoisted out of the per-call path per review).
# Raw PyTorch layouts: wih (3H, din), whh (3H, H), biases (3H,), fc (O, H).
# ----------------------------------------------------------------------------
def pack_gru_params(params, input_dim, hidden_dim, output_dim, n_layers,
                    weight_dtype=jnp.float32):
    D, H, O, L = input_dim, hidden_dim, output_dim, n_layers
    wdt = weight_dtype
    Hp = _round_up(H, 128)
    Dp = _round_up(D + 1, 128)   # +1: reserved ones lane for layer-0 bias fold
    Op = _round_up(O, 128)

    layers = []
    for l in range(L):
        wih, whh, bih, bhh = params["layers"][l]
        din = D if l == 0 else H
        din_p = Dp if l == 0 else Hp
        wih_t = jnp.zeros((din_p, 3 * Hp), jnp.float32)
        whh_t = jnp.zeros((Hp, 3 * Hp), jnp.float32)
        b_rzn = jnp.zeros((1, 3 * Hp), jnp.float32)
        for g in range(3):
            wih_t = wih_t.at[:din, g * Hp:g * Hp + H].set(
                wih[g * H:(g + 1) * H, :].T)
            whh_t = whh_t.at[:H, g * Hp:g * Hp + H].set(
                whh[g * H:(g + 1) * H, :].T)
            b = bih[g * H:(g + 1) * H]
            if g < 2:                     # hidden bias foldable for r, z only
                b = b + bhh[g * H:(g + 1) * H]
            b_rzn = b_rzn.at[0, g * Hp:g * Hp + H].set(b)
        bhn = jnp.zeros((1, Hp), jnp.float32).at[0, :H].set(bhh[2 * H:3 * H])
        if l == 0:
            # Fold b_rzn into the ones-lane row of W_ih (x carries 1.0 at lane
            # D); the kernel skips the explicit bias add for layer 0.
            wih_t = wih_t.at[D, :].set(b_rzn[0])
            b_rzn = jnp.zeros_like(b_rzn)
        layers.append((wih_t.astype(wdt), whh_t.astype(wdt), b_rzn, bhn))

    fcw, fcb = params["fc"]
    fcw_t = jnp.zeros((Hp, Op), jnp.float32).at[:H, :O].set(fcw.T).astype(wdt)
    fcb_p = jnp.zeros((1, Op), jnp.float32).at[0, :O].set(fcb)
    return {"layers": layers, "fc": (fcw_t, fcb_p), "out_dim": O}


# ----------------------------------------------------------------------------
# Deterministic parameter init (mimics nn.GRU / nn.Linear uniform(-1/sqrt(H)))
# ----------------------------------------------------------------------------
def init_params(key, input_dim, hidden_dim, output_dim, n_layers):
    H = hidden_dim
    bound = 1.0 / float(H) ** 0.5
    layers = []
    for l in range(n_layers):
        d_in = input_dim if l == 0 else hidden_dim
        key, k1, k2, k3, k4 = jax.random.split(key, 5)
        wih = jax.random.uniform(k1, (3 * H, d_in), jnp.float32, -bound, bound)
        whh = jax.random.uniform(k2, (3 * H, H), jnp.float32, -bound, bound)
        bih = jax.random.uniform(k3, (3 * H,), jnp.float32, -bound, bound)
        bhh = jax.random.uniform(k4, (3 * H,), jnp.float32, -bound, bound)
        layers.append((wih, whh, bih, bhh))
    key, k5, k6 = jax.random.split(key, 3)
    fcw = jax.random.uniform(k5, (output_dim, H), jnp.float32, -bound, bound)
    fcb = jax.random.uniform(k6, (output_dim,), jnp.float32, -bound, bound)
    return {"layers": layers, "fc": (fcw, fcb)}


# ----------------------------------------------------------------------------
# Pure-JAX reference (same math) for the correctness check
# ----------------------------------------------------------------------------
def gru_net_reference(x, h0, params):
    B, T, D = x.shape
    L, _, H = h0.shape
    inp = x
    h_last = []
    for l in range(L):
        wih, whh, bih, bhh = params["layers"][l]
        h = h0[l]
        outs = []
        for t in range(T):
            gi = inp[:, t] @ wih.T + bih
            gh = h @ whh.T + bhh
            r = jax.nn.sigmoid(gi[:, 0:H] + gh[:, 0:H])
            z = jax.nn.sigmoid(gi[:, H:2 * H] + gh[:, H:2 * H])
            n = jnp.tanh(gi[:, 2 * H:] + r * gh[:, 2 * H:])
            h = (1.0 - z) * n + z * h
            outs.append(h)
        inp = jnp.stack(outs, axis=1)
        h_last.append(h)
    fcw, fcb = params["fc"]
    out = jnp.maximum(inp[:, -1], 0.0) @ fcw.T + fcb
    return out, jnp.stack(h_last)


# ----------------------------------------------------------------------------
if __name__ == "__main__":
    B, T = 2, 8          # batch, sequence length
    D, H = 4, 32         # input_dim, hidden_dim
    L, O = 2, 3          # n_layers, output_dim

    key = jax.random.PRNGKey(0)
    key, kx, kp, kx2, kh2 = jax.random.split(key, 5)
    x = jax.random.normal(kx, (B, T, D), jnp.float32)
    h0 = jnp.zeros((L, B, H), jnp.float32)   # GRUNet.init_hidden -> zeros
    params = init_params(kp, D, H, O, L)

    # One-time weight packing (hoisted out of the per-call path).
    packed = pack_gru_params(params, D, H, O, L, weight_dtype=jnp.float32)

    out, h_out = gru_net_forward(x, h0, packed)
    out, h_out = jax.block_until_ready((out, h_out))
    ref_out, ref_h = gru_net_reference(x, h0, params)
    assert out.shape == (B, O) and h_out.shape == (L, B, H)
    assert jnp.allclose(out, ref_out, atol=1e-4, rtol=1e-4)
    assert jnp.allclose(h_out, ref_h, atol=1e-4, rtol=1e-4)

    # Multi-block batch grid + uneven time chunks (exercise the tiled paths).
    B2, T2 = 9, 12
    x2 = jax.random.normal(kx2, (B2, T2, D), jnp.float32)
    h02 = 0.1 * jax.random.normal(kh2, (L, B2, H), jnp.float32)
    out2, h2 = gru_net_forward(x2, h02, packed, batch_chunk=8, time_chunk=5)
    out2, h2 = jax.block_until_ready((out2, h2))
    ref_out2, ref_h2 = gru_net_reference(x2, h02, params)
    assert jnp.allclose(out2, ref_out2, atol=1e-4, rtol=1e-4)
    assert jnp.allclose(h2, ref_h2, atol=1e-4, rtol=1e-4)

    # bf16 matmul-operand path (v6e/v7x MXU); f32 accumulation, looser tol.
    packed_bf16 = pack_gru_params(params, D, H, O, L,
                                  weight_dtype=jnp.bfloat16)
    out_bf, h_bf = gru_net_forward(x, h0, packed_bf16)
    out_bf, h_bf = jax.block_until_ready((out_bf, h_bf))
    assert jnp.allclose(out_bf, ref_out, atol=1e-1, rtol=1e-1)
    assert jnp.allclose(h_bf, ref_h, atol=1e-1, rtol=1e-1)

    print("KERNEL_OK")
</pallas_src>

<mosaic_0001>
module attributes {stable_mosaic.version = 11 : i64} {
  func.func @kernel(%arg0: i32, %arg1: memref<1x64x128xf32, #tpu.memory_space<vmem>>, %arg2: memref<1x2x8x128xf32, #tpu.memory_space<vmem>>, %arg3: memref<128x384xf32, #tpu.memory_space<vmem>>, %arg4: memref<128x384xf32, #tpu.memory_space<vmem>>, %arg5: memref<1x384xf32, #tpu.memory_space<vmem>>, %arg6: memref<1x128xf32, #tpu.memory_space<vmem>>, %arg7: memref<128x384xf32, #tpu.memory_space<vmem>>, %arg8: memref<128x384xf32, #tpu.memory_space<vmem>>, %arg9: memref<1x384xf32, #tpu.memory_space<vmem>>, %arg10: memref<1x128xf32, #tpu.memory_space<vmem>>, %arg11: memref<128x128xf32, #tpu.memory_space<vmem>>, %arg12: memref<1x128xf32, #tpu.memory_space<vmem>>, %arg13: memref<1x8x128xf32, #tpu.memory_space<vmem>>, %arg14: memref<1x2x8x128xf32, #tpu.memory_space<vmem>>, %arg15: memref<64x384xf32, #tpu.memory_space<vmem>>, %arg16: memref<64x128xf32, #tpu.memory_space<vmem>>) attributes {dimension_semantics = [#tpu.dimension_semantics<parallel>], iteration_bounds = array<i64: 1>, scalar_prefetch = 0 : i64, scratch_operands = 2 : i64, tpu.core_type = #tpu.core_type<tc>, window_params = [{transform_indices = @transform_0, window_bounds = array<i64: 1, 64, 128>}, {transform_indices = @transform_1, window_bounds = array<i64: 1, 2, 8, 128>}, {pipeline_mode = #tpu.pipeline_mode<synchronous>, transform_indices = @transform_2, window_bounds = array<i64: 128, 384>}, {pipeline_mode = #tpu.pipeline_mode<synchronous>, transform_indices = @transform_3, window_bounds = array<i64: 128, 384>}, {pipeline_mode = #tpu.pipeline_mode<synchronous>, transform_indices = @transform_4, window_bounds = array<i64: 1, 384>}, {pipeline_mode = #tpu.pipeline_mode<synchronous>, transform_indices = @transform_5, window_bounds = array<i64: 1, 128>}, {pipeline_mode = #tpu.pipeline_mode<synchronous>, transform_indices = @transform_6, window_bounds = array<i64: 128, 384>}, {pipeline_mode = #tpu.pipeline_mode<synchronous>, transform_indices = @transform_7, window_bounds = array<i64: 128, 384>}, {pipeline_mode = #tpu.pipeline_mode<synchronous>, transform_indices = @transform_8, window_bounds = array<i64: 1, 384>}, {pipeline_mode = #tpu.pipeline_mode<synchronous>, transform_indices = @transform_9, window_bounds = array<i64: 1, 128>}, {pipeline_mode = #tpu.pipeline_mode<synchronous>, transform_indices = @transform_10, window_bounds = array<i64: 128, 128>}, {pipeline_mode = #tpu.pipeline_mode<synchronous>, transform_indices = @transform_11, window_bounds = array<i64: 1, 128>}, {transform_indices = @transform_12, window_bounds = array<i64: 1, 8, 128>}, {transform_indices = @transform_13, window_bounds = array<i64: 1, 2, 8, 128>}]} {
    %c0 = arith.constant 0 : index
    %c0_0 = arith.constant 0 : index
    %0 = vector.load %arg3[%c0, %c0_0] : memref<128x384xf32, #tpu.memory_space<vmem>>, vector<128x384xf32>
    %c0_1 = arith.constant 0 : index
    %c0_2 = arith.constant 0 : index
    %1 = vector.load %arg4[%c0_1, %c0_2] : memref<128x384xf32, #tpu.memory_space<vmem>>, vector<128x384xf32>
    %c0_3 = arith.constant 0 : index
    %c0_4 = arith.constant 0 : index
    %2 = vector.load %arg6[%c0_3, %c0_4] : memref<1x128xf32, #tpu.memory_space<vmem>>, vector<1x128xf32>
    %3 = vector.shape_cast %2 : vector<1x128xf32> to vector<1x128xf32>
    %4 = vector.broadcast %3 : vector<1x128xf32> to vector<8x128xf32>
    %c0_5 = arith.constant 0 : index
    %c0_6 = arith.constant 0 : index
    %c0_7 = arith.constant 0 : index
    %c0_8 = arith.constant 0 : index
    %5 = vector.load %arg2[%c0_5, %c0_6, %c0_7, %c0_8] : memref<1x2x8x128xf32, #tpu.memory_space<vmem>>, vector<1x1x8x128xf32>
    %6 = vector.shape_cast %5 : vector<1x1x8x128xf32> to vector<8x128xf32>
    %c0_9 = arith.constant 0 : index
    %c0_10 = arith.constant 0 : index
    %c0_11 = arith.constant 0 : index
    %7 = vector.load %arg1[%c0_9, %c0_10, %c0_11] : memref<1x64x128xf32, #tpu.memory_space<vmem>>, vector<1x64x128xf32>
    %8 = vector.shape_cast %7 : vector<1x64x128xf32> to vector<64x128xf32>
    %cst = arith.constant dense<0.000000e+00> : vector<64x384xf32>
    %9 = tpu.matmul %8, %0, %cst {dimension_numbers = #tpu.dot_dimension_numbers<[1], [0], [0], [1], [0, 0, 1, 1], [], []>} : vector<64x128xf32>, vector<128x384xf32>, vector<64x384xf32> -> vector<64x384xf32>
    %c0_12 = arith.constant 0 : index
    %c0_13 = arith.constant 0 : index
    %10 = vector.load %arg15[%c0_12, %c0_13] : memref<64x384xf32, #tpu.memory_space<vmem>>, vector<64x384xf32>
    tpu.vector_store %arg15[%c0_12, %c0_13], %9 {strides = array<i32>} : memref<64x384xf32, #tpu.memory_space<vmem>>, vector<64x384xf32>,
    %c0_i32 = arith.constant 0 : i32
    %c8_i32 = arith.constant 8 : i32
    %11 = arith.muli %c0_i32, %c8_i32 : i32
    %12 = tpu.assume_multiple %11, 8 : i32
    %13 = arith.index_cast %12 : i32 to index
    %c0_14 = arith.constant 0 : index
    %14 = vector.load %arg15[%13, %c0_14] : memref<64x384xf32, #tpu.memory_space<vmem>>, vector<8x384xf32>
    %cst_15 = arith.constant dense<0.000000e+00> : vector<8x384xf32>
    %15 = tpu.matmul %6, %1, %cst_15 {dimension_numbers = #tpu.dot_dimension_numbers<[1], [0], [0], [1], [0, 0, 1, 1], [], []>} : vector<8x128xf32>, vector<128x384xf32>, vector<8x384xf32> -> vector<8x384xf32>
    %16 = vector.extract_strided_slice %14 {offsets = [0, 0], sizes = [8, 256], strides = [1, 1]} : vector<8x384xf32> to vector<8x256xf32>
    %17 = vector.extract_strided_slice %15 {offsets = [0, 0], sizes = [8, 256], strides = [1, 1]} : vector<8x384xf32> to vector<8x256xf32>
    %18 = arith.addf %16, %17 : vector<8x256xf32>
    %19 = arith.negf %18 : vector<8x256xf32>
    %20 = math.exp %19 : vector<8x256xf32>
    %cst_16 = arith.constant 1.000000e+00 : f32
    %21 = vector.broadcast %cst_16 : f32 to vector<8x256xf32>
    %22 = arith.addf %21, %20 : vector<8x256xf32>
    %23 = arith.divf %21, %22 : vector<8x256xf32>
    %24 = vector.extract_strided_slice %23 {offsets = [0, 0], sizes = [8, 128], strides = [1, 1]} : vector<8x256xf32> to vector<8x128xf32>
    %25 = vector.extract_strided_slice %23 {offsets = [0, 128], sizes = [8, 128], strides = [1, 1]} : vector<8x256xf32> to vector<8x128xf32>
    %26 = vector.extract_strided_slice %14 {offsets = [0, 256], sizes = [8, 128], strides = [1, 1]} : vector<8x384xf32> to vector<8x128xf32>
    %27 = vector.extract_strided_slice %15 {offsets = [0, 256], sizes = [8, 128], strides = [1, 1]} : vector<8x384xf32> to vector<8x128xf32>
    %28 = arith.addf %27, %4 : vector<8x128xf32>
    %29 = arith.mulf %24, %28 : vector<8x128xf32>
    %30 = arith.addf %26, %29 : vector<8x128xf32>
    %31 = math.tanh %30 : vector<8x128xf32>
    %32 = arith.subf %6, %31 : vector<8x128xf32>
    %33 = arith.mulf %25, %32 : vector<8x128xf32>
    %34 = arith.addf %31, %33 : vector<8x128xf32>
    %c8_i32_17 = arith.constant 8 : i32
    %35 = arith.muli %c0_i32, %c8_i32_17 : i32
    %c0_i32_18 = arith.constant 0 : i32
    %36 = arith.addi %c0_i32_18, %35 : i32
    %37 = tpu.assume_multiple %36, 8 : i32
    %38 = arith.index_cast %37 : i32 to index
    %c0_19 = arith.constant 0 : index
    %39 = vector.load %arg16[%38, %c0_19] : memref<64x128xf32, #tpu.memory_space<vmem>>, vector<8x128xf32>
    tpu.vector_store %arg16[%38, %c0_19], %34 {strides = array<i32>} : memref<64x128xf32, #tpu.memory_space<vmem>>, vector<8x128xf32>,
    %c1_i32 = arith.constant 1 : i32
    %c8_i32_20 = arith.constant 8 : i32
    %40 = arith.muli %c1_i32, %c8_i32_20 : i32
    %41 = tpu.assume_multiple %40, 8 : i32
    %42 = arith.index_cast %41 : i32 to index
    %c0_21 = arith.constant 0 : index
    %43 = vector.load %arg15[%42, %c0_21] : memref<64x384xf32, #tpu.memory_space<vmem>>, vector<8x384xf32>
    %cst_22 = arith.constant dense<0.000000e+00> : vector<8x384xf32>
    %44 = tpu.matmul %34, %1, %cst_22 {dimension_numbers = #tpu.dot_dimension_numbers<[1], [0], [0], [1], [0, 0, 1, 1], [], []>} : vector<8x128xf32>, vector<128x384xf32>, vector<8x384xf32> -> vector<8x384xf32>
    %45 = vector.extract_strided_slice %43 {offsets = [0, 0], sizes = [8, 256], strides = [1, 1]} : vector<8x384xf32> to vector<8x256xf32>
    %46 = vector.extract_strided_slice %44 {offsets = [0, 0], sizes = [8, 256], strides = [1, 1]} : vector<8x384xf32> to vector<8x256xf32>
    %47 = arith.addf %45, %46 : vector<8x256xf32>
    %48 = arith.negf %47 : vector<8x256xf32>
    %49 = math.exp %48 : vector<8x256xf32>
    %cst_23 = arith.constant 1.000000e+00 : f32
    %50 = vector.broadcast %cst_23 : f32 to vector<8x256xf32>
    %51 = arith.addf %50, %49 : vector<8x256xf32>
    %52 = arith.divf %50, %51 : vector<8x256xf32>
    %53 = vector.extract_strided_slice %52 {offsets = [0, 0], sizes = [8, 128], strides = [1, 1]} : vector<8x256xf32> to vector<8x128xf32>
    %54 = vector.extract_strided_slice %52 {offsets = [0, 128], sizes = [8, 128], strides = [1, 1]} : vector<8x256xf32> to vector<8x128xf32>
    %55 = vector.extract_strided_slice %43 {offsets = [0, 256], sizes = [8, 128], strides = [1, 1]} : vector<8x384xf32> to vector<8x128xf32>
    %56 = vector.extract_strided_slice %44 {offsets = [0, 256], sizes = [8, 128], strides = [1, 1]} : vector<8x384xf32> to vector<8x128xf32>
    %57 = arith.addf %56, %4 : vector<8x128xf32>
    %58 = arith.mulf %53, %57 : vector<8x128xf32>
    %59 = arith.addf %55, %58 : vector<8x128xf32>
    %60 = math.tanh %59 : vector<8x128xf32>
    %61 = arith.subf %34, %60 : vector<8x128xf32>
    %62 = arith.mulf %54, %61 : vector<8x128xf32>
    %63 = arith.addf %60, %62 : vector<8x128xf32>
    %c8_i32_24 = arith.constant 8 : i32
    %64 = arith.muli %c1_i32, %c8_i32_24 : i32
    %c0_i32_25 = arith.constant 0 : i32
    %65 = arith.addi %c0_i32_25, %64 : i32
    %66 = tpu.assume_multiple %65, 8 : i32
    %67 = arith.index_cast %66 : i32 to index
    %c0_26 = arith.constant 0 : index
    %68 = vector.load %arg16[%67, %c0_26] : memref<64x128xf32, #tpu.memory_space<vmem>>, vector<8x128xf32>
    tpu.vector_store %arg16[%67, %c0_26], %63 {strides = array<i32>} : memref<64x128xf32, #tpu.memory_space<vmem>>, vector<8x128xf32>,
    %c2_i32 = arith.constant 2 : i32
    %c8_i32_27 = arith.constant 8 : i32
    %69 = arith.muli %c2_i32, %c8_i32_27 : i32
    %70 = tpu.assume_multiple %69, 8 : i32
    %71 = arith.index_cast %70 : i32 to index
    %c0_28 = arith.constant 0 : index
    %72 = vector.load %arg15[%71, %c0_28] : memref<64x384xf32, #tpu.memory_space<vmem>>, vector<8x384xf32>
    %cst_29 = arith.constant dense<0.000000e+00> : vector<8x384xf32>
    %73 = tpu.matmul %63, %1, %cst_29 {dimension_numbers = #tpu.dot_dimension_numbers<[1], [0], [0], [1], [0, 0, 1, 1], [], []>} : vector<8x128xf32>, vector<128x384xf32>, vector<8x384xf32> -> vector<8x384xf32>
    %74 = vector.extract_strided_slice %72 {offsets = [0, 0], sizes = [8, 256], strides = [1, 1]} : vector<8x384xf32> to vector<8x256xf32>
    %75 = vector.extract_strided_slice %73 {offsets = [0, 0], sizes = [8, 256], strides = [1, 1]} : vector<8x384xf32> to vector<8x256xf32>
    %76 = arith.addf %74, %75 : vector<8x256xf32>
    %77 = arith.negf %76 : vector<8x256xf32>
    %78 = math.exp %77 : vector<8x256xf32>
    %cst_30 = arith.constant 1.000000e+00 : f32
    %79 = vector.broadcast %cst_30 : f32 to vector<8x256xf32>
    %80 = arith.addf %79, %78 : vector<8x256xf32>
    %81 = arith.divf %79, %80 : vector<8x256xf32>
    %82 = vector.extract_strided_slice %81 {offsets = [0, 0], sizes = [8, 128], strides = [1, 1]} : vector<8x256xf32> to vector<8x128xf32>
    %83 = vector.extract_strided_slice %81 {offsets = [0, 128], sizes = [8, 128], strides = [1, 1]} : vector<8x256xf32> to vector<8x128xf32>
    %84 = vector.extract_strided_slice %72 {offsets = [0, 256], sizes = [8, 128], strides = [1, 1]} : vector<8x384xf32> to vector<8x128xf32>
    %85 = vector.extract_strided_slice %73 {offsets = [0, 256], sizes = [8, 128], strides = [1, 1]} : vector<8x384xf32> to vector<8x128xf32>
    %86 = arith.addf %85, %4 : vector<8x128xf32>
    %87 = arith.mulf %82, %86 : vector<8x128xf32>
    %88 = arith.addf %84, %87 : vector<8x128xf32>
    %89 = math.tanh %88 : vector<8x128xf32>
    %90 = arith.subf %63, %89 : vector<8x128xf32>
    %91 = arith.mulf %83, %90 : vector<8x128xf32>
    %92 = arith.addf %89, %91 : vector<8x128xf32>
    %c8_i32_31 = arith.constant 8 : i32
    %93 = arith.muli %c2_i32, %c8_i32_31 : i32
    %c0_i32_32 = arith.constant 0 : i32
    %94 = arith.addi %c0_i32_32, %93 : i32
    %95 = tpu.assume_multiple %94, 8 : i32
    %96 = arith.index_cast %95 : i32 to index
    %c0_33 = arith.constant 0 : index
    %97 = vector.load %arg16[%96, %c0_33] : memref<64x128xf32, #tpu.memory_space<vmem>>, vector<8x128xf32>
    tpu.vector_store %arg16[%96, %c0_33], %92 {strides = array<i32>} : memref<64x128xf32, #tpu.memory_space<vmem>>, vector<8x128xf32>,
    %c3_i32 = arith.constant 3 : i32
    %c8_i32_34 = arith.constant 8 : i32
    %98 = arith.muli %c3_i32, %c8_i32_34 : i32
    %99 = tpu.assume_multiple %98, 8 : i32
    %100 = arith.index_cast %99 : i32 to index
    %c0_35 = arith.constant 0 : index
    %101 = vector.load %arg15[%100, %c0_35] : memref<64x384xf32, #tpu.memory_space<vmem>>, vector<8x384xf32>
    %cst_36 = arith.constant dense<0.000000e+00> : vector<8x384xf32>
    %102 = tpu.matmul %92, %1, %cst_36 {dimension_numbers = #tpu.dot_dimension_numbers<[1], [0], [0], [1], [0, 0, 1, 1], [], []>} : vector<8x128xf32>, vector<128x384xf32>, vector<8x384xf32> -> vector<8x384xf32>
    %103 = vector.extract_strided_slice %101 {offsets = [0, 0], sizes = [8, 256], strides = [1, 1]} : vector<8x384xf32> to vector<8x256xf32>
    %104 = vector.extract_strided_slice %102 {offsets = [0, 0], sizes = [8, 256], strides = [1, 1]} : vector<8x384xf32> to vector<8x256xf32>
    %105 = arith.addf %103, %104 : vector<8x256xf32>
    %106 = arith.negf %105 : vector<8x256xf32>
    %107 = math.exp %106 : vector<8x256xf32>
    %cst_37 = arith.constant 1.000000e+00 : f32
    %108 = vector.broadcast %cst_37 : f32 to vector<8x256xf32>
    %109 = arith.addf %108, %107 : vector<8x256xf32>
    %110 = arith.divf %108, %109 : vector<8x256xf32>
    %111 = vector.extract_strided_slice %110 {offsets = [0, 0], sizes = [8, 128], strides = [1, 1]} : vector<8x256xf32> to vector<8x128xf32>
    %112 = vector.extract_strided_slice %110 {offsets = [0, 128], sizes = [8, 128], strides = [1, 1]} : vector<8x256xf32> to vector<8x128xf32>
    %113 = vector.extract_strided_slice %101 {offsets = [0, 256], sizes = [8, 128], strides = [1, 1]} : vector<8x384xf32> to vector<8x128xf32>
    %114 = vector.extract_strided_slice %102 {offsets = [0, 256], sizes = [8, 128], strides = [1, 1]} : vector<8x384xf32> to vector<8x128xf32>
    %115 = arith.addf %114, %4 : vector<8x128xf32>
    %116 = arith.mulf %111, %115 : vector<8x128xf32>
    %117 = arith.addf %113, %116 : vector<8x128xf32>
    %118 = math.tanh %117 : vector<8x128xf32>
    %119 = arith.subf %92, %118 : vector<8x128xf32>
    %120 = arith.mulf %112, %119 : vector<8x128xf32>
    %121 = arith.addf %118, %120 : vector<8x128xf32>
    %c8_i32_38 = arith.constant 8 : i32
    %122 = arith.muli %c3_i32, %c8_i32_38 : i32
    %c0_i32_39 = arith.constant 0 : i32
    %123 = arith.addi %c0_i32_39, %122 : i32
    %124 = tpu.assume_multiple %123, 8 : i32
    %125 = arith.index_cast %124 : i32 to index
    %c0_40 = arith.constant 0 : index
    %126 = vector.load %arg16[%125, %c0_40] : memref<64x128xf32, #tpu.memory_space<vmem>>, vector<8x128xf32>
    tpu.vector_store %arg16[%125, %c0_40], %121 {strides = array<i32>} : memref<64x128xf32, #tpu.memory_space<vmem>>, vector<8x128xf32>,
    %c4_i32 = arith.constant 4 : i32
    %c8_i32_41 = arith.constant 8 : i32
    %127 = arith.muli %c4_i32, %c8_i32_41 : i32
    %128 = tpu.assume_multiple %127, 8 : i32
    %129 = arith.index_cast %128 : i32 to index
    %c0_42 = arith.constant 0 : index
    %130 = vector.load %arg15[%129, %c0_42] : memref<64x384xf32, #tpu.memory_space<vmem>>, vector<8x384xf32>
    %cst_43 = arith.constant dense<0.000000e+00> : vector<8x384xf32>
    %131 = tpu.matmul %121, %1, %cst_43 {dimension_numbers = #tpu.dot_dimension_numbers<[1], [0], [0], [1], [0, 0, 1, 1], [], []>} : vector<8x128xf32>, vector<128x384xf32>, vector<8x384xf32> -> vector<8x384xf32>
    %132 = vector.extract_strided_slice %130 {offsets = [0, 0], sizes = [8, 256], strides = [1, 1]} : vector<8x384xf32> to vector<8x256xf32>
    %133 = vector.extract_strided_slice %131 {offsets = [0, 0], sizes = [8, 256], strides = [1, 1]} : vector<8x384xf32> to vector<8x256xf32>
    %134 = arith.addf %132, %133 : vector<8x256xf32>
    %135 = arith.negf %134 : vector<8x256xf32>
    %136 = math.exp %135 : vector<8x256xf32>
    %cst_44 = arith.constant 1.000000e+00 : f32
    %137 = vector.broadcast %cst_44 : f32 to vector<8x256xf32>
    %138 = arith.addf %137, %136 : vector<8x256xf32>
    %139 = arith.divf %137, %138 : vector<8x256xf32>
    %140 = vector.extract_strided_slice %139 {offsets = [0, 0], sizes = [8, 128], strides = [1, 1]} : vector<8x256xf32> to vector<8x128xf32>
    %141 = vector.extract_strided_slice %139 {offsets = [0, 128], sizes = [8, 128], strides = [1, 1]} : vector<8x256xf32> to vector<8x128xf32>
    %142 = vector.extract_strided_slice %130 {offsets = [0, 256], sizes = [8, 128], strides = [1, 1]} : vector<8x384xf32> to vector<8x128xf32>
    %143 = vector.extract_strided_slice %131 {offsets = [0, 256], sizes = [8, 128], strides = [1, 1]} : vector<8x384xf32> to vector<8x128xf32>
    %144 = arith.addf %143, %4 : vector<8x128xf32>
    %145 = arith.mulf %140, %144 : vector<8x128xf32>
    %146 = arith.addf %142, %145 : vector<8x128xf32>
    %147 = math.tanh %146 : vector<8x128xf32>
    %148 = arith.subf %121, %147 : vector<8x128xf32>
    %149 = arith.mulf %141, %148 : vector<8x128xf32>
    %150 = arith.addf %147, %149 : vector<8x128xf32>
    %c8_i32_45 = arith.constant 8 : i32
    %151 = arith.muli %c4_i32, %c8_i32_45 : i32
    %c0_i32_46 = arith.constant 0 : i32
    %152 = arith.addi %c0_i32_46, %151 : i32
    %153 = tpu.assume_multiple %152, 8 : i32
    %154 = arith.index_cast %153 : i32 to index
    %c0_47 = arith.constant 0 : index
    %155 = vector.load %arg16[%154, %c0_47] : memref<64x128xf32, #tpu.memory_space<vmem>>, vector<8x128xf32>
    tpu.vector_store %arg16[%154, %c0_47], %150 {strides = array<i32>} : memref<64x128xf32, #tpu.memory_space<vmem>>, vector<8x128xf32>,
    %c5_i32 = arith.constant 5 : i32
    %c8_i32_48 = arith.constant 8 : i32
    %156 = arith.muli %c5_i32, %c8_i32_48 : i32
    %157 = tpu.assume_multiple %156, 8 : i32
    %158 = arith.index_cast %157 : i32 to index
    %c0_49 = arith.constant 0 : index
    %159 = vector.load %arg15[%158, %c0_49] : memref<64x384xf32, #tpu.memory_space<vmem>>, vector<8x384xf32>
    %cst_50 = arith.constant dense<0.000000e+00> : vector<8x384xf32>
    %160 = tpu.matmul %150, %1, %cst_50 {dimension_numbers = #tpu.dot_dimension_numbers<[1], [0], [0], [1], [0, 0, 1, 1], [], []>} : vector<8x128xf32>, vector<128x384xf32>, vector<8x384xf32> -> vector<8x384xf32>
    %161 = vector.extract_strided_slice %159 {offsets = [0, 0], sizes = [8, 256], strides = [1, 1]} : vector<8x384xf32> to vector<8x256xf32>
    %162 = vector.extract_strided_slice %160 {offsets = [0, 0], sizes = [8, 256], strides = [1, 1]} : vector<8x384xf32> to vector<8x256xf32>
    %163 = arith.addf %161, %162 : vector<8x256xf32>
    %164 = arith.negf %163 : vector<8x256xf32>
    %165 = math.exp %164 : vector<8x256xf32>
    %cst_51 = arith.constant 1.000000e+00 : f32
    %166 = vector.broadcast %cst_51 : f32 to vector<8x256xf32>
    %167 = arith.addf %166, %165 : vector<8x256xf32>
    %168 = arith.divf %166, %167 : vector<8x256xf32>
    %169 = vector.extract_strided_slice %168 {offsets = [0, 0], sizes = [8, 128], strides = [1, 1]} : vector<8x256xf32> to vector<8x128xf32>
    %170 = vector.extract_strided_slice %168 {offsets = [0, 128], sizes = [8, 128], strides = [1, 1]} : vector<8x256xf32> to vector<8x128xf32>
    %171 = vector.extract_strided_slice %159 {offsets = [0, 256], sizes = [8, 128], strides = [1, 1]} : vector<8x384xf32> to vector<8x128xf32>
    %172 = vector.extract_strided_slice %160 {offsets = [0, 256], sizes = [8, 128], strides = [1, 1]} : vector<8x384xf32> to vector<8x128xf32>
    %173 = arith.addf %172, %4 : vector<8x128xf32>
    %174 = arith.mulf %169, %173 : vector<8x128xf32>
    %175 = arith.addf %171, %174 : vector<8x128xf32>
    %176 = math.tanh %175 : vector<8x128xf32>
    %177 = arith.subf %150, %176 : vector<8x128xf32>
    %178 = arith.mulf %170, %177 : vector<8x128xf32>
    %179 = arith.addf %176, %178 : vector<8x128xf32>
    %c8_i32_52 = arith.constant 8 : i32
    %180 = arith.muli %c5_i32, %c8_i32_52 : i32
    %c0_i32_53 = arith.constant 0 : i32
    %181 = arith.addi %c0_i32_53, %180 : i32
    %182 = tpu.assume_multiple %181, 8 : i32
    %183 = arith.index_cast %182 : i32 to index
    %c0_54 = arith.constant 0 : index
    %184 = vector.load %arg16[%183, %c0_54] : memref<64x128xf32, #tpu.memory_space<vmem>>, vector<8x128xf32>
    tpu.vector_store %arg16[%183, %c0_54], %179 {strides = array<i32>} : memref<64x128xf32, #tpu.memory_space<vmem>>, vector<8x128xf32>,
    %c6_i32 = arith.constant 6 : i32
    %c8_i32_55 = arith.constant 8 : i32
    %185 = arith.muli %c6_i32, %c8_i32_55 : i32
    %186 = tpu.assume_multiple %185, 8 : i32
    %187 = arith.index_cast %186 : i32 to index
    %c0_56 = arith.constant 0 : index
    %188 = vector.load %arg15[%187, %c0_56] : memref<64x384xf32, #tpu.memory_space<vmem>>, vector<8x384xf32>
    %cst_57 = arith.constant dense<0.000000e+00> : vector<8x384xf32>
    %189 = tpu.matmul %179, %1, %cst_57 {dimension_numbers = #tpu.dot_dimension_numbers<[1], [0], [0], [1], [0, 0, 1, 1], [], []>} : vector<8x128xf32>, vector<128x384xf32>, vector<8x384xf32> -> vector<8x384xf32>
    %190 = vector.extract_strided_slice %188 {offsets = [0, 0], sizes = [8, 256], strides = [1, 1]} : vector<8x384xf32> to vector<8x256xf32>
    %191 = vector.extract_strided_slice %189 {offsets = [0, 0], sizes = [8, 256], strides = [1, 1]} : vector<8x384xf32> to vector<8x256xf32>
    %192 = arith.addf %190, %191 : vector<8x256xf32>
    %193 = arith.negf %192 : vector<8x256xf32>
    %194 = math.exp %193 : vector<8x256xf32>
    %cst_58 = arith.constant 1.000000e+00 : f32
    %195 = vector.broadcast %cst_58 : f32 to vector<8x256xf32>
    %196 = arith.addf %195, %194 : vector<8x256xf32>
    %197 = arith.divf %195, %196 : vector<8x256xf32>
    %198 = vector.extract_strided_slice %197 {offsets = [0, 0], sizes = [8, 128], strides = [1, 1]} : vector<8x256xf32> to vector<8x128xf32>
    %199 = vector.extract_strided_slice %197 {offsets = [0, 128], sizes = [8, 128], strides = [1, 1]} : vector<8x256xf32> to vector<8x128xf32>
    %200 = vector.extract_strided_slice %188 {offsets = [0, 256], sizes = [8, 128], strides = [1, 1]} : vector<8x384xf32> to vector<8x128xf32>
    %201 = vector.extract_strided_slice %189 {offsets = [0, 256], sizes = [8, 128], strides = [1, 1]} : vector<8x384xf32> to vector<8x128xf32>
    %202 = arith.addf %201, %4 : vector<8x128xf32>
    %203 = arith.mulf %198, %202 : vector<8x128xf32>
    %204 = arith.addf %200, %203 : vector<8x128xf32>
    %205 = math.tanh %204 : vector<8x128xf32>
    %206 = arith.subf %179, %205 : vector<8x128xf32>
    %207 = arith.mulf %199, %206 : vector<8x128xf32>
    %208 = arith.addf %205, %207 : vector<8x128xf32>
    %c8_i32_59 = arith.constant 8 : i32
    %209 = arith.muli %c6_i32, %c8_i32_59 : i32
    %c0_i32_60 = arith.constant 0 : i32
    %210 = arith.addi %c0_i32_60, %209 : i32
    %211 = tpu.assume_multiple %210, 8 : i32
    %212 = arith.index_cast %211 : i32 to index
    %c0_61 = arith.constant 0 : index
    %213 = vector.load %arg16[%212, %c0_61] : memref<64x128xf32, #tpu.memory_space<vmem>>, vector<8x128xf32>
    tpu.vector_store %arg16[%212, %c0_61], %208 {strides = array<i32>} : memref<64x128xf32, #tpu.memory_space<vmem>>, vector<8x128xf32>,
    %c7_i32 = arith.constant 7 : i32
    %c8_i32_62 = arith.constant 8 : i32
    %214 = arith.muli %c7_i32, %c8_i32_62 : i32
    %215 = tpu.assume_multiple %214, 8 : i32
    %216 = arith.index_cast %215 : i32 to index
    %c0_63 = arith.constant 0 : index
    %217 = vector.load %arg15[%216, %c0_63] : memref<64x384xf32, #tpu.memory_space<vmem>>, vector<8x384xf32>
    %cst_64 = arith.constant dense<0.000000e+00> : vector<8x384xf32>
    %218 = tpu.matmul %208, %1, %cst_64 {dimension_numbers = #tpu.dot_dimension_numbers<[1], [0], [0], [1], [0, 0, 1, 1], [], []>} : vector<8x128xf32>, vector<128x384xf32>, vector<8x384xf32> -> vector<8x384xf32>
    %219 = vector.extract_strided_slice %217 {offsets = [0, 0], sizes = [8, 256], strides = [1, 1]} : vector<8x384xf32> to vector<8x256xf32>
    %220 = vector.extract_strided_slice %218 {offsets = [0, 0], sizes = [8, 256], strides = [1, 1]} : vector<8x384xf32> to vector<8x256xf32>
    %221 = arith.addf %219, %220 : vector<8x256xf32>
    %222 = arith.negf %221 : vector<8x256xf32>
    %223 = math.exp %222 : vector<8x256xf32>
    %cst_65 = arith.constant 1.000000e+00 : f32
    %224 = vector.broadcast %cst_65 : f32 to vector<8x256xf32>
    %225 = arith.addf %224, %223 : vector<8x256xf32>
    %226 = arith.divf %224, %225 : vector<8x256xf32>
    %227 = vector.extract_strided_slice %226 {offsets = [0, 0], sizes = [8, 128], strides = [1, 1]} : vector<8x256xf32> to vector<8x128xf32>
    %228 = vector.extract_strided_slice %226 {offsets = [0, 128], sizes = [8, 128], strides = [1, 1]} : vector<8x256xf32> to vector<8x128xf32>
    %229 = vector.extract_strided_slice %217 {offsets = [0, 256], sizes = [8, 128], strides = [1, 1]} : vector<8x384xf32> to vector<8x128xf32>
    %230 = vector.extract_strided_slice %218 {offsets = [0, 256], sizes = [8, 128], strides = [1, 1]} : vector<8x384xf32> to vector<8x128xf32>
    %231 = arith.addf %230, %4 : vector<8x128xf32>
    %232 = arith.mulf %227, %231 : vector<8x128xf32>
    %233 = arith.addf %229, %232 : vector<8x128xf32>
    %234 = math.tanh %233 : vector<8x128xf32>
    %235 = arith.subf %208, %234 : vector<8x128xf32>
    %236 = arith.mulf %228, %235 : vector<8x128xf32>
    %237 = arith.addf %234, %236 : vector<8x128xf32>
    %c8_i32_66 = arith.constant 8 : i32
    %238 = arith.muli %c7_i32, %c8_i32_66 : i32
    %c0_i32_67 = arith.constant 0 : i32
    %239 = arith.addi %c0_i32_67, %238 : i32
    %240 = tpu.assume_multiple %239, 8 : i32
    %241 = arith.index_cast %240 : i32 to index
    %c0_68 = arith.constant 0 : index
    %242 = vector.load %arg16[%241, %c0_68] : memref<64x128xf32, #tpu.memory_space<vmem>>, vector<8x128xf32>
    tpu.vector_store %arg16[%241, %c0_68], %237 {strides = array<i32>} : memref<64x128xf32, #tpu.memory_space<vmem>>, vector<8x128xf32>,
    %c8_i32_69 = arith.constant 8 : i32
    %c0_70 = arith.constant 0 : index
    %c0_71 = arith.constant 0 : index
    %c0_72 = arith.constant 0 : index
    %c0_73 = arith.constant 0 : index
    %243 = vector.load %arg14[%c0_70, %c0_71, %c0_72, %c0_73] : memref<1x2x8x128xf32, #tpu.memory_space<vmem>>, vector<1x1x8x128xf32>
    %244 = vector.shape_cast %243 : vector<1x1x8x128xf32> to vector<8x128xf32>
    %245 = vector.shape_cast %237 : vector<8x128xf32> to vector<1x1x8x128xf32>
    tpu.vector_store %arg14[%c0_70, %c0_71, %c0_72, %c0_73], %245 {strides = array<i32>} : memref<1x2x8x128xf32, #tpu.memory_space<vmem>>, vector<1x1x8x128xf32>,
    %c0_74 = arith.constant 0 : index
    %c0_75 = arith.constant 0 : index
    %246 = vector.load %arg7[%c0_74, %c0_75] : memref<128x384xf32, #tpu.memory_space<vmem>>, vector<128x384xf32>
    %c0_76 = arith.constant 0 : index
    %c0_77 = arith.constant 0 : index
    %247 = vector.load %arg8[%c0_76, %c0_77] : memref<128x384xf32, #tpu.memory_space<vmem>>, vector<128x384xf32>
    %c0_78 = arith.constant 0 : index
    %c0_79 = arith.constant 0 : index
    %248 = vector.load %arg9[%c0_78, %c0_79] : memref<1x384xf32, #tpu.memory_space<vmem>>, vector<1x384xf32>
    %c0_80 = arith.constant 0 : index
    %c0_81 = arith.constant 0 : index
    %249 = vector.load %arg10[%c0_80, %c0_81] : memref<1x128xf32, #tpu.memory_space<vmem>>, vector<1x128xf32>
    %250 = vector.shape_cast %249 : vector<1x128xf32> to vector<1x128xf32>
    %251 = vector.broadcast %250 : vector<1x128xf32> to vector<8x128xf32>
    %c0_82 = arith.constant 0 : index
    %c1 = arith.constant 1 : index
    %c0_83 = arith.constant 0 : index
    %c0_84 = arith.constant 0 : index
    %252 = vector.load %arg2[%c0_82, %c1, %c0_83, %c0_84] : memref<1x2x8x128xf32, #tpu.memory_space<vmem>>, vector<1x1x8x128xf32>
    %253 = vector.shape_cast %252 : vector<1x1x8x128xf32> to vector<8x128xf32>
    %c0_85 = arith.constant 0 : index
    %c0_86 = arith.constant 0 : index
    %254 = vector.load %arg16[%c0_85, %c0_86] : memref<64x128xf32, #tpu.memory_space<vmem>>, vector<64x128xf32>
    %cst_87 = arith.constant dense<0.000000e+00> : vector<64x384xf32>
    %255 = tpu.matmul %254, %246, %cst_87 {dimension_numbers = #tpu.dot_dimension_numbers<[1], [0], [0], [1], [0, 0, 1, 1], [], []>} : vector<64x128xf32>, vector<128x384xf32>, vector<64x384xf32> -> vector<64x384xf32>
    %256 = vector.broadcast %248 : vector<1x384xf32> to vector<64x384xf32>
    %257 = arith.addf %255, %256 : vector<64x384xf32>
    %c0_88 = arith.constant 0 : index
    %c0_89 = arith.constant 0 : index
    %258 = vector.load %arg15[%c0_88, %c0_89] : memref<64x384xf32, #tpu.memory_space<vmem>>, vector<64x384xf32>
    tpu.vector_store %arg15[%c0_88, %c0_89], %257 {strides = array<i32>} : memref<64x384xf32, #tpu.memory_space<vmem>>, vector<64x384xf32>,
    %c0_i32_90 = arith.constant 0 : i32
    %c8_i32_91 = arith.constant 8 : i32
    %259 = arith.muli %c0_i32_90, %c8_i32_91 : i32
    %260 = tpu.assume_multiple %259, 8 : i32
    %261 = arith.index_cast %260 : i32 to index
    %c0_92 = arith.constant 0 : index
    %262 = vector.load %arg15[%261, %c0_92] : memref<64x384xf32, #tpu.memory_space<vmem>>, vector<8x384xf32>
    %cst_93 = arith.constant dense<0.000000e+00> : vector<8x384xf32>
    %263 = tpu.matmul %253, %247, %cst_93 {dimension_numbers = #tpu.dot_dimension_numbers<[1], [0], [0], [1], [0, 0, 1, 1], [], []>} : vector<8x128xf32>, vector<128x384xf32>, vector<8x384xf32> -> vector<8x384xf32>
    %264 = vector.extract_strided_slice %262 {offsets = [0, 0], sizes = [8, 256], strides = [1, 1]} : vector<8x384xf32> to vector<8x256xf32>
    %265 = vector.extract_strided_slice %263 {offsets = [0, 0], sizes = [8, 256], strides = [1, 1]} : vector<8x384xf32> to vector<8x256xf32>
    %266 = arith.addf %264, %265 : vector<8x256xf32>
    %267 = arith.negf %266 : vector<8x256xf32>
    %268 = math.exp %267 : vector<8x256xf32>
    %cst_94 = arith.constant 1.000000e+00 : f32
    %269 = vector.broadcast %cst_94 : f32 to vector<8x256xf32>
    %270 = arith.addf %269, %268 : vector<8x256xf32>
    %271 = arith.divf %269, %270 : vector<8x256xf32>
    %272 = vector.extract_strided_slice %271 {offsets = [0, 0], sizes = [8, 128], strides = [1, 1]} : vector<8x256xf32> to vector<8x128xf32>
    %273 = vector.extract_strided_slice %271 {offsets = [0, 128], sizes = [8, 128], strides = [1, 1]} : vector<8x256xf32> to vector<8x128xf32>
    %274 = vector.extract_strided_slice %262 {offsets = [0, 256], sizes = [8, 128], strides = [1, 1]} : vector<8x384xf32> to vector<8x128xf32>
    %275 = vector.extract_strided_slice %263 {offsets = [0, 256], sizes = [8, 128], strides = [1, 1]} : vector<8x384xf32> to vector<8x128xf32>
    %276 = arith.addf %275, %251 : vector<8x128xf32>
    %277 = arith.mulf %272, %276 : vector<8x128xf32>
    %278 = arith.addf %274, %277 : vector<8x128xf32>
    %279 = math.tanh %278 : vector<8x128xf32>
    %280 = arith.subf %253, %279 : vector<8x128xf32>
    %281 = arith.mulf %273, %280 : vector<8x128xf32>
    %282 = arith.addf %279, %281 : vector<8x128xf32>
    %c1_i32_95 = arith.constant 1 : i32
    %c8_i32_96 = arith.constant 8 : i32
    %283 = arith.muli %c1_i32_95, %c8_i32_96 : i32
    %284 = tpu.assume_multiple %283, 8 : i32
    %285 = arith.index_cast %284 : i32 to index
    %c0_97 = arith.constant 0 : index
    %286 = vector.load %arg15[%285, %c0_97] : memref<64x384xf32, #tpu.memory_space<vmem>>, vector<8x384xf32>
    %cst_98 = arith.constant dense<0.000000e+00> : vector<8x384xf32>
    %287 = tpu.matmul %282, %247, %cst_98 {dimension_numbers = #tpu.dot_dimension_numbers<[1], [0], [0], [1], [0, 0, 1, 1], [], []>} : vector<8x128xf32>, vector<128x384xf32>, vector<8x384xf32> -> vector<8x384xf32>
    %288 = vector.extract_strided_slice %286 {offsets = [0, 0], sizes = [8, 256], strides = [1, 1]} : vector<8x384xf32> to vector<8x256xf32>
    %289 = vector.extract_strided_slice %287 {offsets = [0, 0], sizes = [8, 256], strides = [1, 1]} : vector<8x384xf32> to vector<8x256xf32>
    %290 = arith.addf %288, %289 : vector<8x256xf32>
    %291 = arith.negf %290 : vector<8x256xf32>
    %292 = math.exp %291 : vector<8x256xf32>
    %cst_99 = arith.constant 1.000000e+00 : f32
    %293 = vector.broadcast %cst_99 : f32 to vector<8x256xf32>
    %294 = arith.addf %293, %292 : vector<8x256xf32>
    %295 = arith.divf %293, %294 : vector<8x256xf32>
    %296 = vector.extract_strided_slice %295 {offsets = [0, 0], sizes = [8, 128], strides = [1, 1]} : vector<8x256xf32> to vector<8x128xf32>
    %297 = vector.extract_strided_slice %295 {offsets = [0, 128], sizes = [8, 128], strides = [1, 1]} : vector<8x256xf32> to vector<8x128xf32>
    %298 = vector.extract_strided_slice %286 {offsets = [0, 256], sizes = [8, 128], strides = [1, 1]} : vector<8x384xf32> to vector<8x128xf32>
    %299 = vector.extract_strided_slice %287 {offsets = [0, 256], sizes = [8, 128], strides = [1, 1]} : vector<8x384xf32> to vector<8x128xf32>
    %300 = arith.addf %299, %251 : vector<8x128xf32>
    %301 = arith.mulf %296, %300 : vector<8x128xf32>
    %302 = arith.addf %298, %301 : vector<8x128xf32>
    %303 = math.tanh %302 : vector<8x128xf32>
    %304 = arith.subf %282, %303 : vector<8x128xf32>
    %305 = arith.mulf %297, %304 : vector<8x128xf32>
    %306 = arith.addf %303, %305 : vector<8x128xf32>
    %c2_i32_100 = arith.constant 2 : i32
    %c8_i32_101 = arith.constant 8 : i32
    %307 = arith.muli %c2_i32_100, %c8_i32_101 : i32
    %308 = tpu.assume_multiple %307, 8 : i32
    %309 = arith.index_cast %308 : i32 to index
    %c0_102 = arith.constant 0 : index
    %310 = vector.load %arg15[%309, %c0_102] : memref<64x384xf32, #tpu.memory_space<vmem>>, vector<8x384xf32>
    %cst_103 = arith.constant dense<0.000000e+00> : vector<8x384xf32>
    %311 = tpu.matmul %306, %247, %cst_103 {dimension_numbers = #tpu.dot_dimension_numbers<[1], [0], [0], [1], [0, 0, 1, 1], [], []>} : vector<8x128xf32>, vector<128x384xf32>, vector<8x384xf32> -> vector<8x384xf32>
    %312 = vector.extract_strided_slice %310 {offsets = [0, 0], sizes = [8, 256], strides = [1, 1]} : vector<8x384xf32> to vector<8x256xf32>
    %313 = vector.extract_strided_slice %311 {offsets = [0, 0], sizes = [8, 256], strides = [1, 1]} : vector<8x384xf32> to vector<8x256xf32>
    %314 = arith.addf %312, %313 : vector<8x256xf32>
    %315 = arith.negf %314 : vector<8x256xf32>
    %316 = math.exp %315 : vector<8x256xf32>
    %cst_104 = arith.constant 1.000000e+00 : f32
    %317 = vector.broadcast %cst_104 : f32 to vector<8x256xf32>
    %318 = arith.addf %317, %316 : vector<8x256xf32>
    %319 = arith.divf %317, %318 : vector<8x256xf32>
    %320 = vector.extract_strided_slice %319 {offsets = [0, 0], sizes = [8, 128], strides = [1, 1]} : vector<8x256xf32> to vector<8x128xf32>
    %321 = vector.extract_strided_slice %319 {offsets = [0, 128], sizes = [8, 128], strides = [1, 1]} : vector<8x256xf32> to vector<8x128xf32>
    %322 = vector.extract_strided_slice %310 {offsets = [0, 256], sizes = [8, 128], strides = [1, 1]} : vector<8x384xf32> to vector<8x128xf32>
    %323 = vector.extract_strided_slice %311 {offsets = [0, 256], sizes = [8, 128], strides = [1, 1]} : vector<8x384xf32> to vector<8x128xf32>
    %324 = arith.addf %323, %251 : vector<8x128xf32>
    %325 = arith.mulf %320, %324 : vector<8x128xf32>
    %326 = arith.addf %322, %325 : vector<8x128xf32>
    %327 = math.tanh %326 : vector<8x128xf32>
    %328 = arith.subf %306, %327 : vector<8x128xf32>
    %329 = arith.mulf %321, %328 : vector<8x128xf32>
    %330 = arith.addf %327, %329 : vector<8x128xf32>
    %c3_i32_105 = arith.constant 3 : i32
    %c8_i32_106 = arith.constant 8 : i32
    %331 = arith.muli %c3_i32_105, %c8_i32_106 : i32
    %332 = tpu.assume_multiple %331, 8 : i32
    %333 = arith.index_cast %332 : i32 to index
    %c0_107 = arith.constant 0 : index
    %334 = vector.load %arg15[%333, %c0_107] : memref<64x384xf32, #tpu.memory_space<vmem>>, vector<8x384xf32>
    %cst_108 = arith.constant dense<0.000000e+00> : vector<8x384xf32>
    %335 = tpu.matmul %330, %247, %cst_108 {dimension_numbers = #tpu.dot_dimension_numbers<[1], [0], [0], [1], [0, 0, 1, 1], [], []>} : vector<8x128xf32>, vector<128x384xf32>, vector<8x384xf32> -> vector<8x384xf32>
    %336 = vector.extract_strided_slice %334 {offsets = [0, 0], sizes = [8, 256], strides = [1, 1]} : vector<8x384xf32> to vector<8x256xf32>
    %337 = vector.extract_strided_slice %335 {offsets = [0, 0], sizes = [8, 256], strides = [1, 1]} : vector<8x384xf32> to vector<8x256xf32>
    %338 = arith.addf %336, %337 : vector<8x256xf32>
    %339 = arith.negf %338 : vector<8x256xf32>
    %340 = math.exp %339 : vector<8x256xf32>
    %cst_109 = arith.constant 1.000000e+00 : f32
    %341 = vector.broadcast %cst_109 : f32 to vector<8x256xf32>
    %342 = arith.addf %341, %340 : vector<8x256xf32>
    %343 = arith.divf %341, %342 : vector<8x256xf32>
    %344 = vector.extract_strided_slice %343 {offsets = [0, 0], sizes = [8, 128], strides = [1, 1]} : vector<8x256xf32> to vector<8x128xf32>
    %345 = vector.extract_strided_slice %343 {offsets = [0, 128], sizes = [8, 128], strides = [1, 1]} : vector<8x256xf32> to vector<8x128xf32>
    %346 = vector.extract_strided_slice %334 {offsets = [0, 256], sizes = [8, 128], strides = [1, 1]} : vector<8x384xf32> to vector<8x128xf32>
    %347 = vector.extract_strided_slice %335 {offsets = [0, 256], sizes = [8, 128], strides = [1, 1]} : vector<8x384xf32> to vector<8x128xf32>
    %348 = arith.addf %347, %251 : vector<8x128xf32>
    %349 = arith.mulf %344, %348 : vector<8x128xf32>
    %350 = arith.addf %346, %349 : vector<8x128xf32>
    %351 = math.tanh %350 : vector<8x128xf32>
    %352 = arith.subf %330, %351 : vector<8x128xf32>
    %353 = arith.mulf %345, %352 : vector<8x128xf32>
    %354 = arith.addf %351, %353 : vector<8x128xf32>
    %c4_i32_110 = arith.constant 4 : i32
    %c8_i32_111 = arith.constant 8 : i32
    %355 = arith.muli %c4_i32_110, %c8_i32_111 : i32
    %356 = tpu.assume_multiple %355, 8 : i32
    %357 = arith.index_cast %356 : i32 to index
    %c0_112 = arith.constant 0 : index
    %358 = vector.load %arg15[%357, %c0_112] : memref<64x384xf32, #tpu.memory_space<vmem>>, vector<8x384xf32>
    %cst_113 = arith.constant dense<0.000000e+00> : vector<8x384xf32>
    %359 = tpu.matmul %354, %247, %cst_113 {dimension_numbers = #tpu.dot_dimension_numbers<[1], [0], [0], [1], [0, 0, 1, 1], [], []>} : vector<8x128xf32>, vector<128x384xf32>, vector<8x384xf32> -> vector<8x384xf32>
    %360 = vector.extract_strided_slice %358 {offsets = [0, 0], sizes = [8, 256], strides = [1, 1]} : vector<8x384xf32> to vector<8x256xf32>
    %361 = vector.extract_strided_slice %359 {offsets = [0, 0], sizes = [8, 256], strides = [1, 1]} : vector<8x384xf32> to vector<8x256xf32>
    %362 = arith.addf %360, %361 : vector<8x256xf32>
    %363 = arith.negf %362 : vector<8x256xf32>
    %364 = math.exp %363 : vector<8x256xf32>
    %cst_114 = arith.constant 1.000000e+00 : f32
    %365 = vector.broadcast %cst_114 : f32 to vector<8x256xf32>
    %366 = arith.addf %365, %364 : vector<8x256xf32>
    %367 = arith.divf %365, %366 : vector<8x256xf32>
    %368 = vector.extract_strided_slice %367 {offsets = [0, 0], sizes = [8, 128], strides = [1, 1]} : vector<8x256xf32> to vector<8x128xf32>
    %369 = vector.extract_strided_slice %367 {offsets = [0, 128], sizes = [8, 128], strides = [1, 1]} : vector<8x256xf32> to vector<8x128xf32>
    %370 = vector.extract_strided_slice %358 {offsets = [0, 256], sizes = [8, 128], strides = [1, 1]} : vector<8x384xf32> to vector<8x128xf32>
    %371 = vector.extract_strided_slice %359 {offsets = [0, 256], sizes = [8, 128], strides = [1, 1]} : vector<8x384xf32> to vector<8x128xf32>
    %372 = arith.addf %371, %251 : vector<8x128xf32>
    %373 = arith.mulf %368, %372 : vector<8x128xf32>
    %374 = arith.addf %370, %373 : vector<8x128xf32>
    %375 = math.tanh %374 : vector<8x128xf32>
    %376 = arith.subf %354, %375 : vector<8x128xf32>
    %377 = arith.mulf %369, %376 : vector<8x128xf32>
    %378 = arith.addf %375, %377 : vector<8x128xf32>
    %c5_i32_115 = arith.constant 5 : i32
    %c8_i32_116 = arith.constant 8 : i32
    %379 = arith.muli %c5_i32_115, %c8_i32_116 : i32
    %380 = tpu.assume_multiple %379, 8 : i32
    %381 = arith.index_cast %380 : i32 to index
    %c0_117 = arith.constant 0 : index
    %382 = vector.load %arg15[%381, %c0_117] : memref<64x384xf32, #tpu.memory_space<vmem>>, vector<8x384xf32>
    %cst_118 = arith.constant dense<0.000000e+00> : vector<8x384xf32>
    %383 = tpu.matmul %378, %247, %cst_118 {dimension_numbers = #tpu.dot_dimension_numbers<[1], [0], [0], [1], [0, 0, 1, 1], [], []>} : vector<8x128xf32>, vector<128x384xf32>, vector<8x384xf32> -> vector<8x384xf32>
    %384 = vector.extract_strided_slice %382 {offsets = [0, 0], sizes = [8, 256], strides = [1, 1]} : vector<8x384xf32> to vector<8x256xf32>
    %385 = vector.extract_strided_slice %383 {offsets = [0, 0], sizes = [8, 256], strides = [1, 1]} : vector<8x384xf32> to vector<8x256xf32>
    %386 = arith.addf %384, %385 : vector<8x256xf32>
    %387 = arith.negf %386 : vector<8x256xf32>
    %388 = math.exp %387 : vector<8x256xf32>
    %cst_119 = arith.constant 1.000000e+00 : f32
    %389 = vector.broadcast %cst_119 : f32 to vector<8x256xf32>
    %390 = arith.addf %389, %388 : vector<8x256xf32>
    %391 = arith.divf %389, %390 : vector<8x256xf32>
    %392 = vector.extract_strided_slice %391 {offsets = [0, 0], sizes = [8, 128], strides = [1, 1]} : vector<8x256xf32> to vector<8x128xf32>
    %393 = vector.extract_strided_slice %391 {offsets = [0, 128], sizes = [8, 128], strides = [1, 1]} : vector<8x256xf32> to vector<8x128xf32>
    %394 = vector.extract_strided_slice %382 {offsets = [0, 256], sizes = [8, 128], strides = [1, 1]} : vector<8x384xf32> to vector<8x128xf32>
    %395 = vector.extract_strided_slice %383 {offsets = [0, 256], sizes = [8, 128], strides = [1, 1]} : vector<8x384xf32> to vector<8x128xf32>
    %396 = arith.addf %395, %251 : vector<8x128xf32>
    %397 = arith.mulf %392, %396 : vector<8x128xf32>
    %398 = arith.addf %394, %397 : vector<8x128xf32>
    %399 = math.tanh %398 : vector<8x128xf32>
    %400 = arith.subf %378, %399 : vector<8x128xf32>
    %401 = arith.mulf %393, %400 : vector<8x128xf32>
    %402 = arith.addf %399, %401 : vector<8x128xf32>
    %c6_i32_120 = arith.constant 6 : i32
    %c8_i32_121 = arith.constant 8 : i32
    %403 = arith.muli %c6_i32_120, %c8_i32_121 : i32
    %404 = tpu.assume_multiple %403, 8 : i32
    %405 = arith.index_cast %404 : i32 to index
    %c0_122 = arith.constant 0 : index
    %406 = vector.load %arg15[%405, %c0_122] : memref<64x384xf32, #tpu.memory_space<vmem>>, vector<8x384xf32>
    %cst_123 = arith.constant dense<0.000000e+00> : vector<8x384xf32>
    %407 = tpu.matmul %402, %247, %cst_123 {dimension_numbers = #tpu.dot_dimension_numbers<[1], [0], [0], [1], [0, 0, 1, 1], [], []>} : vector<8x128xf32>, vector<128x384xf32>, vector<8x384xf32> -> vector<8x384xf32>
    %408 = vector.extract_strided_slice %406 {offsets = [0, 0], sizes = [8, 256], strides = [1, 1]} : vector<8x384xf32> to vector<8x256xf32>
    %409 = vector.extract_strided_slice %407 {offsets = [0, 0], sizes = [8, 256], strides = [1, 1]} : vector<8x384xf32> to vector<8x256xf32>
    %410 = arith.addf %408, %409 : vector<8x256xf32>
    %411 = arith.negf %410 : vector<8x256xf32>
    %412 = math.exp %411 : vector<8x256xf32>
    %cst_124 = arith.constant 1.000000e+00 : f32
    %413 = vector.broadcast %cst_124 : f32 to vector<8x256xf32>
    %414 = arith.addf %413, %412 : vector<8x256xf32>
    %415 = arith.divf %413, %414 : vector<8x256xf32>
    %416 = vector.extract_strided_slice %415 {offsets = [0, 0], sizes = [8, 128], strides = [1, 1]} : vector<8x256xf32> to vector<8x128xf32>
    %417 = vector.extract_strided_slice %415 {offsets = [0, 128], sizes = [8, 128], strides = [1, 1]} : vector<8x256xf32> to vector<8x128xf32>
    %418 = vector.extract_strided_slice %406 {offsets = [0, 256], sizes = [8, 128], strides = [1, 1]} : vector<8x384xf32> to vector<8x128xf32>
    %419 = vector.extract_strided_slice %407 {offsets = [0, 256], sizes = [8, 128], strides = [1, 1]} : vector<8x384xf32> to vector<8x128xf32>
    %420 = arith.addf %419, %251 : vector<8x128xf32>
    %421 = arith.mulf %416, %420 : vector<8x128xf32>
    %422 = arith.addf %418, %421 : vector<8x128xf32>
    %423 = math.tanh %422 : vector<8x128xf32>
    %424 = arith.subf %402, %423 : vector<8x128xf32>
    %425 = arith.mulf %417, %424 : vector<8x128xf32>
    %426 = arith.addf %423, %425 : vector<8x128xf32>
    %c7_i32_125 = arith.constant 7 : i32
    %c8_i32_126 = arith.constant 8 : i32
    %427 = arith.muli %c7_i32_125, %c8_i32_126 : i32
    %428 = tpu.assume_multiple %427, 8 : i32
    %429 = arith.index_cast %428 : i32 to index
    %c0_127 = arith.constant 0 : index
    %430 = vector.load %arg15[%429, %c0_127] : memref<64x384xf32, #tpu.memory_space<vmem>>, vector<8x384xf32>
    %cst_128 = arith.constant dense<0.000000e+00> : vector<8x384xf32>
    %431 = tpu.matmul %426, %247, %cst_128 {dimension_numbers = #tpu.dot_dimension_numbers<[1], [0], [0], [1], [0, 0, 1, 1], [], []>} : vector<8x128xf32>, vector<128x384xf32>, vector<8x384xf32> -> vector<8x384xf32>
    %432 = vector.extract_strided_slice %430 {offsets = [0, 0], sizes = [8, 256], strides = [1, 1]} : vector<8x384xf32> to vector<8x256xf32>
    %433 = vector.extract_strided_slice %431 {offsets = [0, 0], sizes = [8, 256], strides = [1, 1]} : vector<8x384xf32> to vector<8x256xf32>
    %434 = arith.addf %432, %433 : vector<8x256xf32>
    %435 = arith.negf %434 : vector<8x256xf32>
    %436 = math.exp %435 : vector<8x256xf32>
    %cst_129 = arith.constant 1.000000e+00 : f32
    %437 = vector.broadcast %cst_129 : f32 to vector<8x256xf32>
    %438 = arith.addf %437, %436 : vector<8x256xf32>
    %439 = arith.divf %437, %438 : vector<8x256xf32>
    %440 = vector.extract_strided_slice %439 {offsets = [0, 0], sizes = [8, 128], strides = [1, 1]} : vector<8x256xf32> to vector<8x128xf32>
    %441 = vector.extract_strided_slice %439 {offsets = [0, 128], sizes = [8, 128], strides = [1, 1]} : vector<8x256xf32> to vector<8x128xf32>
    %442 = vector.extract_strided_slice %430 {offsets = [0, 256], sizes = [8, 128], strides = [1, 1]} : vector<8x384xf32> to vector<8x128xf32>
    %443 = vector.extract_strided_slice %431 {offsets = [0, 256], sizes = [8, 128], strides = [1, 1]} : vector<8x384xf32> to vector<8x128xf32>
    %444 = arith.addf %443, %251 : vector<8x128xf32>
    %445 = arith.mulf %440, %444 : vector<8x128xf32>
    %446 = arith.addf %442, %445 : vector<8x128xf32>
    %447 = math.tanh %446 : vector<8x128xf32>
    %448 = arith.subf %426, %447 : vector<8x128xf32>
    %449 = arith.mulf %441, %448 : vector<8x128xf32>
    %450 = arith.addf %447, %449 : vector<8x128xf32>
    %c8_i32_130 = arith.constant 8 : i32
    %c0_131 = arith.constant 0 : index
    %c1_132 = arith.constant 1 : index
    %c0_133 = arith.constant 0 : index
    %c0_134 = arith.constant 0 : index
    %451 = vector.load %arg14[%c0_131, %c1_132, %c0_133, %c0_134] : memref<1x2x8x128xf32, #tpu.memory_space<vmem>>, vector<1x1x8x128xf32>
    %452 = vector.shape_cast %451 : vector<1x1x8x128xf32> to vector<8x128xf32>
    %453 = vector.shape_cast %450 : vector<8x128xf32> to vector<1x1x8x128xf32>
    tpu.vector_store %arg14[%c0_131, %c1_132, %c0_133, %c0_134], %453 {strides = array<i32>} : memref<1x2x8x128xf32, #tpu.memory_space<vmem>>, vector<1x1x8x128xf32>,
    %cst_135 = arith.constant 0.000000e+00 : f32
    %454 = vector.broadcast %cst_135 : f32 to vector<8x128xf32>
    %455 = arith.maximumf %450, %454 : vector<8x128xf32>
    %c0_136 = arith.constant 0 : index
    %c0_137 = arith.constant 0 : index
    %456 = vector.load %arg11[%c0_136, %c0_137] : memref<128x128xf32, #tpu.memory_space<vmem>>, vector<128x128xf32>
    %cst_138 = arith.constant dense<0.000000e+00> : vector<8x128xf32>
    %457 = tpu.matmul %455, %456, %cst_138 {dimension_numbers = #tpu.dot_dimension_numbers<[1], [0], [0], [1], [0, 0, 1, 1], [], []>} : vector<8x128xf32>, vector<128x128xf32>, vector<8x128xf32> -> vector<8x128xf32>
    %c0_139 = arith.constant 0 : index
    %c0_140 = arith.constant 0 : index
    %458 = vector.load %arg12[%c0_139, %c0_140] : memref<1x128xf32, #tpu.memory_space<vmem>>, vector<1x128xf32>
    %459 = vector.broadcast %458 : vector<1x128xf32> to vector<8x128xf32>
    %460 = arith.addf %457, %459 : vector<8x128xf32>
    %c0_141 = arith.constant 0 : index
    %c0_142 = arith.constant 0 : index
    %c0_143 = arith.constant 0 : index
    %461 = vector.load %arg13[%c0_141, %c0_142, %c0_143] : memref<1x8x128xf32, #tpu.memory_space<vmem>>, vector<1x8x128xf32>
    %462 = vector.shape_cast %461 : vector<1x8x128xf32> to vector<8x128xf32>
    %463 = vector.shape_cast %460 : vector<8x128xf32> to vector<1x8x128xf32>
    tpu.vector_store %arg13[%c0_141, %c0_142, %c0_143], %463 {strides = array<i32>} : memref<1x8x128xf32, #tpu.memory_space<vmem>>, vector<1x8x128xf32>,
    return
  }
  func.func @transform_0(%arg0: i32) -> (i32, i32, i32) {
    %c0_i32 = arith.constant 0 : i32
    %c0_i32_0 = arith.constant 0 : i32
    %c0_i32_1 = arith.constant 0 : i32
    return %arg0, %c0_i32, %c0_i32_0 : i32, i32, i32
  }
  func.func @transform_1(%arg0: i32) -> (i32, i32, i32, i32) {
    %c0_i32 = arith.constant 0 : i32
    %c0_i32_0 = arith.constant 0 : i32
    %c0_i32_1 = arith.constant 0 : i32
    %c0_i32_2 = arith.constant 0 : i32
    return %arg0, %c0_i32, %c0_i32_0, %c0_i32_1 : i32, i32, i32, i32
  }
  func.func @transform_2(%arg0: i32) -> (i32, i32) {
    %c0_i32 = arith.constant 0 : i32
    %c0_i32_0 = arith.constant 0 : i32
    %c0_i32_1 = arith.constant 0 : i32
    return %c0_i32, %c0_i32_0 : i32, i32
  }
  func.func @transform_3(%arg0: i32) -> (i32, i32) {
    %c0_i32 = arith.constant 0 : i32
    %c0_i32_0 = arith.constant 0 : i32
    %c0_i32_1 = arith.constant 0 : i32
    return %c0_i32, %c0_i32_0 : i32, i32
  }
  func.func @transform_4(%arg0: i32) -> (i32, i32) {
    %c0_i32 = arith.constant 0 : i32
    %c0_i32_0 = arith.constant 0 : i32
    %c0_i32_1 = arith.constant 0 : i32
    return %c0_i32, %c0_i32_0 : i32, i32
  }
  func.func @transform_5(%arg0: i32) -> (i32, i32) {
    %c0_i32 = arith.constant 0 : i32
    %c0_i32_0 = arith.constant 0 : i32
    %c0_i32_1 = arith.constant 0 : i32
    return %c0_i32, %c0_i32_0 : i32, i32
  }
  func.func @transform_6(%arg0: i32) -> (i32, i32) {
    %c0_i32 = arith.constant 0 : i32
    %c0_i32_0 = arith.constant 0 : i32
    %c0_i32_1 = arith.constant 0 : i32
    return %c0_i32, %c0_i32_0 : i32, i32
  }
  func.func @transform_7(%arg0: i32) -> (i32, i32) {
    %c0_i32 = arith.constant 0 : i32
    %c0_i32_0 = arith.constant 0 : i32
    %c0_i32_1 = arith.constant 0 : i32
    return %c0_i32, %c0_i32_0 : i32, i32
  }
  func.func @transform_8(%arg0: i32) -> (i32, i32) {
    %c0_i32 = arith.constant 0 : i32
    %c0_i32_0 = arith.constant 0 : i32
    %c0_i32_1 = arith.constant 0 : i32
    return %c0_i32, %c0_i32_0 : i32, i32
  }
  func.func @transform_9(%arg0: i32) -> (i32, i32) {
    %c0_i32 = arith.constant 0 : i32
    %c0_i32_0 = arith.constant 0 : i32
    %c0_i32_1 = arith.constant 0 : i32
    return %c0_i32, %c0_i32_0 : i32, i32
  }
  func.func @transform_10(%arg0: i32) -> (i32, i32) {
    %c0_i32 = arith.constant 0 : i32
    %c0_i32_0 = arith.constant 0 : i32
    %c0_i32_1 = arith.constant 0 : i32
    return %c0_i32, %c0_i32_0 : i32, i32
  }
  func.func @transform_11(%arg0: i32) -> (i32, i32) {
    %c0_i32 = arith.constant 0 : i32
    %c0_i32_0 = arith.constant 0 : i32
    %c0_i32_1 = arith.constant 0 : i32
    return %c0_i32, %c0_i32_0 : i32, i32
  }
  func.func @transform_12(%arg0: i32) -> (i32, i32, i32) {
    %c0_i32 = arith.constant 0 : i32
    %c0_i32_0 = arith.constant 0 : i32
    %c0_i32_1 = arith.constant 0 : i32
    return %arg0, %c0_i32, %c0_i32_0 : i32, i32, i32
  }
  func.func @transform_13(%arg0: i32) -> (i32, i32, i32, i32) {
    %c0_i32 = arith.constant 0 : i32
    %c0_i32_0 = arith.constant 0 : i32
    %c0_i32_1 = arith.constant 0 : i32
    %c0_i32_2 = arith.constant 0 : i32
    return %arg0, %c0_i32, %c0_i32_0, %c0_i32_1 : i32, i32, i32, i32
  }
}

</mosaic_0001>

<llo_original>
// kernel: _gru_forward_impl.1
$region0: #{_gru_forward_impl.1}
  #allocation0 [shape = 'u32[]', space=smem, size = 0x4, offset = 0x4, fixed_abs, tag = 'smem constant byte address 0x4 - core index']
  #allocation1 [shape = 'u32[72,128]{1,0:T(1,128)}', space=vmem, size = 0x9000, scoped, tag = 'internal scratch']
  #allocation2 [shape = 'f32[64,384]{1,0:T(8,128)}', space=vmem, size = 0x18000, scoped, tag = 'scratch operand']
  #allocation3 [shape = 'f32[64,128]{1,0:T(8,128)}', space=vmem, size = 0x8000, scoped, tag = 'scratch operand']
  %s0 = inlined_call_operand.vmem [shape: f32[1,64,128], index: 0, kind: input, shape index: {}]
  %s1 = inlined_call_operand.vmem [shape: f32[1,2,8,128], index: 1, kind: input, shape index: {}, may-alias: {1,13}]
  %s2 = inlined_call_operand.vmem [shape: f32[128,384], index: 2, kind: input, shape index: {}]
  %s3 = inlined_call_operand.vmem [shape: f32[128,384], index: 3, kind: input, shape index: {}]
  %s4 = inlined_call_operand.vmem [shape: f32[1,384], index: 4, kind: input, shape index: {}]
  %s5 = inlined_call_operand.vmem [shape: f32[1,128], index: 5, kind: input, shape index: {}]
  %s6 = inlined_call_operand.vmem [shape: f32[128,384], index: 6, kind: input, shape index: {}]
  %s7 = inlined_call_operand.vmem [shape: f32[128,384], index: 7, kind: input, shape index: {}]
  %s8 = inlined_call_operand.vmem [shape: f32[1,384], index: 8, kind: input, shape index: {}]
  %s9 = inlined_call_operand.vmem [shape: f32[1,128], index: 9, kind: input, shape index: {}]
  %s10 = inlined_call_operand.vmem [shape: f32[128,128], index: 10, kind: input, shape index: {}]
  %s11 = inlined_call_operand.vmem [shape: f32[1,128], index: 11, kind: input, shape index: {}]
  %s12 = inlined_call_operand.vmem [shape: f32[1,8,128], index: 12, kind: output, shape index: {0}]
  %s13 = inlined_call_operand.vmem [shape: f32[1,2,8,128], index: 13, kind: output, shape index: {1}, may-alias: {1,13}]
  %14 = xla_tuple %s12, %s13
  %s15 = sld [smem:[#allocation0]]
  $region66: #{_gru_forward_impl.1} parent=0
    _
  %s17 = ssub.s32 1, %s15
  %s18 = scalar_select 0, %s17, %s15
  // Predicated region
  $region2: #{_gru_forward_impl.1} parent=0 // pred_check
    _
  $region3: #{_gru_forward_impl.1} parent=0 // pred_check_branch
    %20 = sbr.rel (0) target = $region5
  $region4: #{_gru_forward_impl.1} parent=0 // pred_region
    _
  $region5: #{_gru_forward_impl.1} parent=0 // pred_fallthru
    _
  // Predicated region
  $region6: #{_gru_forward_impl.1} parent=0 // pred_check
    _
  $region7: #{_gru_forward_impl.1} parent=0 // pred_check_branch
    %22 = sbr.rel (0) target = $region9
  $region8: #{_gru_forward_impl.1} parent=0 // pred_region
    _
  $region9: #{_gru_forward_impl.1} parent=0 // pred_fallthru
    _
  // Predicated region
  $region10: #{_gru_forward_impl.1} parent=0 // pred_check
    _
  $region11: #{_gru_forward_impl.1} parent=0 // pred_check_branch
    %24 = sbr.rel (0) target = $region13
  $region12: #{_gru_forward_impl.1} parent=0 // pred_region
    _
  $region13: #{_gru_forward_impl.1} parent=0 // pred_fallthru
    _
  // Predicated region
  $region14: #{_gru_forward_impl.1} parent=0 // pred_check
    _
  $region15: #{_gru_forward_impl.1} parent=0 // pred_check_branch
    %26 = sbr.rel (0) target = $region17
  $region16: #{_gru_forward_impl.1} parent=0 // pred_region
    _
  $region17: #{_gru_forward_impl.1} parent=0 // pred_fallthru
    _
  // Predicated region
  $region18: #{_gru_forward_impl.1} parent=0 // pred_check
    _
  $region19: #{_gru_forward_impl.1} parent=0 // pred_check_branch
    %28 = sbr.rel (0) target = $region21
  $region20: #{_gru_forward_impl.1} parent=0 // pred_region
    _
  $region21: #{_gru_forward_impl.1} parent=0 // pred_fallthru
    _
  // Predicated region
  $region22: #{_gru_forward_impl.1} parent=0 // pred_check
    _
  $region23: #{_gru_forward_impl.1} parent=0 // pred_check_branch
    %30 = sbr.rel (0) target = $region25
  $region24: #{_gru_forward_impl.1} parent=0 // pred_region
    _
  $region25: #{_gru_forward_impl.1} parent=0 // pred_fallthru
    _
  // Predicated region
  $region26: #{_gru_forward_impl.1} parent=0 // pred_check
    _
  $region27: #{_gru_forward_impl.1} parent=0 // pred_check_branch
    %32 = sbr.rel (0) target = $region29
  $region28: #{_gru_forward_impl.1} parent=0 // pred_region
    _
  $region29: #{_gru_forward_impl.1} parent=0 // pred_fallthru
    _
  // Predicated region
  $region30: #{_gru_forward_impl.1} parent=0 // pred_check
    _
  $region31: #{_gru_forward_impl.1} parent=0 // pred_check_branch
    %34 = sbr.rel (0) target = $region33
  $region32: #{_gru_forward_impl.1} parent=0 // pred_region
    _
  $region33: #{_gru_forward_impl.1} parent=0 // pred_fallthru
    _
  // Predicated region
  $region34: #{_gru_forward_impl.1} parent=0 // pred_check
    _
  $region35: #{_gru_forward_impl.1} parent=0 // pred_check_branch
    %36 = sbr.rel (0) target = $region37
  $region36: #{_gru_forward_impl.1} parent=0 // pred_region
    _
  $region37: #{_gru_forward_impl.1} parent=0 // pred_fallthru
    _
  // Predicated region
  $region38: #{_gru_forward_impl.1} parent=0 // pred_check
    _
  $region39: #{_gru_forward_impl.1} parent=0 // pred_check_branch
    %38 = sbr.rel (0) target = $region41
  $region40: #{_gru_forward_impl.1} parent=0 // pred_region
    _
  $region41: #{_gru_forward_impl.1} parent=0 // pred_fallthru
    _
  // Predicated region
  $region42: #{_gru_forward_impl.1} parent=0 // pred_check
    _
  $region43: #{_gru_forward_impl.1} parent=0 // pred_check_branch
    %40 = sbr.rel (0) target = $region45
  $region44: #{_gru_forward_impl.1} parent=0 // pred_region
    _
  $region45: #{_gru_forward_impl.1} parent=0 // pred_fallthru
    _
  // Predicated region
  $region46: #{_gru_forward_impl.1} parent=0 // pred_check
    _
  $region47: #{_gru_forward_impl.1} parent=0 // pred_check_branch
    %42 = sbr.rel (0) target = $region49
  $region48: #{_gru_forward_impl.1} parent=0 // pred_region
    _
  $region49: #{_gru_forward_impl.1} parent=0 // pred_fallthru
    _
  %v43 = vld [vmem:[%s2] sm:$0xff]
  %v44 = vld [vmem:[%s2 + $0x8] sm:$0xff]
  %v45 = vld [vmem:[%s2 + $0x10] sm:$0xff]
  %v46 = vld [vmem:[%s2 + $0x18] sm:$0xff]
  %v47 = vld [vmem:[%s2 + $0x20] sm:$0xff]
  %v48 = vld [vmem:[%s2 + $0x28] sm:$0xff]
  %v49 = vld [vmem:[%s2 + $0x30] sm:$0xff]
  %v50 = vld [vmem:[%s2 + $0x38] sm:$0xff]
  %v51 = vld [vmem:[%s2 + $0x40] sm:$0xff]
  %v52 = vld [vmem:[%s2 + $0x48] sm:$0xff]
  %v53 = vld [vmem:[%s2 + $0x50] sm:$0xff]
  %v54 = vld [vmem:[%s2 + $0x58] sm:$0xff]
  %v55 = vld [vmem:[%s2 + $0x60] sm:$0xff]
  %v56 = vld [vmem:[%s2 + $0x68] sm:$0xff]
  %v57 = vld [vmem:[%s2 + $0x70] sm:$0xff]
  %v58 = vld [vmem:[%s2 + $0x78] sm:$0xff]
  %v59 = vld [vmem:[%s2 + $0x80] sm:$0xff]
  %v60 = vld [vmem:[%s2 + $0x88] sm:$0xff]
  %v61 = vld [vmem:[%s2 + $0x90] sm:$0xff]
  %v62 = vld [vmem:[%s2 + $0x98] sm:$0xff]
  %v63 = vld [vmem:[%s2 + $0xa0] sm:$0xff]
  %v64 = vld [vmem:[%s2 + $0xa8] sm:$0xff]
  %v65 = vld [vmem:[%s2 + $0xb0] sm:$0xff]
  %v66 = vld [vmem:[%s2 + $0xb8] sm:$0xff]
  %v67 = vld [vmem:[%s2 + $0xc0] sm:$0xff]
  %v68 = vld [vmem:[%s2 + $0xc8] sm:$0xff]
  %v69 = vld [vmem:[%s2 + $0xd0] sm:$0xff]
  %v70 = vld [vmem:[%s2 + $0xd8] sm:$0xff]
  %v71 = vld [vmem:[%s2 + $0xe0] sm:$0xff]
  %v72 = vld [vmem:[%s2 + $0xe8] sm:$0xff]
  %v73 = vld [vmem:[%s2 + $0xf0] sm:$0xff]
  %v74 = vld [vmem:[%s2 + $0xf8] sm:$0xff]
  %v75 = vld [vmem:[%s2 + $0x100] sm:$0xff]
  %v76 = vld [vmem:[%s2 + $0x108] sm:$0xff]
  %v77 = vld [vmem:[%s2 + $0x110] sm:$0xff]
  %v78 = vld [vmem:[%s2 + $0x118] sm:$0xff]
  %v79 = vld [vmem:[%s2 + $0x120] sm:$0xff]
  %v80 = vld [vmem:[%s2 + $0x128] sm:$0xff]
  %v81 = vld [vmem:[%s2 + $0x130] sm:$0xff]
  %v82 = vld [vmem:[%s2 + $0x138] sm:$0xff]
  %v83 = vld [vmem:[%s2 + $0x140] sm:$0xff]
  %v84 = vld [vmem:[%s2 + $0x148] sm:$0xff]
  %v85 = vld [vmem:[%s2 + $0x150] sm:$0xff]
  %v86 = vld [vmem:[%s2 + $0x158] sm:$0xff]
  %v87 = vld [vmem:[%s2 + $0x160] sm:$0xff]
  %v88 = vld [vmem:[%s2 + $0x168] sm:$0xff]
  %v89 = vld [vmem:[%s2 + $0x170] sm:$0xff]
  %v90 = vld [vmem:[%s2 + $0x178] sm:$0xff]
  %v91 = vld [vmem:[%s3] sm:$0xff]
  %v92 = vld [vmem:[%s3 + $0x8] sm:$0xff]
  %v93 = vld [vmem:[%s3 + $0x10] sm:$0xff]
  %v94 = vld [vmem:[%s3 + $0x18] sm:$0xff]
  %v95 = vld [vmem:[%s3 + $0x20] sm:$0xff]
  %v96 = vld [vmem:[%s3 + $0x28] sm:$0xff]
  %v97 = vld [vmem:[%s3 + $0x30] sm:$0xff]
  %v98 = vld [vmem:[%s3 + $0x38] sm:$0xff]
  %v99 = vld [vmem:[%s3 + $0x40] sm:$0xff]
  %v100 = vld [vmem:[%s3 + $0x48] sm:$0xff]
  %v101 = vld [vmem:[%s3 + $0x50] sm:$0xff]
  %v102 = vld [vmem:[%s3 + $0x58] sm:$0xff]
  %v103 = vld [vmem:[%s3 + $0x60] sm:$0xff]
  %v104 = vld [vmem:[%s3 + $0x68] sm:$0xff]
  %v105 = vld [vmem:[%s3 + $0x70] sm:$0xff]
  %v106 = vld [vmem:[%s3 + $0x78] sm:$0xff]
  %v107 = vld [vmem:[%s3 + $0x80] sm:$0xff]
  %v108 = vld [vmem:[%s3 + $0x88] sm:$0xff]
  %v109 = vld [vmem:[%s3 + $0x90] sm:$0xff]
  %v110 = vld [vmem:[%s3 + $0x98] sm:$0xff]
  %v111 = vld [vmem:[%s3 + $0xa0] sm:$0xff]
  %v112 = vld [vmem:[%s3 + $0xa8] sm:$0xff]
  %v113 = vld [vmem:[%s3 + $0xb0] sm:$0xff]
  %v114 = vld [vmem:[%s3 + $0xb8] sm:$0xff]
  %v115 = vld [vmem:[%s3 + $0xc0] sm:$0xff]
  %v116 = vld [vmem:[%s3 + $0xc8] sm:$0xff]
  %v117 = vld [vmem:[%s3 + $0xd0] sm:$0xff]
  %v118 = vld [vmem:[%s3 + $0xd8] sm:$0xff]
  %v119 = vld [vmem:[%s3 + $0xe0] sm:$0xff]
  %v120 = vld [vmem:[%s3 + $0xe8] sm:$0xff]
  %v121 = vld [vmem:[%s3 + $0xf0] sm:$0xff]
  %v122 = vld [vmem:[%s3 + $0xf8] sm:$0xff]
  %v123 = vld [vmem:[%s3 + $0x100] sm:$0xff]
  %v124 = vld [vmem:[%s3 + $0x108] sm:$0xff]
  %v125 = vld [vmem:[%s3 + $0x110] sm:$0xff]
  %v126 = vld [vmem:[%s3 + $0x118] sm:$0xff]
  %v127 = vld [vmem:[%s3 + $0x120] sm:$0xff]
  %v128 = vld [vmem:[%s3 + $0x128] sm:$0xff]
  %v129 = vld [vmem:[%s3 + $0x130] sm:$0xff]
  %v130 = vld [vmem:[%s3 + $0x138] sm:$0xff]
  %v131 = vld [vmem:[%s3 + $0x140] sm:$0xff]
  %v132 = vld [vmem:[%s3 + $0x148] sm:$0xff]
  %v133 = vld [vmem:[%s3 + $0x150] sm:$0xff]
  %v134 = vld [vmem:[%s3 + $0x158] sm:$0xff]
  %v135 = vld [vmem:[%s3 + $0x160] sm:$0xff]
  %v136 = vld [vmem:[%s3 + $0x168] sm:$0xff]
  %v137 = vld [vmem:[%s3 + $0x170] sm:$0xff]
  %v138 = vld [vmem:[%s3 + $0x178] sm:$0xff]
  %v139 = vld [vmem:[%s5] sm:$0x1]
  %v141 = vperm.slane %v139, 0
  %v143 = vld [vmem:[%s1] sm:$0xff]
  %v144 = vld [vmem:[%s0] sm:$0xff]
  %v145 = vld [vmem:[%s0 + $0x8] sm:$0xff]
  %v146 = vld [vmem:[%s0 + $0x10] sm:$0xff]
  %v147 = vld [vmem:[%s0 + $0x18] sm:$0xff]
  %v148 = vld [vmem:[%s0 + $0x20] sm:$0xff]
  %v149 = vld [vmem:[%s0 + $0x28] sm:$0xff]
  %v150 = vld [vmem:[%s0 + $0x30] sm:$0xff]
  %v151 = vld [vmem:[%s0 + $0x38] sm:$0xff]
  %152 = vmatpush.msra.mxu0 %v88
  %153 = vmatpush.msra.mxu0 %v85
  %154 = vmatpush.msra.mxu0 %v82
  %155 = vmatpush.msra.mxu0 %v79
  %156 = vmatpush.msra.mxu0 %v76
  %157 = vmatpush.msra.mxu0 %v73
  %158 = vmatpush.msra.mxu0 %v70
  %159 = vmatpush.msra.mxu0 %v67
  %160 = vmatpush.msra.mxu0 %v64
  %161 = vmatpush.msra.mxu0 %v61
  %162 = vmatpush.msra.mxu0 %v58
  %163 = vmatpush.msra.mxu0 %v55
  %164 = vmatpush.msra.mxu0 %v52
  %165 = vmatpush.msra.mxu0 %v49
  %166 = vmatpush.msra.mxu0 %v46
  %167 = vmatpush.msra.mxu0 %v43
  %168 = vmatmul.f32.gmra.mxu0 %v144
  %v169 = vpop.f32.mrf.mxu0
  %v170 = vadd.f32 0.0, %v169
  %171 = vmatmul.f32.gmra.mxu0 %v145
  %v172 = vpop.f32.mrf.mxu0
  %v173 = vadd.f32 0.0, %v172
  %174 = vmatmul.f32.gmra.mxu0 %v146
  %v175 = vpop.f32.mrf.mxu0
  %v176 = vadd.f32 0.0, %v175
  %177 = vmatmul.f32.gmra.mxu0 %v147
  %v178 = vpop.f32.mrf.mxu0
  %v179 = vadd.f32 0.0, %v178
  %180 = vmatmul.f32.gmra.mxu0 %v148
  %v181 = vpop.f32.mrf.mxu0
  %v182 = vadd.f32 0.0, %v181
  %183 = vmatmul.f32.gmra.mxu0 %v149
  %v184 = vpop.f32.mrf.mxu0
  %v185 = vadd.f32 0.0, %v184
  %186 = vmatmul.f32.gmra.mxu0 %v150
  %v187 = vpop.f32.mrf.mxu0
  %v188 = vadd.f32 0.0, %v187
  %189 = vmatmul.f32.gmra.mxu0 %v151
  %v190 = vpop.f32.mrf.mxu0
  %v191 = vadd.f32 0.0, %v190
  %192 = vdwg.mxu0
  %193 = vmatpush.msra.mxu0 %v89
  %194 = vmatpush.msra.mxu0 %v86
  %195 = vmatpush.msra.mxu0 %v83
  %196 = vmatpush.msra.mxu0 %v80
  %197 = vmatpush.msra.mxu0 %v77
  %198 = vmatpush.msra.mxu0 %v74
  %199 = vmatpush.msra.mxu0 %v71
  %200 = vmatpush.msra.mxu0 %v68
  %201 = vmatpush.msra.mxu0 %v65
  %202 = vmatpush.msra.mxu0 %v62
  %203 = vmatpush.msra.mxu0 %v59
  %204 = vmatpush.msra.mxu0 %v56
  %205 = vmatpush.msra.mxu0 %v53
  %206 = vmatpush.msra.mxu0 %v50
  %207 = vmatpush.msra.mxu0 %v47
  %208 = vmatpush.msra.mxu0 %v44
  %209 = vmatmul.f32.gmra.mxu0 %v144
  %v210 = vpop.f32.mrf.mxu0
  %v211 = vadd.f32 0.0, %v210
  %212 = vmatmul.f32.gmra.mxu0 %v145
  %v213 = vpop.f32.mrf.mxu0
  %v214 = vadd.f32 0.0, %v213
  %215 = vmatmul.f32.gmra.mxu0 %v146
  %v216 = vpop.f32.mrf.mxu0
  %v217 = vadd.f32 0.0, %v216
  %218 = vmatmul.f32.gmra.mxu0 %v147
  %v219 = vpop.f32.mrf.mxu0
  %v220 = vadd.f32 0.0, %v219
  %221 = vmatmul.f32.gmra.mxu0 %v148
  %v222 = vpop.f32.mrf.mxu0
  %v223 = vadd.f32 0.0, %v222
  %224 = vmatmul.f32.gmra.mxu0 %v149
  %v225 = vpop.f32.mrf.mxu0
  %v226 = vadd.f32 0.0, %v225
  %227 = vmatmul.f32.gmra.mxu0 %v150
  %v228 = vpop.f32.mrf.mxu0
  %v229 = vadd.f32 0.0, %v228
  %230 = vmatmul.f32.gmra.mxu0 %v151
  %v231 = vpop.f32.mrf.mxu0
  %v232 = vadd.f32 0.0, %v231
  %233 = vdwg.mxu0
  %234 = vmatpush.msra.mxu0 %v90
  %235 = vmatpush.msra.mxu0 %v87
  %236 = vmatpush.msra.mxu0 %v84
  %237 = vmatpush.msra.mxu0 %v81
  %238 = vmatpush.msra.mxu0 %v78
  %239 = vmatpush.msra.mxu0 %v75
  %240 = vmatpush.msra.mxu0 %v72
  %241 = vmatpush.msra.mxu0 %v69
  %242 = vmatpush.msra.mxu0 %v66
  %243 = vmatpush.msra.mxu0 %v63
  %244 = vmatpush.msra.mxu0 %v60
  %245 = vmatpush.msra.mxu0 %v57
  %246 = vmatpush.msra.mxu0 %v54
  %247 = vmatpush.msra.mxu0 %v51
  %248 = vmatpush.msra.mxu0 %v48
  %249 = vmatpush.msra.mxu0 %v45
  %250 = vmatmul.f32.gmra.mxu0 %v144
  %v251 = vpop.f32.mrf.mxu0
  %v252 = vadd.f32 0.0, %v251
  %253 = vmatmul.f32.gmra.mxu0 %v145
  %v254 = vpop.f32.mrf.mxu0
  %v255 = vadd.f32 0.0, %v254
  %256 = vmatmul.f32.gmra.mxu0 %v146
  %v257 = vpop.f32.mrf.mxu0
  %v258 = vadd.f32 0.0, %v257
  %259 = vmatmul.f32.gmra.mxu0 %v147
  %v260 = vpop.f32.mrf.mxu0
  %v261 = vadd.f32 0.0, %v260
  %262 = vmatmul.f32.gmra.mxu0 %v148
  %v263 = vpop.f32.mrf.mxu0
  %v264 = vadd.f32 0.0, %v263
  %265 = vmatmul.f32.gmra.mxu0 %v149
  %v266 = vpop.f32.mrf.mxu0
  %v267 = vadd.f32 0.0, %v266
  %268 = vmatmul.f32.gmra.mxu0 %v150
  %v269 = vpop.f32.mrf.mxu0
  %v270 = vadd.f32 0.0, %v269
  %271 = vmatmul.f32.gmra.mxu0 %v151
  %v272 = vpop.f32.mrf.mxu0
  %v273 = vadd.f32 0.0, %v272
  %274 = vdwg.mxu0
  %275 = vst [vmem:[#allocation2] sm:$0xff] %v170
  %276 = vst [vmem:[#allocation2 + $0x8] sm:$0xff] %v211
  %277 = vst [vmem:[#allocation2 + $0x10] sm:$0xff] %v252
  %278 = vst [vmem:[#allocation2 + $0x18] sm:$0xff] %v173
  %279 = vst [vmem:[#allocation2 + $0x20] sm:$0xff] %v214
  %280 = vst [vmem:[#allocation2 + $0x28] sm:$0xff] %v255
  %281 = vst [vmem:[#allocation2 + $0x30] sm:$0xff] %v176
  %282 = vst [vmem:[#allocation2 + $0x38] sm:$0xff] %v217
  %283 = vst [vmem:[#allocation2 + $0x40] sm:$0xff] %v258
  %284 = vst [vmem:[#allocation2 + $0x48] sm:$0xff] %v179
  %285 = vst [vmem:[#allocation2 + $0x50] sm:$0xff] %v220
  %286 = vst [vmem:[#allocation2 + $0x58] sm:$0xff] %v261
  %287 = vst [vmem:[#allocation2 + $0x60] sm:$0xff] %v182
  %288 = vst [vmem:[#allocation2 + $0x68] sm:$0xff] %v223
  %289 = vst [vmem:[#allocation2 + $0x70] sm:$0xff] %v264
  %290 = vst [vmem:[#allocation2 + $0x78] sm:$0xff] %v185
  %291 = vst [vmem:[#allocation2 + $0x80] sm:$0xff] %v226
  %292 = vst [vmem:[#allocation2 + $0x88] sm:$0xff] %v267
  %293 = vst [vmem:[#allocation2 + $0x90] sm:$0xff] %v188
  %294 = vst [vmem:[#allocation2 + $0x98] sm:$0xff] %v229
  %295 = vst [vmem:[#allocation2 + $0xa0] sm:$0xff] %v270
  %296 = vst [vmem:[#allocation2 + $0xa8] sm:$0xff] %v191
  %297 = vst [vmem:[#allocation2 + $0xb0] sm:$0xff] %v232
  %298 = vst [vmem:[#allocation2 + $0xb8] sm:$0xff] %v273
  %s299 = smul.u32 0, 3
  %s300 = smul.addr %s299, 8
  %s301 = scalar_lea.vmem [#allocation2], %s300
  %v302 = vld [vmem:[%s301] sm:$0xff]
  %v303 = vld [vmem:[%s301 + $0x8] sm:$0xff]
  %v304 = vld [vmem:[%s301 + $0x10] sm:$0xff]
  %305 = vmatpush.msra.mxu0 %v136
  %306 = vmatpush.msra.mxu0 %v133
  %307 = vmatpush.msra.mxu0 %v130
  %308 = vmatpush.msra.mxu0 %v127
  %309 = vmatpush.msra.mxu0 %v124
  %310 = vmatpush.msra.mxu0 %v121
  %311 = vmatpush.msra.mxu0 %v118
  %312 = vmatpush.msra.mxu0 %v115
  %313 = vmatpush.msra.mxu0 %v112
  %314 = vmatpush.msra.mxu0 %v109
  %315 = vmatpush.msra.mxu0 %v106
  %316 = vmatpush.msra.mxu0 %v103
  %317 = vmatpush.msra.mxu0 %v100
  %318 = vmatpush.msra.mxu0 %v97
  %319 = vmatpush.msra.mxu0 %v94
  %320 = vmatpush.msra.mxu0 %v91
  %321 = vmatmul.f32.gmra.mxu0 %v143
  %v322 = vpop.f32.mrf.mxu0
  %v323 = vadd.f32 0.0, %v322
  %324 = vdwg.mxu0
  %325 = vmatpush.msra.mxu0 %v137
  %326 = vmatpush.msra.mxu0 %v134
  %327 = vmatpush.msra.mxu0 %v131
  %328 = vmatpush.msra.mxu0 %v128
  %329 = vmatpush.msra.mxu0 %v125
  %330 = vmatpush.msra.mxu0 %v122
  %331 = vmatpush.msra.mxu0 %v119
  %332 = vmatpush.msra.mxu0 %v116
  %333 = vmatpush.msra.mxu0 %v113
  %334 = vmatpush.msra.mxu0 %v110
  %335 = vmatpush.msra.mxu0 %v107
  %336 = vmatpush.msra.mxu0 %v104
  %337 = vmatpush.msra.mxu0 %v101
  %338 = vmatpush.msra.mxu0 %v98
  %339 = vmatpush.msra.mxu0 %v95
  %340 = vmatpush.msra.mxu0 %v92
  %341 = vmatmul.f32.gmra.mxu0 %v143
  %v342 = vpop.f32.mrf.mxu0
  %v343 = vadd.f32 0.0, %v342
  %344 = vdwg.mxu0
  %345 = vmatpush.msra.mxu0 %v138
  %346 = vmatpush.msra.mxu0 %v135
  %347 = vmatpush.msra.mxu0 %v132
  %348 = vmatpush.msra.mxu0 %v129
  %349 = vmatpush.msra.mxu0 %v126
  %350 = vmatpush.msra.mxu0 %v123
  %351 = vmatpush.msra.mxu0 %v120
  %352 = vmatpush.msra.mxu0 %v117
  %353 = vmatpush.msra.mxu0 %v114
  %354 = vmatpush.msra.mxu0 %v111
  %355 = vmatpush.msra.mxu0 %v108
  %356 = vmatpush.msra.mxu0 %v105
  %357 = vmatpush.msra.mxu0 %v102
  %358 = vmatpush.msra.mxu0 %v99
  %359 = vmatpush.msra.mxu0 %v96
  %360 = vmatpush.msra.mxu0 %v93
  %361 = vmatmul.f32.gmra.mxu0 %v143
  %v362 = vpop.f32.mrf.mxu0
  %v363 = vadd.f32 0.0, %v362
  %364 = vdwg.mxu0
  %v365 = vadd.f32 %v302, %v323
  %v366 = vadd.f32 %v303, %v343
  %v367 = vxor.u32 %v365, 2147483648
  %v368 = vxor.u32 %v366, 2147483648
  %v369 = vmul.f32 %v367, 1.442695
  %v370 = vpow.pop %v369
  %v371 = vmul.f32 %v368, 1.442695
  %v372 = vpow.pop %v371
  %v373 = vadd.f32 %v370, 1.0
  %v374 = vadd.f32 %v372, 1.0
  %v375 = vrcp.pop %v373
  %v376 = vmul.f32 %v373, %v375
  %v377 = vsub.f32 1.0, %v376
  %v378 = vmul.f32 %v375, %v377
  %v379 = vadd.f32 %v375, %v378
  %vm380 = vweird.f32 %v373
  %vm381 = vweird.f32 %v375
  %vm382 = vmor %vm380, %vm381
  %v383 = vsel %vm382, %v375, %v379
  %v384 = vand.u32 2147483647, %v373
  %vm385 = vcmp.eq.f32.partialorder %v384, 8.507059e+37
  %v386 = vand.u32 %v373, 2147483648
  %v387 = vor.u32 1.1754944e-38, %v386
  %v388 = vsel %vm385, %v387, %v383
  %v389 = vmul.f32 1.0, %v388
  %v390 = vrcp.pop %v374
  %v391 = vmul.f32 %v374, %v390
  %v392 = vsub.f32 1.0, %v391
  %v393 = vmul.f32 %v390, %v392
  %v394 = vadd.f32 %v390, %v393
  %vm395 = vweird.f32 %v374
  %vm396 = vweird.f32 %v390
  %vm397 = vmor %vm395, %vm396
  %v398 = vsel %vm397, %v390, %v394
  %v399 = vand.u32 2147483647, %v374
  %vm400 = vcmp.eq.f32.partialorder %v399, 8.507059e+37
  %v401 = vand.u32 %v374, 2147483648
  %v402 = vor.u32 1.1754944e-38, %v401
  %v403 = vsel %vm400, %v402, %v398
  %v404 = vmul.f32 1.0, %v403
  %v405 = vadd.f32 %v363, %v141
  %v406 = vmul.f32 %v389, %v405
  %v407 = vadd.f32 %v304, %v406
  %v408 = vtanh.pop %v407
  %v409 = vsub.f32 %v143, %v408
  %v410 = vmul.f32 %v404, %v409
  %v411 = vadd.f32 %v408, %v410
  %412 = vst [vmem:[#allocation3] sm:$0xff] %v411
  %s413 = smul.u32 1, 3
  %s414 = smul.addr %s413, 8
  %s415 = scalar_lea.vmem [#allocation2], %s414
  %v416 = vld [vmem:[%s415] sm:$0xff]
  %v417 = vld [vmem:[%s415 + $0x8] sm:$0xff]
  %v418 = vld [vmem:[%s415 + $0x10] sm:$0xff]
  %419 = vmatpush.msra.mxu0 %v136
  %420 = vmatpush.msra.mxu0 %v133
  %421 = vmatpush.msra.mxu0 %v130
  %422 = vmatpush.msra.mxu0 %v127
  %423 = vmatpush.msra.mxu0 %v124
  %424 = vmatpush.msra.mxu0 %v121
  %425 = vmatpush.msra.mxu0 %v118
  %426 = vmatpush.msra.mxu0 %v115
  %427 = vmatpush.msra.mxu0 %v112
  %428 = vmatpush.msra.mxu0 %v109
  %429 = vmatpush.msra.mxu0 %v106
  %430 = vmatpush.msra.mxu0 %v103
  %431 = vmatpush.msra.mxu0 %v100
  %432 = vmatpush.msra.mxu0 %v97
  %433 = vmatpush.msra.mxu0 %v94
  %434 = vmatpush.msra.mxu0 %v91
  %435 = vmatmul.f32.gmra.mxu0 %v411
  %v436 = vpop.f32.mrf.mxu0
  %v437 = vadd.f32 0.0, %v436
  %438 = vdwg.mxu0
  %439 = vmatpush.msra.mxu0 %v137
  %440 = vmatpush.msra.mxu0 %v134
  %441 = vmatpush.msra.mxu0 %v131
  %442 = vmatpush.msra.mxu0 %v128
  %443 = vmatpush.msra.mxu0 %v125
  %444 = vmatpush.msra.mxu0 %v122
  %445 = vmatpush.msra.mxu0 %v119
  %446 = vmatpush.msra.mxu0 %v116
  %447 = vmatpush.msra.mxu0 %v113
  %448 = vmatpush.msra.mxu0 %v110
  %449 = vmatpush.msra.mxu0 %v107
  %450 = vmatpush.msra.mxu0 %v104
  %451 = vmatpush.msra.mxu0 %v101
  %452 = vmatpush.msra.mxu0 %v98
  %453 = vmatpush.msra.mxu0 %v95
  %454 = vmatpush.msra.mxu0 %v92
  %455 = vmatmul.f32.gmra.mxu0 %v411
  %v456 = vpop.f32.mrf.mxu0
  %v457 = vadd.f32 0.0, %v456
  %458 = vdwg.mxu0
  %459 = vmatpush.msra.mxu0 %v138
  %460 = vmatpush.msra.mxu0 %v135
  %461 = vmatpush.msra.mxu0 %v132
  %462 = vmatpush.msra.mxu0 %v129
  %463 = vmatpush.msra.mxu0 %v126
  %464 = vmatpush.msra.mxu0 %v123
  %465 = vmatpush.msra.mxu0 %v120
  %466 = vmatpush.msra.mxu0 %v117
  %467 = vmatpush.msra.mxu0 %v114
  %468 = vmatpush.msra.mxu0 %v111
  %469 = vmatpush.msra.mxu0 %v108
  %470 = vmatpush.msra.mxu0 %v105
  %471 = vmatpush.msra.mxu0 %v102
  %472 = vmatpush.msra.mxu0 %v99
  %473 = vmatpush.msra.mxu0 %v96
  %474 = vmatpush.msra.mxu0 %v93
  %475 = vmatmul.f32.gmra.mxu0 %v411
  %v476 = vpop.f32.mrf.mxu0
  %v477 = vadd.f32 0.0, %v476
  %478 = vdwg.mxu0
  %v479 = vadd.f32 %v416, %v437
  %v480 = vadd.f32 %v417, %v457
  %v481 = vxor.u32 %v479, 2147483648
  %v482 = vxor.u32 %v480, 2147483648
  %v483 = vmul.f32 %v481, 1.442695
  %v484 = vpow.pop %v483
  %v485 = vmul.f32 %v482, 1.442695
  %v486 = vpow.pop %v485
  %v487 = vadd.f32 %v484, 1.0
  %v488 = vadd.f32 %v486, 1.0
  %v489 = vrcp.pop %v487
  %v490 = vmul.f32 %v487, %v489
  %v491 = vsub.f32 1.0, %v490
  %v492 = vmul.f32 %v489, %v491
  %v493 = vadd.f32 %v489, %v492
  %vm494 = vweird.f32 %v487
  %vm495 = vweird.f32 %v489
  %vm496 = vmor %vm494, %vm495
  %v497 = vsel %vm496, %v489, %v493
  %v498 = vand.u32 2147483647, %v487
  %vm499 = vcmp.eq.f32.partialorder %v498, 8.507059e+37
  %v500 = vand.u32 %v487, 2147483648
  %v501 = vor.u32 1.1754944e-38, %v500
  %v502 = vsel %vm499, %v501, %v497
  %v503 = vmul.f32 1.0, %v502
  %v504 = vrcp.pop %v488
  %v505 = vmul.f32 %v488, %v504
  %v506 = vsub.f32 1.0, %v505
  %v507 = vmul.f32 %v504, %v506
  %v508 = vadd.f32 %v504, %v507
  %vm509 = vweird.f32 %v488
  %vm510 = vweird.f32 %v504
  %vm511 = vmor %vm509, %vm510
  %v512 = vsel %vm511, %v504, %v508
  %v513 = vand.u32 2147483647, %v488
  %vm514 = vcmp.eq.f32.partialorder %v513, 8.507059e+37
  %v515 = vand.u32 %v488, 2147483648
  %v516 = vor.u32 1.1754944e-38, %v515
  %v517 = vsel %vm514, %v516, %v512
  %v518 = vmul.f32 1.0, %v517
  %v519 = vadd.f32 %v477, %v141
  %v520 = vmul.f32 %v503, %v519
  %v521 = vadd.f32 %v418, %v520
  %v522 = vtanh.pop %v521
  %v523 = vsub.f32 %v411, %v522
  %v524 = vmul.f32 %v518, %v523
  %v525 = vadd.f32 %v522, %v524
  %s526 = scalar_lea.vmem [#allocation3], 8
  %527 = vst [vmem:[%s526] sm:$0xff] %v525
  %s528 = smul.u32 2, 3
  %s529 = smul.addr %s528, 8
  %s530 = scalar_lea.vmem [#allocation2], %s529
  %v531 = vld [vmem:[%s530] sm:$0xff]
  %v532 = vld [vmem:[%s530 + $0x8] sm:$0xff]
  %v533 = vld [vmem:[%s530 + $0x10] sm:$0xff]
  %534 = vmatpush.msra.mxu0 %v136
  %535 = vmatpush.msra.mxu0 %v133
  %536 = vmatpush.msra.mxu0 %v130
  %537 = vmatpush.msra.mxu0 %v127
  %538 = vmatpush.msra.mxu0 %v124
  %539 = vmatpush.msra.mxu0 %v121
  %540 = vmatpush.msra.mxu0 %v118
  %541 = vmatpush.msra.mxu0 %v115
  %542 = vmatpush.msra.mxu0 %v112
  %543 = vmatpush.msra.mxu0 %v109
  %544 = vmatpush.msra.mxu0 %v106
  %545 = vmatpush.msra.mxu0 %v103
  %546 = vmatpush.msra.mxu0 %v100
  %547 = vmatpush.msra.mxu0 %v97
  %548 = vmatpush.msra.mxu0 %v94
  %549 = vmatpush.msra.mxu0 %v91
  %550 = vmatmul.f32.gmra.mxu0 %v525
  %v551 = vpop.f32.mrf.mxu0
  %v552 = vadd.f32 0.0, %v551
  %553 = vdwg.mxu0
  %554 = vmatpush.msra.mxu0 %v137
  %555 = vmatpush.msra.mxu0 %v134
  %556 = vmatpush.msra.mxu0 %v131
  %557 = vmatpush.msra.mxu0 %v128
  %558 = vmatpush.msra.mxu0 %v125
  %559 = vmatpush.msra.mxu0 %v122
  %560 = vmatpush.msra.mxu0 %v119
  %561 = vmatpush.msra.mxu0 %v116
  %562 = vmatpush.msra.mxu0 %v113
  %563 = vmatpush.msra.mxu0 %v110
  %564 = vmatpush.msra.mxu0 %v107
  %565 = vmatpush.msra.mxu0 %v104
  %566 = vmatpush.msra.mxu0 %v101
  %567 = vmatpush.msra.mxu0 %v98
  %568 = vmatpush.msra.mxu0 %v95
  %569 = vmatpush.msra.mxu0 %v92
  %570 = vmatmul.f32.gmra.mxu0 %v525
  %v571 = vpop.f32.mrf.mxu0
  %v572 = vadd.f32 0.0, %v571
  %573 = vdwg.mxu0
  %574 = vmatpush.msra.mxu0 %v138
  %575 = vmatpush.msra.mxu0 %v135
  %576 = vmatpush.msra.mxu0 %v132
  %577 = vmatpush.msra.mxu0 %v129
  %578 = vmatpush.msra.mxu0 %v126
  %579 = vmatpush.msra.mxu0 %v123
  %580 = vmatpush.msra.mxu0 %v120
  %581 = vmatpush.msra.mxu0 %v117
  %582 = vmatpush.msra.mxu0 %v114
  %583 = vmatpush.msra.mxu0 %v111
  %584 = vmatpush.msra.mxu0 %v108
  %585 = vmatpush.msra.mxu0 %v105
  %586 = vmatpush.msra.mxu0 %v102
  %587 = vmatpush.msra.mxu0 %v99
  %588 = vmatpush.msra.mxu0 %v96
  %589 = vmatpush.msra.mxu0 %v93
  %590 = vmatmul.f32.gmra.mxu0 %v525
  %v591 = vpop.f32.mrf.mxu0
  %v592 = vadd.f32 0.0, %v591
  %593 = vdwg.mxu0
  %v594 = vadd.f32 %v531, %v552
  %v595 = vadd.f32 %v532, %v572
  %v596 = vxor.u32 %v594, 2147483648
  %v597 = vxor.u32 %v595, 2147483648
  %v598 = vmul.f32 %v596, 1.442695
  %v599 = vpow.pop %v598
  %v600 = vmul.f32 %v597, 1.442695
  %v601 = vpow.pop %v600
  %v602 = vadd.f32 %v599, 1.0
  %v603 = vadd.f32 %v601, 1.0
  %v604 = vrcp.pop %v602
  %v605 = vmul.f32 %v602, %v604
  %v606 = vsub.f32 1.0, %v605
  %v607 = vmul.f32 %v604, %v606
  %v608 = vadd.f32 %v604, %v607
  %vm609 = vweird.f32 %v602
  %vm610 = vweird.f32 %v604
  %vm611 = vmor %vm609, %vm610
  %v612 = vsel %vm611, %v604, %v608
  %v613 = vand.u32 2147483647, %v602
  %vm614 = vcmp.eq.f32.partialorder %v613, 8.507059e+37
  %v615 = vand.u32 %v602, 2147483648
  %v616 = vor.u32 1.1754944e-38, %v615
  %v617 = vsel %vm614, %v616, %v612
  %v618 = vmul.f32 1.0, %v617
  %v619 = vrcp.pop %v603
  %v620 = vmul.f32 %v603, %v619
  %v621 = vsub.f32 1.0, %v620
  %v622 = vmul.f32 %v619, %v621
  %v623 = vadd.f32 %v619, %v622
  %vm624 = vweird.f32 %v603
  %vm625 = vweird.f32 %v619
  %vm626 = vmor %vm624, %vm625
  %v627 = vsel %vm626, %v619, %v623
  %v628 = vand.u32 2147483647, %v603
  %vm629 = vcmp.eq.f32.partialorder %v628, 8.507059e+37
  %v630 = vand.u32 %v603, 2147483648
  %v631 = vor.u32 1.1754944e-38, %v630
  %v632 = vsel %vm629, %v631, %v627
  %v633 = vmul.f32 1.0, %v632
  %v634 = vadd.f32 %v592, %v141
  %v635 = vmul.f32 %v618, %v634
  %v636 = vadd.f32 %v533, %v635
  %v637 = vtanh.pop %v636
  %v638 = vsub.f32 %v525, %v637
  %v639 = vmul.f32 %v633, %v638
  %v640 = vadd.f32 %v637, %v639
  %s641 = scalar_lea.vmem [#allocation3], 16
  %642 = vst [vmem:[%s641] sm:$0xff] %v640
  %s643 = smul.u32 3, 3
  %s644 = smul.addr %s643, 8
  %s645 = scalar_lea.vmem [#allocation2], %s644
  %v646 = vld [vmem:[%s645] sm:$0xff]
  %v647 = vld [vmem:[%s645 + $0x8] sm:$0xff]
  %v648 = vld [vmem:[%s645 + $0x10] sm:$0xff]
  %649 = vmatpush.msra.mxu0 %v136
  %650 = vmatpush.msra.mxu0 %v133
  %651 = vmatpush.msra.mxu0 %v130
  %652 = vmatpush.msra.mxu0 %v127
  %653 = vmatpush.msra.mxu0 %v124
  %654 = vmatpush.msra.mxu0 %v121
  %655 = vmatpush.msra.mxu0 %v118
  %656 = vmatpush.msra.mxu0 %v115
  %657 = vmatpush.msra.mxu0 %v112
  %658 = vmatpush.msra.mxu0 %v109
  %659 = vmatpush.msra.mxu0 %v106
  %660 = vmatpush.msra.mxu0 %v103
  %661 = vmatpush.msra.mxu0 %v100
  %662 = vmatpush.msra.mxu0 %v97
  %663 = vmatpush.msra.mxu0 %v94
  %664 = vmatpush.msra.mxu0 %v91
  %665 = vmatmul.f32.gmra.mxu0 %v640
  %v666 = vpop.f32.mrf.mxu0
  %v667 = vadd.f32 0.0, %v666
  %668 = vdwg.mxu0
  %669 = vmatpush.msra.mxu0 %v137
  %670 = vmatpush.msra.mxu0 %v134
  %671 = vmatpush.msra.mxu0 %v131
  %672 = vmatpush.msra.mxu0 %v128
  %673 = vmatpush.msra.mxu0 %v125
  %674 = vmatpush.msra.mxu0 %v122
  %675 = vmatpush.msra.mxu0 %v119
  %676 = vmatpush.msra.mxu0 %v116
  %677 = vmatpush.msra.mxu0 %v113
  %678 = vmatpush.msra.mxu0 %v110
  %679 = vmatpush.msra.mxu0 %v107
  %680 = vmatpush.msra.mxu0 %v104
  %681 = vmatpush.msra.mxu0 %v101
  %682 = vmatpush.msra.mxu0 %v98
  %683 = vmatpush.msra.mxu0 %v95
  %684 = vmatpush.msra.mxu0 %v92
  %685 = vmatmul.f32.gmra.mxu0 %v640
  %v686 = vpop.f32.mrf.mxu0
  %v687 = vadd.f32 0.0, %v686
  %688 = vdwg.mxu0
  %689 = vmatpush.msra.mxu0 %v138
  %690 = vmatpush.msra.mxu0 %v135
  %691 = vmatpush.msra.mxu0 %v132
  %692 = vmatpush.msra.mxu0 %v129
  %693 = vmatpush.msra.mxu0 %v126
  %694 = vmatpush.msra.mxu0 %v123
  %695 = vmatpush.msra.mxu0 %v120
  %696 = vmatpush.msra.mxu0 %v117
  %697 = vmatpush.msra.mxu0 %v114
  %698 = vmatpush.msra.mxu0 %v111
  %699 = vmatpush.msra.mxu0 %v108
  %700 = vmatpush.msra.mxu0 %v105
  %701 = vmatpush.msra.mxu0 %v102
  %702 = vmatpush.msra.mxu0 %v99
  %703 = vmatpush.msra.mxu0 %v96
  %704 = vmatpush.msra.mxu0 %v93
  %705 = vmatmul.f32.gmra.mxu0 %v640
  %v706 = vpop.f32.mrf.mxu0
  %v707 = vadd.f32 0.0, %v706
  %708 = vdwg.mxu0
  %v709 = vadd.f32 %v646, %v667
  %v710 = vadd.f32 %v647, %v687
  %v711 = vxor.u32 %v709, 2147483648
  %v712 = vxor.u32 %v710, 2147483648
  %v713 = vmul.f32 %v711, 1.442695
  %v714 = vpow.pop %v713
  %v715 = vmul.f32 %v712, 1.442695
  %v716 = vpow.pop %v715
  %v717 = vadd.f32 %v714, 1.0
  %v718 = vadd.f32 %v716, 1.0
  %v719 = vrcp.pop %v717
  %v720 = vmul.f32 %v717, %v719
  %v721 = vsub.f32 1.0, %v720
  %v722 = vmul.f32 %v719, %v721
  %v723 = vadd.f32 %v719, %v722
  %vm724 = vweird.f32 %v717
  %vm725 = vweird.f32 %v719
  %vm726 = vmor %vm724, %vm725
  %v727 = vsel %vm726, %v719, %v723
  %v728 = vand.u32 2147483647, %v717
  %vm729 = vcmp.eq.f32.partialorder %v728, 8.507059e+37
  %v730 = vand.u32 %v717, 2147483648
  %v731 = vor.u32 1.1754944e-38, %v730
  %v732 = vsel %vm729, %v731, %v727
  %v733 = vmul.f32 1.0, %v732
  %v734 = vrcp.pop %v718
  %v735 = vmul.f32 %v718, %v734
  %v736 = vsub.f32 1.0, %v735
  %v737 = vmul.f32 %v734, %v736
  %v738 = vadd.f32 %v734, %v737
  %vm739 = vweird.f32 %v718
  %vm740 = vweird.f32 %v734
  %vm741 = vmor %vm739, %vm740
  %v742 = vsel %vm741, %v734, %v738
  %v743 = vand.u32 2147483647, %v718
  %vm744 = vcmp.eq.f32.partialorder %v743, 8.507059e+37
  %v745 = vand.u32 %v718, 2147483648
  %v746 = vor.u32 1.1754944e-38, %v745
  %v747 = vsel %vm744, %v746, %v742
  %v748 = vmul.f32 1.0, %v747
  %v749 = vadd.f32 %v707, %v141
  %v750 = vmul.f32 %v733, %v749
  %v751 = vadd.f32 %v648, %v750
  %v752 = vtanh.pop %v751
  %v753 = vsub.f32 %v640, %v752
  %v754 = vmul.f32 %v748, %v753
  %v755 = vadd.f32 %v752, %v754
  %s756 = scalar_lea.vmem [#allocation3], 24
  %757 = vst [vmem:[%s756] sm:$0xff] %v755
  %s758 = smul.u32 4, 3
  %s759 = smul.addr %s758, 8
  %s760 = scalar_lea.vmem [#allocation2], %s759
  %v761 = vld [vmem:[%s760] sm:$0xff]
  %v762 = vld [vmem:[%s760 + $0x8] sm:$0xff]
  %v763 = vld [vmem:[%s760 + $0x10] sm:$0xff]
  %764 = vmatpush.msra.mxu0 %v136
  %765 = vmatpush.msra.mxu0 %v133
  %766 = vmatpush.msra.mxu0 %v130
  %767 = vmatpush.msra.mxu0 %v127
  %768 = vmatpush.msra.mxu0 %v124
  %769 = vmatpush.msra.mxu0 %v121
  %770 = vmatpush.msra.mxu0 %v118
  %771 = vmatpush.msra.mxu0 %v115
  %772 = vmatpush.msra.mxu0 %v112
  %773 = vmatpush.msra.mxu0 %v109
  %774 = vmatpush.msra.mxu0 %v106
  %775 = vmatpush.msra.mxu0 %v103
  %776 = vmatpush.msra.mxu0 %v100
  %777 = vmatpush.msra.mxu0 %v97
  %778 = vmatpush.msra.mxu0 %v94
  %779 = vmatpush.msra.mxu0 %v91
  %780 = vmatmul.f32.gmra.mxu0 %v755
  %v781 = vpop.f32.mrf.mxu0
  %v782 = vadd.f32 0.0, %v781
  %783 = vdwg.mxu0
  %784 = vmatpush.msra.mxu0 %v137
  %785 = vmatpush.msra.mxu0 %v134
  %786 = vmatpush.msra.mxu0 %v131
  %787 = vmatpush.msra.mxu0 %v128
  %788 = vmatpush.msra.mxu0 %v125
  %789 = vmatpush.msra.mxu0 %v122
  %790 = vmatpush.msra.mxu0 %v119
  %791 = vmatpush.msra.mxu0 %v116
  %792 = vmatpush.msra.mxu0 %v113
  %793 = vmatpush.msra.mxu0 %v110
  %794 = vmatpush.msra.mxu0 %v107
  %795 = vmatpush.msra.mxu0 %v104
  %796 = vmatpush.msra.mxu0 %v101
  %797 = vmatpush.msra.mxu0 %v98
  %798 = vmatpush.msra.mxu0 %v95
  %799 = vmatpush.msra.mxu0 %v92
  %800 = vmatmul.f32.gmra.mxu0 %v755
  %v801 = vpop.f32.mrf.mxu0
  %v802 = vadd.f32 0.0, %v801
  %803 = vdwg.mxu0
  %804 = vmatpush.msra.mxu0 %v138
  %805 = vmatpush.msra.mxu0 %v135
  %806 = vmatpush.msra.mxu0 %v132
  %807 = vmatpush.msra.mxu0 %v129
  %808 = vmatpush.msra.mxu0 %v126
  %809 = vmatpush.msra.mxu0 %v123
  %810 = vmatpush.msra.mxu0 %v120
  %811 = vmatpush.msra.mxu0 %v117
  %812 = vmatpush.msra.mxu0 %v114
  %813 = vmatpush.msra.mxu0 %v111
  %814 = vmatpush.msra.mxu0 %v108
  %815 = vmatpush.msra.mxu0 %v105
  %816 = vmatpush.msra.mxu0 %v102
  %817 = vmatpush.msra.mxu0 %v99
  %818 = vmatpush.msra.mxu0 %v96
  %819 = vmatpush.msra.mxu0 %v93
  %820 = vmatmul.f32.gmra.mxu0 %v755
  %v821 = vpop.f32.mrf.mxu0
  %v822 = vadd.f32 0.0, %v821
  %823 = vdwg.mxu0
  %v824 = vadd.f32 %v761, %v782
  %v825 = vadd.f32 %v762, %v802
  %v826 = vxor.u32 %v824, 2147483648
  %v827 = vxor.u32 %v825, 2147483648
  %v828 = vmul.f32 %v826, 1.442695
  %v829 = vpow.pop %v828
  %v830 = vmul.f32 %v827, 1.442695
  %v831 = vpow.pop %v830
  %v832 = vadd.f32 %v829, 1.0
  %v833 = vadd.f32 %v831, 1.0
  %v834 = vrcp.pop %v832
  %v835 = vmul.f32 %v832, %v834
  %v836 = vsub.f32 1.0, %v835
  %v837 = vmul.f32 %v834, %v836
  %v838 = vadd.f32 %v834, %v837
  %vm839 = vweird.f32 %v832
  %vm840 = vweird.f32 %v834
  %vm841 = vmor %vm839, %vm840
  %v842 = vsel %vm841, %v834, %v838
  %v843 = vand.u32 2147483647, %v832
  %vm844 = vcmp.eq.f32.partialorder %v843, 8.507059e+37
  %v845 = vand.u32 %v832, 2147483648
  %v846 = vor.u32 1.1754944e-38, %v845
  %v847 = vsel %vm844, %v846, %v842
  %v848 = vmul.f32 1.0, %v847
  %v849 = vrcp.pop %v833
  %v850 = vmul.f32 %v833, %v849
  %v851 = vsub.f32 1.0, %v850
  %v852 = vmul.f32 %v849, %v851
  %v853 = vadd.f32 %v849, %v852
  %vm854 = vweird.f32 %v833
  %vm855 = vweird.f32 %v849
  %vm856 = vmor %vm854, %vm855
  %v857 = vsel %vm856, %v849, %v853
  %v858 = vand.u32 2147483647, %v833
  %vm859 = vcmp.eq.f32.partialorder %v858, 8.507059e+37
  %v860 = vand.u32 %v833, 2147483648
  %v861 = vor.u32 1.1754944e-38, %v860
  %v862 = vsel %vm859, %v861, %v857
  %v863 = vmul.f32 1.0, %v862
  %v864 = vadd.f32 %v822, %v141
  %v865 = vmul.f32 %v848, %v864
  %v866 = vadd.f32 %v763, %v865
  %v867 = vtanh.pop %v866
  %v868 = vsub.f32 %v755, %v867
  %v869 = vmul.f32 %v863, %v868
  %v870 = vadd.f32 %v867, %v869
  %s871 = scalar_lea.vmem [#allocation3], 32
  %872 = vst [vmem:[%s871] sm:$0xff] %v870
  %s873 = smul.u32 5, 3
  %s874 = smul.addr %s873, 8
  %s875 = scalar_lea.vmem [#allocation2], %s874
  %v876 = vld [vmem:[%s875] sm:$0xff]
  %v877 = vld [vmem:[%s875 + $0x8] sm:$0xff]
  %v878 = vld [vmem:[%s875 + $0x10] sm:$0xff]
  %879 = vmatpush.msra.mxu0 %v136
  %880 = vmatpush.msra.mxu0 %v133
  %881 = vmatpush.msra.mxu0 %v130
  %882 = vmatpush.msra.mxu0 %v127
  %883 = vmatpush.msra.mxu0 %v124
  %884 = vmatpush.msra.mxu0 %v121
  %885 = vmatpush.msra.mxu0 %v118
  %886 = vmatpush.msra.mxu0 %v115
  %887 = vmatpush.msra.mxu0 %v112
  %888 = vmatpush.msra.mxu0 %v109
  %889 = vmatpush.msra.mxu0 %v106
  %890 = vmatpush.msra.mxu0 %v103
  %891 = vmatpush.msra.mxu0 %v100
  %892 = vmatpush.msra.mxu0 %v97
  %893 = vmatpush.msra.mxu0 %v94
  %894 = vmatpush.msra.mxu0 %v91
  %895 = vmatmul.f32.gmra.mxu0 %v870
  %v896 = vpop.f32.mrf.mxu0
  %v897 = vadd.f32 0.0, %v896
  %898 = vdwg.mxu0
  %899 = vmatpush.msra.mxu0 %v137
  %900 = vmatpush.msra.mxu0 %v134
  %901 = vmatpush.msra.mxu0 %v131
  %902 = vmatpush.msra.mxu0 %v128
  %903 = vmatpush.msra.mxu0 %v125
  %904 = vmatpush.msra.mxu0 %v122
  %905 = vmatpush.msra.mxu0 %v119
  %906 = vmatpush.msra.mxu0 %v116
  %907 = vmatpush.msra.mxu0 %v113
  %908 = vmatpush.msra.mxu0 %v110
  %909 = vmatpush.msra.mxu0 %v107
  %910 = vmatpush.msra.mxu0 %v104
  %911 = vmatpush.msra.mxu0 %v101
  %912 = vmatpush.msra.mxu0 %v98
  %913 = vmatpush.msra.mxu0 %v95
  %914 = vmatpush.msra.mxu0 %v92
  %915 = vmatmul.f32.gmra.mxu0 %v870
  %v916 = vpop.f32.mrf.mxu0
  %v917 = vadd.f32 0.0, %v916
  %918 = vdwg.mxu0
  %919 = vmatpush.msra.mxu0 %v138
  %920 = vmatpush.msra.mxu0 %v135
  %921 = vmatpush.msra.mxu0 %v132
  %922 = vmatpush.msra.mxu0 %v129
  %923 = vmatpush.msra.mxu0 %v126
  %924 = vmatpush.msra.mxu0 %v123
  %925 = vmatpush.msra.mxu0 %v120
  %926 = vmatpush.msra.mxu0 %v117
  %927 = vmatpush.msra.mxu0 %v114
  %928 = vmatpush.msra.mxu0 %v111
  %929 = vmatpush.msra.mxu0 %v108
  %930 = vmatpush.msra.mxu0 %v105
  %931 = vmatpush.msra.mxu0 %v102
  %932 = vmatpush.msra.mxu0 %v99
  %933 = vmatpush.msra.mxu0 %v96
  %934 = vmatpush.msra.mxu0 %v93
  %935 = vmatmul.f32.gmra.mxu0 %v870
  %v936 = vpop.f32.mrf.mxu0
  %v937 = vadd.f32 0.0, %v936
  %938 = vdwg.mxu0
  %v939 = vadd.f32 %v876, %v897
  %v940 = vadd.f32 %v877, %v917
  %v941 = vxor.u32 %v939, 2147483648
  %v942 = vxor.u32 %v940, 2147483648
  %v943 = vmul.f32 %v941, 1.442695
  %v944 = vpow.pop %v943
  %v945 = vmul.f32 %v942, 1.442695
  %v946 = vpow.pop %v945
  %v947 = vadd.f32 %v944, 1.0
  %v948 = vadd.f32 %v946, 1.0
  %v949 = vrcp.pop %v947
  %v950 = vmul.f32 %v947, %v949
  %v951 = vsub.f32 1.0, %v950
  %v952 = vmul.f32 %v949, %v951
  %v953 = vadd.f32 %v949, %v952
  %vm954 = vweird.f32 %v947
  %vm955 = vweird.f32 %v949
  %vm956 = vmor %vm954, %vm955
  %v957 = vsel %vm956, %v949, %v953
  %v958 = vand.u32 2147483647, %v947
  %vm959 = vcmp.eq.f32.partialorder %v958, 8.507059e+37
  %v960 = vand.u32 %v947, 2147483648
  %v961 = vor.u32 1.1754944e-38, %v960
  %v962 = vsel %vm959, %v961, %v957
  %v963 = vmul.f32 1.0, %v962
  %v964 = vrcp.pop %v948
  %v965 = vmul.f32 %v948, %v964
  %v966 = vsub.f32 1.0, %v965
  %v967 = vmul.f32 %v964, %v966
  %v968 = vadd.f32 %v964, %v967
  %vm969 = vweird.f32 %v948
  %vm970 = vweird.f32 %v964
  %vm971 = vmor %vm969, %vm970
  %v972 = vsel %vm971, %v964, %v968
  %v973 = vand.u32 2147483647, %v948
  %vm974 = vcmp.eq.f32.partialorder %v973, 8.507059e+37
  %v975 = vand.u32 %v948, 2147483648
  %v976 = vor.u32 1.1754944e-38, %v975
  %v977 = vsel %vm974, %v976, %v972
  %v978 = vmul.f32 1.0, %v977
  %v979 = vadd.f32 %v937, %v141
  %v980 = vmul.f32 %v963, %v979
  %v981 = vadd.f32 %v878, %v980
  %v982 = vtanh.pop %v981
  %v983 = vsub.f32 %v870, %v982
  %v984 = vmul.f32 %v978, %v983
  %v985 = vadd.f32 %v982, %v984
  %s986 = scalar_lea.vmem [#allocation3], 40
  %987 = vst [vmem:[%s986] sm:$0xff] %v985
  %s988 = smul.u32 6, 3
  %s989 = smul.addr %s988, 8
  %s990 = scalar_lea.vmem [#allocation2], %s989
  %v991 = vld [vmem:[%s990] sm:$0xff]
  %v992 = vld [vmem:[%s990 + $0x8] sm:$0xff]
  %v993 = vld [vmem:[%s990 + $0x10] sm:$0xff]
  %994 = vmatpush.msra.mxu0 %v136
  %995 = vmatpush.msra.mxu0 %v133
  %996 = vmatpush.msra.mxu0 %v130
  %997 = vmatpush.msra.mxu0 %v127
  %998 = vmatpush.msra.mxu0 %v124
  %999 = vmatpush.msra.mxu0 %v121
  %1000 = vmatpush.msra.mxu0 %v118
  %1001 = vmatpush.msra.mxu0 %v115
  %1002 = vmatpush.msra.mxu0 %v112
  %1003 = vmatpush.msra.mxu0 %v109
  %1004 = vmatpush.msra.mxu0 %v106
  %1005 = vmatpush.msra.mxu0 %v103
  %1006 = vmatpush.msra.mxu0 %v100
  %1007 = vmatpush.msra.mxu0 %v97
  %1008 = vmatpush.msra.mxu0 %v94
  %1009 = vmatpush.msra.mxu0 %v91
  %1010 = vmatmul.f32.gmra.mxu0 %v985
  %v1011 = vpop.f32.mrf.mxu0
  %v1012 = vadd.f32 0.0, %v1011
  %1013 = vdwg.mxu0
  %1014 = vmatpush.msra.mxu0 %v137
  %1015 = vmatpush.msra.mxu0 %v134
  %1016 = vmatpush.msra.mxu0 %v131
  %1017 = vmatpush.msra.mxu0 %v128
  %1018 = vmatpush.msra.mxu0 %v125
  %1019 = vmatpush.msra.mxu0 %v122
  %1020 = vmatpush.msra.mxu0 %v119
  %1021 = vmatpush.msra.mxu0 %v116
  %1022 = vmatpush.msra.mxu0 %v113
  %1023 = vmatpush.msra.mxu0 %v110
  %1024 = vmatpush.msra.mxu0 %v107
  %1025 = vmatpush.msra.mxu0 %v104
  %1026 = vmatpush.msra.mxu0 %v101
  %1027 = vmatpush.msra.mxu0 %v98
  %1028 = vmatpush.msra.mxu0 %v95
  %1029 = vmatpush.msra.mxu0 %v92
  %1030 = vmatmul.f32.gmra.mxu0 %v985
  %v1031 = vpop.f32.mrf.mxu0
  %v1032 = vadd.f32 0.0, %v1031
  %1033 = vdwg.mxu0
  %1034 = vmatpush.msra.mxu0 %v138
  %1035 = vmatpush.msra.mxu0 %v135
  %1036 = vmatpush.msra.mxu0 %v132
  %1037 = vmatpush.msra.mxu0 %v129
  %1038 = vmatpush.msra.mxu0 %v126
  %1039 = vmatpush.msra.mxu0 %v123
  %1040 = vmatpush.msra.mxu0 %v120
  %1041 = vmatpush.msra.mxu0 %v117
  %1042 = vmatpush.msra.mxu0 %v114
  %1043 = vmatpush.msra.mxu0 %v111
  %1044 = vmatpush.msra.mxu0 %v108
  %1045 = vmatpush.msra.mxu0 %v105
  %1046 = vmatpush.msra.mxu0 %v102
  %1047 = vmatpush.msra.mxu0 %v99
  %1048 = vmatpush.msra.mxu0 %v96
  %1049 = vmatpush.msra.mxu0 %v93
  %1050 = vmatmul.f32.gmra.mxu0 %v985
  %v1051 = vpop.f32.mrf.mxu0
  %v1052 = vadd.f32 0.0, %v1051
  %1053 = vdwg.mxu0
  %v1054 = vadd.f32 %v991, %v1012
  %v1055 = vadd.f32 %v992, %v1032
  %v1056 = vxor.u32 %v1054, 2147483648
  %v1057 = vxor.u32 %v1055, 2147483648
  %v1058 = vmul.f32 %v1056, 1.442695
  %v1059 = vpow.pop %v1058
  %v1060 = vmul.f32 %v1057, 1.442695
  %v1061 = vpow.pop %v1060
  %v1062 = vadd.f32 %v1059, 1.0
  %v1063 = vadd.f32 %v1061, 1.0
  %v1064 = vrcp.pop %v1062
  %v1065 = vmul.f32 %v1062, %v1064
  %v1066 = vsub.f32 1.0, %v1065
  %v1067 = vmul.f32 %v1064, %v1066
  %v1068 = vadd.f32 %v1064, %v1067
  %vm1069 = vweird.f32 %v1062
  %vm1070 = vweird.f32 %v1064
  %vm1071 = vmor %vm1069, %vm1070
  %v1072 = vsel %vm1071, %v1064, %v1068
  %v1073 = vand.u32 2147483647, %v1062
  %vm1074 = vcmp.eq.f32.partialorder %v1073, 8.507059e+37
  %v1075 = vand.u32 %v1062, 2147483648
  %v1076 = vor.u32 1.1754944e-38, %v1075
  %v1077 = vsel %vm1074, %v1076, %v1072
  %v1078 = vmul.f32 1.0, %v1077
  %v1079 = vrcp.pop %v1063
  %v1080 = vmul.f32 %v1063, %v1079
  %v1081 = vsub.f32 1.0, %v1080
  %v1082 = vmul.f32 %v1079, %v1081
  %v1083 = vadd.f32 %v1079, %v1082
  %vm1084 = vweird.f32 %v1063
  %vm1085 = vweird.f32 %v1079
  %vm1086 = vmor %vm1084, %vm1085
  %v1087 = vsel %vm1086, %v1079, %v1083
  %v1088 = vand.u32 2147483647, %v1063
  %vm1089 = vcmp.eq.f32.partialorder %v1088, 8.507059e+37
  %v1090 = vand.u32 %v1063, 2147483648
  %v1091 = vor.u32 1.1754944e-38, %v1090
  %v1092 = vsel %vm1089, %v1091, %v1087
  %v1093 = vmul.f32 1.0, %v1092
  %v1094 = vadd.f32 %v1052, %v141
  %v1095 = vmul.f32 %v1078, %v1094
  %v1096 = vadd.f32 %v993, %v1095
  %v1097 = vtanh.pop %v1096
  %v1098 = vsub.f32 %v985, %v1097
  %v1099 = vmul.f32 %v1093, %v1098
  %v1100 = vadd.f32 %v1097, %v1099
  %s1101 = scalar_lea.vmem [#allocation3], 48
  %1102 = vst [vmem:[%s1101] sm:$0xff] %v1100
  %s1103 = smul.u32 7, 3
  %s1104 = smul.addr %s1103, 8
  %s1105 = scalar_lea.vmem [#allocation2], %s1104
  %v1106 = vld [vmem:[%s1105] sm:$0xff]
  %v1107 = vld [vmem:[%s1105 + $0x8] sm:$0xff]
  %v1108 = vld [vmem:[%s1105 + $0x10] sm:$0xff]
  %1109 = vmatpush.msra.mxu0 %v136
  %1110 = vmatpush.msra.mxu0 %v133
  %1111 = vmatpush.msra.mxu0 %v130
  %1112 = vmatpush.msra.mxu0 %v127
  %1113 = vmatpush.msra.mxu0 %v124
  %1114 = vmatpush.msra.mxu0 %v121
  %1115 = vmatpush.msra.mxu0 %v118
  %1116 = vmatpush.msra.mxu0 %v115
  %1117 = vmatpush.msra.mxu0 %v112
  %1118 = vmatpush.msra.mxu0 %v109
  %1119 = vmatpush.msra.mxu0 %v106
  %1120 = vmatpush.msra.mxu0 %v103
  %1121 = vmatpush.msra.mxu0 %v100
  %1122 = vmatpush.msra.mxu0 %v97
  %1123 = vmatpush.msra.mxu0 %v94
  %1124 = vmatpush.msra.mxu0 %v91
  %1125 = vmatmul.f32.gmra.mxu0 %v1100
  %v1126 = vpop.f32.mrf.mxu0
  %v1127 = vadd.f32 0.0, %v1126
  %1128 = vdwg.mxu0
  %1129 = vmatpush.msra.mxu0 %v137
  %1130 = vmatpush.msra.mxu0 %v134
  %1131 = vmatpush.msra.mxu0 %v131
  %1132 = vmatpush.msra.mxu0 %v128
  %1133 = vmatpush.msra.mxu0 %v125
  %1134 = vmatpush.msra.mxu0 %v122
  %1135 = vmatpush.msra.mxu0 %v119
  %1136 = vmatpush.msra.mxu0 %v116
  %1137 = vmatpush.msra.mxu0 %v113
  %1138 = vmatpush.msra.mxu0 %v110
  %1139 = vmatpush.msra.mxu0 %v107
  %1140 = vmatpush.msra.mxu0 %v104
  %1141 = vmatpush.msra.mxu0 %v101
  %1142 = vmatpush.msra.mxu0 %v98
  %1143 = vmatpush.msra.mxu0 %v95
  %1144 = vmatpush.msra.mxu0 %v92
  %1145 = vmatmul.f32.gmra.mxu0 %v1100
  %v1146 = vpop.f32.mrf.mxu0
  %v1147 = vadd.f32 0.0, %v1146
  %1148 = vdwg.mxu0
  %1149 = vmatpush.msra.mxu0 %v138
  %1150 = vmatpush.msra.mxu0 %v135
  %1151 = vmatpush.msra.mxu0 %v132
  %1152 = vmatpush.msra.mxu0 %v129
  %1153 = vmatpush.msra.mxu0 %v126
  %1154 = vmatpush.msra.mxu0 %v123
  %1155 = vmatpush.msra.mxu0 %v120
  %1156 = vmatpush.msra.mxu0 %v117
  %1157 = vmatpush.msra.mxu0 %v114
  %1158 = vmatpush.msra.mxu0 %v111
  %1159 = vmatpush.msra.mxu0 %v108
  %1160 = vmatpush.msra.mxu0 %v105
  %1161 = vmatpush.msra.mxu0 %v102
  %1162 = vmatpush.msra.mxu0 %v99
  %1163 = vmatpush.msra.mxu0 %v96
  %1164 = vmatpush.msra.mxu0 %v93
  %1165 = vmatmul.f32.gmra.mxu0 %v1100
  %v1166 = vpop.f32.mrf.mxu0
  %v1167 = vadd.f32 0.0, %v1166
  %1168 = vdwg.mxu0
  %v1169 = vadd.f32 %v1106, %v1127
  %v1170 = vadd.f32 %v1107, %v1147
  %v1171 = vxor.u32 %v1169, 2147483648
  %v1172 = vxor.u32 %v1170, 2147483648
  %v1173 = vmul.f32 %v1171, 1.442695
  %v1174 = vpow.pop %v1173
  %v1175 = vmul.f32 %v1172, 1.442695
  %v1176 = vpow.pop %v1175
  %v1177 = vadd.f32 %v1174, 1.0
  %v1178 = vadd.f32 %v1176, 1.0
  %v1179 = vrcp.pop %v1177
  %v1180 = vmul.f32 %v1177, %v1179
  %v1181 = vsub.f32 1.0, %v1180
  %v1182 = vmul.f32 %v1179, %v1181
  %v1183 = vadd.f32 %v1179, %v1182
  %vm1184 = vweird.f32 %v1177
  %vm1185 = vweird.f32 %v1179
  %vm1186 = vmor %vm1184, %vm1185
  %v1187 = vsel %vm1186, %v1179, %v1183
  %v1188 = vand.u32 2147483647, %v1177
  %vm1189 = vcmp.eq.f32.partialorder %v1188, 8.507059e+37
  %v1190 = vand.u32 %v1177, 2147483648
  %v1191 = vor.u32 1.1754944e-38, %v1190
  %v1192 = vsel %vm1189, %v1191, %v1187
  %v1193 = vmul.f32 1.0, %v1192
  %v1194 = vrcp.pop %v1178
  %v1195 = vmul.f32 %v1178, %v1194
  %v1196 = vsub.f32 1.0, %v1195
  %v1197 = vmul.f32 %v1194, %v1196
  %v1198 = vadd.f32 %v1194, %v1197
  %vm1199 = vweird.f32 %v1178
  %vm1200 = vweird.f32 %v1194
  %vm1201 = vmor %vm1199, %vm1200
  %v1202 = vsel %vm1201, %v1194, %v1198
  %v1203 = vand.u32 2147483647, %v1178
  %vm1204 = vcmp.eq.f32.partialorder %v1203, 8.507059e+37
  %v1205 = vand.u32 %v1178, 2147483648
  %v1206 = vor.u32 1.1754944e-38, %v1205
  %v1207 = vsel %vm1204, %v1206, %v1202
  %v1208 = vmul.f32 1.0, %v1207
  %v1209 = vadd.f32 %v1167, %v141
  %v1210 = vmul.f32 %v1193, %v1209
  %v1211 = vadd.f32 %v1108, %v1210
  %v1212 = vtanh.pop %v1211
  %v1213 = vsub.f32 %v1100, %v1212
  %v1214 = vmul.f32 %v1208, %v1213
  %v1215 = vadd.f32 %v1212, %v1214
  %s1216 = scalar_lea.vmem [#allocation3], 56
  %1217 = vst [vmem:[%s1216] sm:$0xff] %v1215
  %1218 = vst [vmem:[%s13] sm:$0xff] %v1215
  %v1219 = vld [vmem:[%s6] sm:$0xff]
  %v1220 = vld [vmem:[%s6 + $0x8] sm:$0xff]
  %v1221 = vld [vmem:[%s6 + $0x10] sm:$0xff]
  %v1222 = vld [vmem:[%s6 + $0x18] sm:$0xff]
  %v1223 = vld [vmem:[%s6 + $0x20] sm:$0xff]
  %v1224 = vld [vmem:[%s6 + $0x28] sm:$0xff]
  %v1225 = vld [vmem:[%s6 + $0x30] sm:$0xff]
  %v1226 = vld [vmem:[%s6 + $0x38] sm:$0xff]
  %v1227 = vld [vmem:[%s6 + $0x40] sm:$0xff]
  %v1228 = vld [vmem:[%s6 + $0x48] sm:$0xff]
  %v1229 = vld [vmem:[%s6 + $0x50] sm:$0xff]
  %v1230 = vld [vmem:[%s6 + $0x58] sm:$0xff]
  %v1231 = vld [vmem:[%s6 + $0x60] sm:$0xff]
  %v1232 = vld [vmem:[%s6 + $0x68] sm:$0xff]
  %v1233 = vld [vmem:[%s6 + $0x70] sm:$0xff]
  %v1234 = vld [vmem:[%s6 + $0x78] sm:$0xff]
  %v1235 = vld [vmem:[%s6 + $0x80] sm:$0xff]
  %v1236 = vld [vmem:[%s6 + $0x88] sm:$0xff]
  %v1237 = vld [vmem:[%s6 + $0x90] sm:$0xff]
  %v1238 = vld [vmem:[%s6 + $0x98] sm:$0xff]
  %v1239 = vld [vmem:[%s6 + $0xa0] sm:$0xff]
  %v1240 = vld [vmem:[%s6 + $0xa8] sm:$0xff]
  %v1241 = vld [vmem:[%s6 + $0xb0] sm:$0xff]
  %v1242 = vld [vmem:[%s6 + $0xb8] sm:$0xff]
  %v1243 = vld [vmem:[%s6 + $0xc0] sm:$0xff]
  %v1244 = vld [vmem:[%s6 + $0xc8] sm:$0xff]
  %v1245 = vld [vmem:[%s6 + $0xd0] sm:$0xff]
  %v1246 = vld [vmem:[%s6 + $0xd8] sm:$0xff]
  %v1247 = vld [vmem:[%s6 + $0xe0] sm:$0xff]
  %v1248 = vld [vmem:[%s6 + $0xe8] sm:$0xff]
  %v1249 = vld [vmem:[%s6 + $0xf0] sm:$0xff]
  %v1250 = vld [vmem:[%s6 + $0xf8] sm:$0xff]
  %v1251 = vld [vmem:[%s6 + $0x100] sm:$0xff]
  %v1252 = vld [vmem:[%s6 + $0x108] sm:$0xff]
  %v1253 = vld [vmem:[%s6 + $0x110] sm:$0xff]
  %v1254 = vld [vmem:[%s6 + $0x118] sm:$0xff]
  %v1255 = vld [vmem:[%s6 + $0x120] sm:$0xff]
  %v1256 = vld [vmem:[%s6 + $0x128] sm:$0xff]
  %v1257 = vld [vmem:[%s6 + $0x130] sm:$0xff]
  %v1258 = vld [vmem:[%s6 + $0x138] sm:$0xff]
  %v1259 = vld [vmem:[%s6 + $0x140] sm:$0xff]
  %v1260 = vld [vmem:[%s6 + $0x148] sm:$0xff]
  %v1261 = vld [vmem:[%s6 + $0x150] sm:$0xff]
  %v1262 = vld [vmem:[%s6 + $0x158] sm:$0xff]
  %v1263 = vld [vmem:[%s6 + $0x160] sm:$0xff]
  %v1264 = vld [vmem:[%s6 + $0x168] sm:$0xff]
  %v1265 = vld [vmem:[%s6 + $0x170] sm:$0xff]
  %v1266 = vld [vmem:[%s6 + $0x178] sm:$0xff]
  %v1267 = vld [vmem:[%s7] sm:$0xff]
  %v1268 = vld [vmem:[%s7 + $0x8] sm:$0xff]
  %v1269 = vld [vmem:[%s7 + $0x10] sm:$0xff]
  %v1270 = vld [vmem:[%s7 + $0x18] sm:$0xff]
  %v1271 = vld [vmem:[%s7 + $0x20] sm:$0xff]
  %v1272 = vld [vmem:[%s7 + $0x28] sm:$0xff]
  %v1273 = vld [vmem:[%s7 + $0x30] sm:$0xff]
  %v1274 = vld [vmem:[%s7 + $0x38] sm:$0xff]
  %v1275 = vld [vmem:[%s7 + $0x40] sm:$0xff]
  %v1276 = vld [vmem:[%s7 + $0x48] sm:$0xff]
  %v1277 = vld [vmem:[%s7 + $0x50] sm:$0xff]
  %v1278 = vld [vmem:[%s7 + $0x58] sm:$0xff]
  %v1279 = vld [vmem:[%s7 + $0x60] sm:$0xff]
  %v1280 = vld [vmem:[%s7 + $0x68] sm:$0xff]
  %v1281 = vld [vmem:[%s7 + $0x70] sm:$0xff]
  %v1282 = vld [vmem:[%s7 + $0x78] sm:$0xff]
  %v1283 = vld [vmem:[%s7 + $0x80] sm:$0xff]
  %v1284 = vld [vmem:[%s7 + $0x88] sm:$0xff]
  %v1285 = vld [vmem:[%s7 + $0x90] sm:$0xff]
  %v1286 = vld [vmem:[%s7 + $0x98] sm:$0xff]
  %v1287 = vld [vmem:[%s7 + $0xa0] sm:$0xff]
  %v1288 = vld [vmem:[%s7 + $0xa8] sm:$0xff]
  %v1289 = vld [vmem:[%s7 + $0xb0] sm:$0xff]
  %v1290 = vld [vmem:[%s7 + $0xb8] sm:$0xff]
  %v1291 = vld [vmem:[%s7 + $0xc0] sm:$0xff]
  %v1292 = vld [vmem:[%s7 + $0xc8] sm:$0xff]
  %v1293 = vld [vmem:[%s7 + $0xd0] sm:$0xff]
  %v1294 = vld [vmem:[%s7 + $0xd8] sm:$0xff]
  %v1295 = vld [vmem:[%s7 + $0xe0] sm:$0xff]
  %v1296 = vld [vmem:[%s7 + $0xe8] sm:$0xff]
  %v1297 = vld [vmem:[%s7 + $0xf0] sm:$0xff]
  %v1298 = vld [vmem:[%s7 + $0xf8] sm:$0xff]
  %v1299 = vld [vmem:[%s7 + $0x100] sm:$0xff]
  %v1300 = vld [vmem:[%s7 + $0x108] sm:$0xff]
  %v1301 = vld [vmem:[%s7 + $0x110] sm:$0xff]
  %v1302 = vld [vmem:[%s7 + $0x118] sm:$0xff]
  %v1303 = vld [vmem:[%s7 + $0x120] sm:$0xff]
  %v1304 = vld [vmem:[%s7 + $0x128] sm:$0xff]
  %v1305 = vld [vmem:[%s7 + $0x130] sm:$0xff]
  %v1306 = vld [vmem:[%s7 + $0x138] sm:$0xff]
  %v1307 = vld [vmem:[%s7 + $0x140] sm:$0xff]
  %v1308 = vld [vmem:[%s7 + $0x148] sm:$0xff]
  %v1309 = vld [vmem:[%s7 + $0x150] sm:$0xff]
  %v1310 = vld [vmem:[%s7 + $0x158] sm:$0xff]
  %v1311 = vld [vmem:[%s7 + $0x160] sm:$0xff]
  %v1312 = vld [vmem:[%s7 + $0x168] sm:$0xff]
  %v1313 = vld [vmem:[%s7 + $0x170] sm:$0xff]
  %v1314 = vld [vmem:[%s7 + $0x178] sm:$0xff]
  %v1315 = vld [vmem:[%s8] sm:$0x7]
  %v1316 = vld [vmem:[%s9] sm:$0x1]
  %v1318 = vperm.slane %v1316, 0
  %s1320 = scalar_lea.vmem %s1, 8
  %v1321 = vld [vmem:[%s1320] sm:$0xff]
  %v1322 = vld [vmem:[#allocation3] sm:$0xff]
  %v1323 = vld [vmem:[#allocation3 + $0x8] sm:$0xff]
  %v1324 = vld [vmem:[#allocation3 + $0x10] sm:$0xff]
  %v1325 = vld [vmem:[#allocation3 + $0x18] sm:$0xff]
  %v1326 = vld [vmem:[#allocation3 + $0x20] sm:$0xff]
  %v1327 = vld [vmem:[#allocation3 + $0x28] sm:$0xff]
  %v1328 = vld [vmem:[#allocation3 + $0x30] sm:$0xff]
  %v1329 = vld [vmem:[#allocation3 + $0x38] sm:$0xff]
  %v1331 = vperm.slane %v1315, 0
  %v1332 = vperm.slane %v1315, 1
  %v1333 = vperm.slane %v1315, 2
  %1337 = vmatpush.msra.mxu0 %v1264
  %1338 = vmatpush.msra.mxu0 %v1261
  %1339 = vmatpush.msra.mxu0 %v1258
  %1340 = vmatpush.msra.mxu0 %v1255
  %1341 = vmatpush.msra.mxu0 %v1252
  %1342 = vmatpush.msra.mxu0 %v1249
  %1343 = vmatpush.msra.mxu0 %v1246
  %1344 = vmatpush.msra.mxu0 %v1243
  %1345 = vmatpush.msra.mxu0 %v1240
  %1346 = vmatpush.msra.mxu0 %v1237
  %1347 = vmatpush.msra.mxu0 %v1234
  %1348 = vmatpush.msra.mxu0 %v1231
  %1349 = vmatpush.msra.mxu0 %v1228
  %1350 = vmatpush.msra.mxu0 %v1225
  %1351 = vmatpush.msra.mxu0 %v1222
  %1352 = vmatpush.msra.mxu0 %v1219
  %1353 = vmatmul.f32.gmra.mxu0 %v1322
  %v1354 = vpop.f32.mrf.mxu0
  %v1355 = vadd.f32 %v1331, %v1354
  %1356 = vmatmul.f32.gmra.mxu0 %v1323
  %v1357 = vpop.f32.mrf.mxu0
  %v1358 = vadd.f32 %v1331, %v1357
  %1359 = vmatmul.f32.gmra.mxu0 %v1324
  %v1360 = vpop.f32.mrf.mxu0
  %v1361 = vadd.f32 %v1331, %v1360
  %1362 = vmatmul.f32.gmra.mxu0 %v1325
  %v1363 = vpop.f32.mrf.mxu0
  %v1364 = vadd.f32 %v1331, %v1363
  %1365 = vmatmul.f32.gmra.mxu0 %v1326
  %v1366 = vpop.f32.mrf.mxu0
  %v1367 = vadd.f32 %v1331, %v1366
  %1368 = vmatmul.f32.gmra.mxu0 %v1327
  %v1369 = vpop.f32.mrf.mxu0
  %v1370 = vadd.f32 %v1331, %v1369
  %1371 = vmatmul.f32.gmra.mxu0 %v1328
  %v1372 = vpop.f32.mrf.mxu0
  %v1373 = vadd.f32 %v1331, %v1372
  %1374 = vmatmul.f32.gmra.mxu0 %v1329
  %v1375 = vpop.f32.mrf.mxu0
  %v1376 = vadd.f32 %v1331, %v1375
  %1377 = vdwg.mxu0
  %1378 = vmatpush.msra.mxu0 %v1265
  %1379 = vmatpush.msra.mxu0 %v1262
  %1380 = vmatpush.msra.mxu0 %v1259
  %1381 = vmatpush.msra.mxu0 %v1256
  %1382 = vmatpush.msra.mxu0 %v1253
  %1383 = vmatpush.msra.mxu0 %v1250
  %1384 = vmatpush.msra.mxu0 %v1247
  %1385 = vmatpush.msra.mxu0 %v1244
  %1386 = vmatpush.msra.mxu0 %v1241
  %1387 = vmatpush.msra.mxu0 %v1238
  %1388 = vmatpush.msra.mxu0 %v1235
  %1389 = vmatpush.msra.mxu0 %v1232
  %1390 = vmatpush.msra.mxu0 %v1229
  %1391 = vmatpush.msra.mxu0 %v1226
  %1392 = vmatpush.msra.mxu0 %v1223
  %1393 = vmatpush.msra.mxu0 %v1220
  %1394 = vmatmul.f32.gmra.mxu0 %v1322
  %v1395 = vpop.f32.mrf.mxu0
  %v1396 = vadd.f32 %v1332, %v1395
  %1397 = vmatmul.f32.gmra.mxu0 %v1323
  %v1398 = vpop.f32.mrf.mxu0
  %v1399 = vadd.f32 %v1332, %v1398
  %1400 = vmatmul.f32.gmra.mxu0 %v1324
  %v1401 = vpop.f32.mrf.mxu0
  %v1402 = vadd.f32 %v1332, %v1401
  %1403 = vmatmul.f32.gmra.mxu0 %v1325
  %v1404 = vpop.f32.mrf.mxu0
  %v1405 = vadd.f32 %v1332, %v1404
  %1406 = vmatmul.f32.gmra.mxu0 %v1326
  %v1407 = vpop.f32.mrf.mxu0
  %v1408 = vadd.f32 %v1332, %v1407
  %1409 = vmatmul.f32.gmra.mxu0 %v1327
  %v1410 = vpop.f32.mrf.mxu0
  %v1411 = vadd.f32 %v1332, %v1410
  %1412 = vmatmul.f32.gmra.mxu0 %v1328
  %v1413 = vpop.f32.mrf.mxu0
  %v1414 = vadd.f32 %v1332, %v1413
  %1415 = vmatmul.f32.gmra.mxu0 %v1329
  %v1416 = vpop.f32.mrf.mxu0
  %v1417 = vadd.f32 %v1332, %v1416
  %1418 = vdwg.mxu0
  %1419 = vmatpush.msra.mxu0 %v1266
  %1420 = vmatpush.msra.mxu0 %v1263
  %1421 = vmatpush.msra.mxu0 %v1260
  %1422 = vmatpush.msra.mxu0 %v1257
  %1423 = vmatpush.msra.mxu0 %v1254
  %1424 = vmatpush.msra.mxu0 %v1251
  %1425 = vmatpush.msra.mxu0 %v1248
  %1426 = vmatpush.msra.mxu0 %v1245
  %1427 = vmatpush.msra.mxu0 %v1242
  %1428 = vmatpush.msra.mxu0 %v1239
  %1429 = vmatpush.msra.mxu0 %v1236
  %1430 = vmatpush.msra.mxu0 %v1233
  %1431 = vmatpush.msra.mxu0 %v1230
  %1432 = vmatpush.msra.mxu0 %v1227
  %1433 = vmatpush.msra.mxu0 %v1224
  %1434 = vmatpush.msra.mxu0 %v1221
  %1435 = vmatmul.f32.gmra.mxu0 %v1322
  %v1436 = vpop.f32.mrf.mxu0
  %v1437 = vadd.f32 %v1333, %v1436
  %1438 = vmatmul.f32.gmra.mxu0 %v1323
  %v1439 = vpop.f32.mrf.mxu0
  %v1440 = vadd.f32 %v1333, %v1439
  %1441 = vmatmul.f32.gmra.mxu0 %v1324
  %v1442 = vpop.f32.mrf.mxu0
  %v1443 = vadd.f32 %v1333, %v1442
  %1444 = vmatmul.f32.gmra.mxu0 %v1325
  %v1445 = vpop.f32.mrf.mxu0
  %v1446 = vadd.f32 %v1333, %v1445
  %1447 = vmatmul.f32.gmra.mxu0 %v1326
  %v1448 = vpop.f32.mrf.mxu0
  %v1449 = vadd.f32 %v1333, %v1448
  %1450 = vmatmul.f32.gmra.mxu0 %v1327
  %v1451 = vpop.f32.mrf.mxu0
  %v1452 = vadd.f32 %v1333, %v1451
  %1453 = vmatmul.f32.gmra.mxu0 %v1328
  %v1454 = vpop.f32.mrf.mxu0
  %v1455 = vadd.f32 %v1333, %v1454
  %1456 = vmatmul.f32.gmra.mxu0 %v1329
  %v1457 = vpop.f32.mrf.mxu0
  %v1458 = vadd.f32 %v1333, %v1457
  %1459 = vdwg.mxu0
  %1460 = vst [vmem:[#allocation2] sm:$0xff] %v1355
  %1461 = vst [vmem:[#allocation2 + $0x8] sm:$0xff] %v1396
  %1462 = vst [vmem:[#allocation2 + $0x10] sm:$0xff] %v1437
  %1463 = vst [vmem:[#allocation2 + $0x18] sm:$0xff] %v1358
  %1464 = vst [vmem:[#allocation2 + $0x20] sm:$0xff] %v1399
  %1465 = vst [vmem:[#allocation2 + $0x28] sm:$0xff] %v1440
  %1466 = vst [vmem:[#allocation2 + $0x30] sm:$0xff] %v1361
  %1467 = vst [vmem:[#allocation2 + $0x38] sm:$0xff] %v1402
  %1468 = vst [vmem:[#allocation2 + $0x40] sm:$0xff] %v1443
  %1469 = vst [vmem:[#allocation2 + $0x48] sm:$0xff] %v1364
  %1470 = vst [vmem:[#allocation2 + $0x50] sm:$0xff] %v1405
  %1471 = vst [vmem:[#allocation2 + $0x58] sm:$0xff] %v1446
  %1472 = vst [vmem:[#allocation2 + $0x60] sm:$0xff] %v1367
  %1473 = vst [vmem:[#allocation2 + $0x68] sm:$0xff] %v1408
  %1474 = vst [vmem:[#allocation2 + $0x70] sm:$0xff] %v1449
  %1475 = vst [vmem:[#allocation2 + $0x78] sm:$0xff] %v1370
  %1476 = vst [vmem:[#allocation2 + $0x80] sm:$0xff] %v1411
  %1477 = vst [vmem:[#allocation2 + $0x88] sm:$0xff] %v1452
  %1478 = vst [vmem:[#allocation2 + $0x90] sm:$0xff] %v1373
  %1479 = vst [vmem:[#allocation2 + $0x98] sm:$0xff] %v1414
  %1480 = vst [vmem:[#allocation2 + $0xa0] sm:$0xff] %v1455
  %1481 = vst [vmem:[#allocation2 + $0xa8] sm:$0xff] %v1376
  %1482 = vst [vmem:[#allocation2 + $0xb0] sm:$0xff] %v1417
  %1483 = vst [vmem:[#allocation2 + $0xb8] sm:$0xff] %v1458
  %v1484 = vld [vmem:[%s301] sm:$0xff]
  %v1485 = vld [vmem:[%s301 + $0x8] sm:$0xff]
  %v1486 = vld [vmem:[%s301 + $0x10] sm:$0xff]
  %1487 = vmatpush.msra.mxu0 %v1312
  %1488 = vmatpush.msra.mxu0 %v1309
  %1489 = vmatpush.msra.mxu0 %v1306
  %1490 = vmatpush.msra.mxu0 %v1303
  %1491 = vmatpush.msra.mxu0 %v1300
  %1492 = vmatpush.msra.mxu0 %v1297
  %1493 = vmatpush.msra.mxu0 %v1294
  %1494 = vmatpush.msra.mxu0 %v1291
  %1495 = vmatpush.msra.mxu0 %v1288
  %1496 = vmatpush.msra.mxu0 %v1285
  %1497 = vmatpush.msra.mxu0 %v1282
  %1498 = vmatpush.msra.mxu0 %v1279
  %1499 = vmatpush.msra.mxu0 %v1276
  %1500 = vmatpush.msra.mxu0 %v1273
  %1501 = vmatpush.msra.mxu0 %v1270
  %1502 = vmatpush.msra.mxu0 %v1267
  %1503 = vmatmul.f32.gmra.mxu0 %v1321
  %v1504 = vpop.f32.mrf.mxu0
  %v1505 = vadd.f32 0.0, %v1504
  %1506 = vdwg.mxu0
  %1507 = vmatpush.msra.mxu0 %v1313
  %1508 = vmatpush.msra.mxu0 %v1310
  %1509 = vmatpush.msra.mxu0 %v1307
  %1510 = vmatpush.msra.mxu0 %v1304
  %1511 = vmatpush.msra.mxu0 %v1301
  %1512 = vmatpush.msra.mxu0 %v1298
  %1513 = vmatpush.msra.mxu0 %v1295
  %1514 = vmatpush.msra.mxu0 %v1292
  %1515 = vmatpush.msra.mxu0 %v1289
  %1516 = vmatpush.msra.mxu0 %v1286
  %1517 = vmatpush.msra.mxu0 %v1283
  %1518 = vmatpush.msra.mxu0 %v1280
  %1519 = vmatpush.msra.mxu0 %v1277
  %1520 = vmatpush.msra.mxu0 %v1274
  %1521 = vmatpush.msra.mxu0 %v1271
  %1522 = vmatpush.msra.mxu0 %v1268
  %1523 = vmatmul.f32.gmra.mxu0 %v1321
  %v1524 = vpop.f32.mrf.mxu0
  %v1525 = vadd.f32 0.0, %v1524
  %1526 = vdwg.mxu0
  %1527 = vmatpush.msra.mxu0 %v1314
  %1528 = vmatpush.msra.mxu0 %v1311
  %1529 = vmatpush.msra.mxu0 %v1308
  %1530 = vmatpush.msra.mxu0 %v1305
  %1531 = vmatpush.msra.mxu0 %v1302
  %1532 = vmatpush.msra.mxu0 %v1299
  %1533 = vmatpush.msra.mxu0 %v1296
  %1534 = vmatpush.msra.mxu0 %v1293
  %1535 = vmatpush.msra.mxu0 %v1290
  %1536 = vmatpush.msra.mxu0 %v1287
  %1537 = vmatpush.msra.mxu0 %v1284
  %1538 = vmatpush.msra.mxu0 %v1281
  %1539 = vmatpush.msra.mxu0 %v1278
  %1540 = vmatpush.msra.mxu0 %v1275
  %1541 = vmatpush.msra.mxu0 %v1272
  %1542 = vmatpush.msra.mxu0 %v1269
  %1543 = vmatmul.f32.gmra.mxu0 %v1321
  %v1544 = vpop.f32.mrf.mxu0
  %v1545 = vadd.f32 0.0, %v1544
  %1546 = vdwg.mxu0
  %v1547 = vadd.f32 %v1484, %v1505
  %v1548 = vadd.f32 %v1485, %v1525
  %v1549 = vxor.u32 %v1547, 2147483648
  %v1550 = vxor.u32 %v1548, 2147483648
  %v1551 = vmul.f32 %v1549, 1.442695
  %v1552 = vpow.pop %v1551
  %v1553 = vmul.f32 %v1550, 1.442695
  %v1554 = vpow.pop %v1553
  %v1555 = vadd.f32 %v1552, 1.0
  %v1556 = vadd.f32 %v1554, 1.0
  %v1557 = vrcp.pop %v1555
  %v1558 = vmul.f32 %v1555, %v1557
  %v1559 = vsub.f32 1.0, %v1558
  %v1560 = vmul.f32 %v1557, %v1559
  %v1561 = vadd.f32 %v1557, %v1560
  %vm1562 = vweird.f32 %v1555
  %vm1563 = vweird.f32 %v1557
  %vm1564 = vmor %vm1562, %vm1563
  %v1565 = vsel %vm1564, %v1557, %v1561
  %v1566 = vand.u32 2147483647, %v1555
  %vm1567 = vcmp.eq.f32.partialorder %v1566, 8.507059e+37
  %v1568 = vand.u32 %v1555, 2147483648
  %v1569 = vor.u32 1.1754944e-38, %v1568
  %v1570 = vsel %vm1567, %v1569, %v1565
  %v1571 = vmul.f32 1.0, %v1570
  %v1572 = vrcp.pop %v1556
  %v1573 = vmul.f32 %v1556, %v1572
  %v1574 = vsub.f32 1.0, %v1573
  %v1575 = vmul.f32 %v1572, %v1574
  %v1576 = vadd.f32 %v1572, %v1575
  %vm1577 = vweird.f32 %v1556
  %vm1578 = vweird.f32 %v1572
  %vm1579 = vmor %vm1577, %vm1578
  %v1580 = vsel %vm1579, %v1572, %v1576
  %v1581 = vand.u32 2147483647, %v1556
  %vm1582 = vcmp.eq.f32.partialorder %v1581, 8.507059e+37
  %v1583 = vand.u32 %v1556, 2147483648
  %v1584 = vor.u32 1.1754944e-38, %v1583
  %v1585 = vsel %vm1582, %v1584, %v1580
  %v1586 = vmul.f32 1.0, %v1585
  %v1587 = vadd.f32 %v1545, %v1318
  %v1588 = vmul.f32 %v1571, %v1587
  %v1589 = vadd.f32 %v1486, %v1588
  %v1590 = vtanh.pop %v1589
  %v1591 = vsub.f32 %v1321, %v1590
  %v1592 = vmul.f32 %v1586, %v1591
  %v1593 = vadd.f32 %v1590, %v1592
  %v1594 = vld [vmem:[%s415] sm:$0xff]
  %v1595 = vld [vmem:[%s415 + $0x8] sm:$0xff]
  %v1596 = vld [vmem:[%s415 + $0x10] sm:$0xff]
  %1597 = vmatpush.msra.mxu0 %v1312
  %1598 = vmatpush.msra.mxu0 %v1309
  %1599 = vmatpush.msra.mxu0 %v1306
  %1600 = vmatpush.msra.mxu0 %v1303
  %1601 = vmatpush.msra.mxu0 %v1300
  %1602 = vmatpush.msra.mxu0 %v1297
  %1603 = vmatpush.msra.mxu0 %v1294
  %1604 = vmatpush.msra.mxu0 %v1291
  %1605 = vmatpush.msra.mxu0 %v1288
  %1606 = vmatpush.msra.mxu0 %v1285
  %1607 = vmatpush.msra.mxu0 %v1282
  %1608 = vmatpush.msra.mxu0 %v1279
  %1609 = vmatpush.msra.mxu0 %v1276
  %1610 = vmatpush.msra.mxu0 %v1273
  %1611 = vmatpush.msra.mxu0 %v1270
  %1612 = vmatpush.msra.mxu0 %v1267
  %1613 = vmatmul.f32.gmra.mxu0 %v1593
  %v1614 = vpop.f32.mrf.mxu0
  %v1615 = vadd.f32 0.0, %v1614
  %1616 = vdwg.mxu0
  %1617 = vmatpush.msra.mxu0 %v1313
  %1618 = vmatpush.msra.mxu0 %v1310
  %1619 = vmatpush.msra.mxu0 %v1307
  %1620 = vmatpush.msra.mxu0 %v1304
  %1621 = vmatpush.msra.mxu0 %v1301
  %1622 = vmatpush.msra.mxu0 %v1298
  %1623 = vmatpush.msra.mxu0 %v1295
  %1624 = vmatpush.msra.mxu0 %v1292
  %1625 = vmatpush.msra.mxu0 %v1289
  %1626 = vmatpush.msra.mxu0 %v1286
  %1627 = vmatpush.msra.mxu0 %v1283
  %1628 = vmatpush.msra.mxu0 %v1280
  %1629 = vmatpush.msra.mxu0 %v1277
  %1630 = vmatpush.msra.mxu0 %v1274
  %1631 = vmatpush.msra.mxu0 %v1271
  %1632 = vmatpush.msra.mxu0 %v1268
  %1633 = vmatmul.f32.gmra.mxu0 %v1593
  %v1634 = vpop.f32.mrf.mxu0
  %v1635 = vadd.f32 0.0, %v1634
  %1636 = vdwg.mxu0
  %1637 = vmatpush.msra.mxu0 %v1314
  %1638 = vmatpush.msra.mxu0 %v1311
  %1639 = vmatpush.msra.mxu0 %v1308
  %1640 = vmatpush.msra.mxu0 %v1305
  %1641 = vmatpush.msra.mxu0 %v1302
  %1642 = vmatpush.msra.mxu0 %v1299
  %1643 = vmatpush.msra.mxu0 %v1296
  %1644 = vmatpush.msra.mxu0 %v1293
  %1645 = vmatpush.msra.mxu0 %v1290
  %1646 = vmatpush.msra.mxu0 %v1287
  %1647 = vmatpush.msra.mxu0 %v1284
  %1648 = vmatpush.msra.mxu0 %v1281
  %1649 = vmatpush.msra.mxu0 %v1278
  %1650 = vmatpush.msra.mxu0 %v1275
  %1651 = vmatpush.msra.mxu0 %v1272
  %1652 = vmatpush.msra.mxu0 %v1269
  %1653 = vmatmul.f32.gmra.mxu0 %v1593
  %v1654 = vpop.f32.mrf.mxu0
  %v1655 = vadd.f32 0.0, %v1654
  %1656 = vdwg.mxu0
  %v1657 = vadd.f32 %v1594, %v1615
  %v1658 = vadd.f32 %v1595, %v1635
  %v1659 = vxor.u32 %v1657, 2147483648
  %v1660 = vxor.u32 %v1658, 2147483648
  %v1661 = vmul.f32 %v1659, 1.442695
  %v1662 = vpow.pop %v1661
  %v1663 = vmul.f32 %v1660, 1.442695
  %v1664 = vpow.pop %v1663
  %v1665 = vadd.f32 %v1662, 1.0
  %v1666 = vadd.f32 %v1664, 1.0
  %v1667 = vrcp.pop %v1665
  %v1668 = vmul.f32 %v1665, %v1667
  %v1669 = vsub.f32 1.0, %v1668
  %v1670 = vmul.f32 %v1667, %v1669
  %v1671 = vadd.f32 %v1667, %v1670
  %vm1672 = vweird.f32 %v1665
  %vm1673 = vweird.f32 %v1667
  %vm1674 = vmor %vm1672, %vm1673
  %v1675 = vsel %vm1674, %v1667, %v1671
  %v1676 = vand.u32 2147483647, %v1665
  %vm1677 = vcmp.eq.f32.partialorder %v1676, 8.507059e+37
  %v1678 = vand.u32 %v1665, 2147483648
  %v1679 = vor.u32 1.1754944e-38, %v1678
  %v1680 = vsel %vm1677, %v1679, %v1675
  %v1681 = vmul.f32 1.0, %v1680
  %v1682 = vrcp.pop %v1666
  %v1683 = vmul.f32 %v1666, %v1682
  %v1684 = vsub.f32 1.0, %v1683
  %v1685 = vmul.f32 %v1682, %v1684
  %v1686 = vadd.f32 %v1682, %v1685
  %vm1687 = vweird.f32 %v1666
  %vm1688 = vweird.f32 %v1682
  %vm1689 = vmor %vm1687, %vm1688
  %v1690 = vsel %vm1689, %v1682, %v1686
  %v1691 = vand.u32 2147483647, %v1666
  %vm1692 = vcmp.eq.f32.partialorder %v1691, 8.507059e+37
  %v1693 = vand.u32 %v1666, 2147483648
  %v1694 = vor.u32 1.1754944e-38, %v1693
  %v1695 = vsel %vm1692, %v1694, %v1690
  %v1696 = vmul.f32 1.0, %v1695
  %v1697 = vadd.f32 %v1655, %v1318
  %v1698 = vmul.f32 %v1681, %v1697
  %v1699 = vadd.f32 %v1596, %v1698
  %v1700 = vtanh.pop %v1699
  %v1701 = vsub.f32 %v1593, %v1700
  %v1702 = vmul.f32 %v1696, %v1701
  %v1703 = vadd.f32 %v1700, %v1702
  %v1704 = vld [vmem:[%s530] sm:$0xff]
  %v1705 = vld [vmem:[%s530 + $0x8] sm:$0xff]
  %v1706 = vld [vmem:[%s530 + $0x10] sm:$0xff]
  %1707 = vmatpush.msra.mxu0 %v1312
  %1708 = vmatpush.msra.mxu0 %v1309
  %1709 = vmatpush.msra.mxu0 %v1306
  %1710 = vmatpush.msra.mxu0 %v1303
  %1711 = vmatpush.msra.mxu0 %v1300
  %1712 = vmatpush.msra.mxu0 %v1297
  %1713 = vmatpush.msra.mxu0 %v1294
  %1714 = vmatpush.msra.mxu0 %v1291
  %1715 = vmatpush.msra.mxu0 %v1288
  %1716 = vmatpush.msra.mxu0 %v1285
  %1717 = vmatpush.msra.mxu0 %v1282
  %1718 = vmatpush.msra.mxu0 %v1279
  %1719 = vmatpush.msra.mxu0 %v1276
  %1720 = vmatpush.msra.mxu0 %v1273
  %1721 = vmatpush.msra.mxu0 %v1270
  %1722 = vmatpush.msra.mxu0 %v1267
  %1723 = vmatmul.f32.gmra.mxu0 %v1703
  %v1724 = vpop.f32.mrf.mxu0
  %v1725 = vadd.f32 0.0, %v1724
  %1726 = vdwg.mxu0
  %1727 = vmatpush.msra.mxu0 %v1313
  %1728 = vmatpush.msra.mxu0 %v1310
  %1729 = vmatpush.msra.mxu0 %v1307
  %1730 = vmatpush.msra.mxu0 %v1304
  %1731 = vmatpush.msra.mxu0 %v1301
  %1732 = vmatpush.msra.mxu0 %v1298
  %1733 = vmatpush.msra.mxu0 %v1295
  %1734 = vmatpush.msra.mxu0 %v1292
  %1735 = vmatpush.msra.mxu0 %v1289
  %1736 = vmatpush.msra.mxu0 %v1286
  %1737 = vmatpush.msra.mxu0 %v1283
  %1738 = vmatpush.msra.mxu0 %v1280
  %1739 = vmatpush.msra.mxu0 %v1277
  %1740 = vmatpush.msra.mxu0 %v1274
  %1741 = vmatpush.msra.mxu0 %v1271
  %1742 = vmatpush.msra.mxu0 %v1268
  %1743 = vmatmul.f32.gmra.mxu0 %v1703
  %v1744 = vpop.f32.mrf.mxu0
  %v1745 = vadd.f32 0.0, %v1744
  %1746 = vdwg.mxu0
  %1747 = vmatpush.msra.mxu0 %v1314
  %1748 = vmatpush.msra.mxu0 %v1311
  %1749 = vmatpush.msra.mxu0 %v1308
  %1750 = vmatpush.msra.mxu0 %v1305
  %1751 = vmatpush.msra.mxu0 %v1302
  %1752 = vmatpush.msra.mxu0 %v1299
  %1753 = vmatpush.msra.mxu0 %v1296
  %1754 = vmatpush.msra.mxu0 %v1293
  %1755 = vmatpush.msra.mxu0 %v1290
  %1756 = vmatpush.msra.mxu0 %v1287
  %1757 = vmatpush.msra.mxu0 %v1284
  %1758 = vmatpush.msra.mxu0 %v1281
  %1759 = vmatpush.msra.mxu0 %v1278
  %1760 = vmatpush.msra.mxu0 %v1275
  %1761 = vmatpush.msra.mxu0 %v1272
  %1762 = vmatpush.msra.mxu0 %v1269
  %1763 = vmatmul.f32.gmra.mxu0 %v1703
  %v1764 = vpop.f32.mrf.mxu0
  %v1765 = vadd.f32 0.0, %v1764
  %1766 = vdwg.mxu0
  %v1767 = vadd.f32 %v1704, %v1725
  %v1768 = vadd.f32 %v1705, %v1745
  %v1769 = vxor.u32 %v1767, 2147483648
  %v1770 = vxor.u32 %v1768, 2147483648
  %v1771 = vmul.f32 %v1769, 1.442695
  %v1772 = vpow.pop %v1771
  %v1773 = vmul.f32 %v1770, 1.442695
  %v1774 = vpow.pop %v1773
  %v1775 = vadd.f32 %v1772, 1.0
  %v1776 = vadd.f32 %v1774, 1.0
  %v1777 = vrcp.pop %v1775
  %v1778 = vmul.f32 %v1775, %v1777
  %v1779 = vsub.f32 1.0, %v1778
  %v1780 = vmul.f32 %v1777, %v1779
  %v1781 = vadd.f32 %v1777, %v1780
  %vm1782 = vweird.f32 %v1775
  %vm1783 = vweird.f32 %v1777
  %vm1784 = vmor %vm1782, %vm1783
  %v1785 = vsel %vm1784, %v1777, %v1781
  %v1786 = vand.u32 2147483647, %v1775
  %vm1787 = vcmp.eq.f32.partialorder %v1786, 8.507059e+37
  %v1788 = vand.u32 %v1775, 2147483648
  %v1789 = vor.u32 1.1754944e-38, %v1788
  %v1790 = vsel %vm1787, %v1789, %v1785
  %v1791 = vmul.f32 1.0, %v1790
  %v1792 = vrcp.pop %v1776
  %v1793 = vmul.f32 %v1776, %v1792
  %v1794 = vsub.f32 1.0, %v1793
  %v1795 = vmul.f32 %v1792, %v1794
  %v1796 = vadd.f32 %v1792, %v1795
  %vm1797 = vweird.f32 %v1776
  %vm1798 = vweird.f32 %v1792
  %vm1799 = vmor %vm1797, %vm1798
  %v1800 = vsel %vm1799, %v1792, %v1796
  %v1801 = vand.u32 2147483647, %v1776
  %vm1802 = vcmp.eq.f32.partialorder %v1801, 8.507059e+37
  %v1803 = vand.u32 %v1776, 2147483648
  %v1804 = vor.u32 1.1754944e-38, %v1803
  %v1805 = vsel %vm1802, %v1804, %v1800
  %v1806 = vmul.f32 1.0, %v1805
  %v1807 = vadd.f32 %v1765, %v1318
  %v1808 = vmul.f32 %v1791, %v1807
  %v1809 = vadd.f32 %v1706, %v1808
  %v1810 = vtanh.pop %v1809
  %v1811 = vsub.f32 %v1703, %v1810
  %v1812 = vmul.f32 %v1806, %v1811
  %v1813 = vadd.f32 %v1810, %v1812
  %v1814 = vld [vmem:[%s645] sm:$0xff]
  %v1815 = vld [vmem:[%s645 + $0x8] sm:$0xff]
  %v1816 = vld [vmem:[%s645 + $0x10] sm:$0xff]
  %1817 = vmatpush.msra.mxu0 %v1312
  %1818 = vmatpush.msra.mxu0 %v1309
  %1819 = vmatpush.msra.mxu0 %v1306
  %1820 = vmatpush.msra.mxu0 %v1303
  %1821 = vmatpush.msra.mxu0 %v1300
  %1822 = vmatpush.msra.mxu0 %v1297
  %1823 = vmatpush.msra.mxu0 %v1294
  %1824 = vmatpush.msra.mxu0 %v1291
  %1825 = vmatpush.msra.mxu0 %v1288
  %1826 = vmatpush.msra.mxu0 %v1285
  %1827 = vmatpush.msra.mxu0 %v1282
  %1828 = vmatpush.msra.mxu0 %v1279
  %1829 = vmatpush.msra.mxu0 %v1276
  %1830 = vmatpush.msra.mxu0 %v1273
  %1831 = vmatpush.msra.mxu0 %v1270
  %1832 = vmatpush.msra.mxu0 %v1267
  %1833 = vmatmul.f32.gmra.mxu0 %v1813
  %v1834 = vpop.f32.mrf.mxu0
  %v1835 = vadd.f32 0.0, %v1834
  %1836 = vdwg.mxu0
  %1837 = vmatpush.msra.mxu0 %v1313
  %1838 = vmatpush.msra.mxu0 %v1310
  %1839 = vmatpush.msra.mxu0 %v1307
  %1840 = vmatpush.msra.mxu0 %v1304
  %1841 = vmatpush.msra.mxu0 %v1301
  %1842 = vmatpush.msra.mxu0 %v1298
  %1843 = vmatpush.msra.mxu0 %v1295
  %1844 = vmatpush.msra.mxu0 %v1292
  %1845 = vmatpush.msra.mxu0 %v1289
  %1846 = vmatpush.msra.mxu0 %v1286
  %1847 = vmatpush.msra.mxu0 %v1283
  %1848 = vmatpush.msra.mxu0 %v1280
  %1849 = vmatpush.msra.mxu0 %v1277
  %1850 = vmatpush.msra.mxu0 %v1274
  %1851 = vmatpush.msra.mxu0 %v1271
  %1852 = vmatpush.msra.mxu0 %v1268
  %1853 = vmatmul.f32.gmra.mxu0 %v1813
  %v1854 = vpop.f32.mrf.mxu0
  %v1855 = vadd.f32 0.0, %v1854
  %1856 = vdwg.mxu0
  %1857 = vmatpush.msra.mxu0 %v1314
  %1858 = vmatpush.msra.mxu0 %v1311
  %1859 = vmatpush.msra.mxu0 %v1308
  %1860 = vmatpush.msra.mxu0 %v1305
  %1861 = vmatpush.msra.mxu0 %v1302
  %1862 = vmatpush.msra.mxu0 %v1299
  %1863 = vmatpush.msra.mxu0 %v1296
  %1864 = vmatpush.msra.mxu0 %v1293
  %1865 = vmatpush.msra.mxu0 %v1290
  %1866 = vmatpush.msra.mxu0 %v1287
  %1867 = vmatpush.msra.mxu0 %v1284
  %1868 = vmatpush.msra.mxu0 %v1281
  %1869 = vmatpush.msra.mxu0 %v1278
  %1870 = vmatpush.msra.mxu0 %v1275
  %1871 = vmatpush.msra.mxu0 %v1272
  %1872 = vmatpush.msra.mxu0 %v1269
  %1873 = vmatmul.f32.gmra.mxu0 %v1813
  %v1874 = vpop.f32.mrf.mxu0
  %v1875 = vadd.f32 0.0, %v1874
  %1876 = vdwg.mxu0
  %v1877 = vadd.f32 %v1814, %v1835
  %v1878 = vadd.f32 %v1815, %v1855
  %v1879 = vxor.u32 %v1877, 2147483648
  %v1880 = vxor.u32 %v1878, 2147483648
  %v1881 = vmul.f32 %v1879, 1.442695
  %v1882 = vpow.pop %v1881
  %v1883 = vmul.f32 %v1880, 1.442695
  %v1884 = vpow.pop %v1883
  %v1885 = vadd.f32 %v1882, 1.0
  %v1886 = vadd.f32 %v1884, 1.0
  %v1887 = vrcp.pop %v1885
  %v1888 = vmul.f32 %v1885, %v1887
  %v1889 = vsub.f32 1.0, %v1888
  %v1890 = vmul.f32 %v1887, %v1889
  %v1891 = vadd.f32 %v1887, %v1890
  %vm1892 = vweird.f32 %v1885
  %vm1893 = vweird.f32 %v1887
  %vm1894 = vmor %vm1892, %vm1893
  %v1895 = vsel %vm1894, %v1887, %v1891
  %v1896 = vand.u32 2147483647, %v1885
  %vm1897 = vcmp.eq.f32.partialorder %v1896, 8.507059e+37
  %v1898 = vand.u32 %v1885, 2147483648
  %v1899 = vor.u32 1.1754944e-38, %v1898
  %v1900 = vsel %vm1897, %v1899, %v1895
  %v1901 = vmul.f32 1.0, %v1900
  %v1902 = vrcp.pop %v1886
  %v1903 = vmul.f32 %v1886, %v1902
  %v1904 = vsub.f32 1.0, %v1903
  %v1905 = vmul.f32 %v1902, %v1904
  %v1906 = vadd.f32 %v1902, %v1905
  %vm1907 = vweird.f32 %v1886
  %vm1908 = vweird.f32 %v1902
  %vm1909 = vmor %vm1907, %vm1908
  %v1910 = vsel %vm1909, %v1902, %v1906
  %v1911 = vand.u32 2147483647, %v1886
  %vm1912 = vcmp.eq.f32.partialorder %v1911, 8.507059e+37
  %v1913 = vand.u32 %v1886, 2147483648
  %v1914 = vor.u32 1.1754944e-38, %v1913
  %v1915 = vsel %vm1912, %v1914, %v1910
  %v1916 = vmul.f32 1.0, %v1915
  %v1917 = vadd.f32 %v1875, %v1318
  %v1918 = vmul.f32 %v1901, %v1917
  %v1919 = vadd.f32 %v1816, %v1918
  %v1920 = vtanh.pop %v1919
  %v1921 = vsub.f32 %v1813, %v1920
  %v1922 = vmul.f32 %v1916, %v1921
  %v1923 = vadd.f32 %v1920, %v1922
  %v1924 = vld [vmem:[%s760] sm:$0xff]
  %v1925 = vld [vmem:[%s760 + $0x8] sm:$0xff]
  %v1926 = vld [vmem:[%s760 + $0x10] sm:$0xff]
  %1927 = vmatpush.msra.mxu0 %v1312
  %1928 = vmatpush.msra.mxu0 %v1309
  %1929 = vmatpush.msra.mxu0 %v1306
  %1930 = vmatpush.msra.mxu0 %v1303
  %1931 = vmatpush.msra.mxu0 %v1300
  %1932 = vmatpush.msra.mxu0 %v1297
  %1933 = vmatpush.msra.mxu0 %v1294
  %1934 = vmatpush.msra.mxu0 %v1291
  %1935 = vmatpush.msra.mxu0 %v1288
  %1936 = vmatpush.msra.mxu0 %v1285
  %1937 = vmatpush.msra.mxu0 %v1282
  %1938 = vmatpush.msra.mxu0 %v1279
  %1939 = vmatpush.msra.mxu0 %v1276
  %1940 = vmatpush.msra.mxu0 %v1273
  %1941 = vmatpush.msra.mxu0 %v1270
  %1942 = vmatpush.msra.mxu0 %v1267
  %1943 = vmatmul.f32.gmra.mxu0 %v1923
  %v1944 = vpop.f32.mrf.mxu0
  %v1945 = vadd.f32 0.0, %v1944
  %1946 = vdwg.mxu0
  %1947 = vmatpush.msra.mxu0 %v1313
  %1948 = vmatpush.msra.mxu0 %v1310
  %1949 = vmatpush.msra.mxu0 %v1307
  %1950 = vmatpush.msra.mxu0 %v1304
  %1951 = vmatpush.msra.mxu0 %v1301
  %1952 = vmatpush.msra.mxu0 %v1298
  %1953 = vmatpush.msra.mxu0 %v1295
  %1954 = vmatpush.msra.mxu0 %v1292
  %1955 = vmatpush.msra.mxu0 %v1289
  %1956 = vmatpush.msra.mxu0 %v1286
  %1957 = vmatpush.msra.mxu0 %v1283
  %1958 = vmatpush.msra.mxu0 %v1280
  %1959 = vmatpush.msra.mxu0 %v1277
  %1960 = vmatpush.msra.mxu0 %v1274
  %1961 = vmatpush.msra.mxu0 %v1271
  %1962 = vmatpush.msra.mxu0 %v1268
  %1963 = vmatmul.f32.gmra.mxu0 %v1923
  %v1964 = vpop.f32.mrf.mxu0
  %v1965 = vadd.f32 0.0, %v1964
  %1966 = vdwg.mxu0
  %1967 = vmatpush.msra.mxu0 %v1314
  %1968 = vmatpush.msra.mxu0 %v1311
  %1969 = vmatpush.msra.mxu0 %v1308
  %1970 = vmatpush.msra.mxu0 %v1305
  %1971 = vmatpush.msra.mxu0 %v1302
  %1972 = vmatpush.msra.mxu0 %v1299
  %1973 = vmatpush.msra.mxu0 %v1296
  %1974 = vmatpush.msra.mxu0 %v1293
  %1975 = vmatpush.msra.mxu0 %v1290
  %1976 = vmatpush.msra.mxu0 %v1287
  %1977 = vmatpush.msra.mxu0 %v1284
  %1978 = vmatpush.msra.mxu0 %v1281
  %1979 = vmatpush.msra.mxu0 %v1278
  %1980 = vmatpush.msra.mxu0 %v1275
  %1981 = vmatpush.msra.mxu0 %v1272
  %1982 = vmatpush.msra.mxu0 %v1269
  %1983 = vmatmul.f32.gmra.mxu0 %v1923
  %v1984 = vpop.f32.mrf.mxu0
  %v1985 = vadd.f32 0.0, %v1984
  %1986 = vdwg.mxu0
  %v1987 = vadd.f32 %v1924, %v1945
  %v1988 = vadd.f32 %v1925, %v1965
  %v1989 = vxor.u32 %v1987, 2147483648
  %v1990 = vxor.u32 %v1988, 2147483648
  %v1991 = vmul.f32 %v1989, 1.442695
  %v1992 = vpow.pop %v1991
  %v1993 = vmul.f32 %v1990, 1.442695
  %v1994 = vpow.pop %v1993
  %v1995 = vadd.f32 %v1992, 1.0
  %v1996 = vadd.f32 %v1994, 1.0
  %v1997 = vrcp.pop %v1995
  %v1998 = vmul.f32 %v1995, %v1997
  %v1999 = vsub.f32 1.0, %v1998
  %v2000 = vmul.f32 %v1997, %v1999
  %v2001 = vadd.f32 %v1997, %v2000
  %vm2002 = vweird.f32 %v1995
  %vm2003 = vweird.f32 %v1997
  %vm2004 = vmor %vm2002, %vm2003
  %v2005 = vsel %vm2004, %v1997, %v2001
  %v2006 = vand.u32 2147483647, %v1995
  %vm2007 = vcmp.eq.f32.partialorder %v2006, 8.507059e+37
  %v2008 = vand.u32 %v1995, 2147483648
  %v2009 = vor.u32 1.1754944e-38, %v2008
  %v2010 = vsel %vm2007, %v2009, %v2005
  %v2011 = vmul.f32 1.0, %v2010
  %v2012 = vrcp.pop %v1996
  %v2013 = vmul.f32 %v1996, %v2012
  %v2014 = vsub.f32 1.0, %v2013
  %v2015 = vmul.f32 %v2012, %v2014
  %v2016 = vadd.f32 %v2012, %v2015
  %vm2017 = vweird.f32 %v1996
  %vm2018 = vweird.f32 %v2012
  %vm2019 = vmor %vm2017, %vm2018
  %v2020 = vsel %vm2019, %v2012, %v2016
  %v2021 = vand.u32 2147483647, %v1996
  %vm2022 = vcmp.eq.f32.partialorder %v2021, 8.507059e+37
  %v2023 = vand.u32 %v1996, 2147483648
  %v2024 = vor.u32 1.1754944e-38, %v2023
  %v2025 = vsel %vm2022, %v2024, %v2020
  %v2026 = vmul.f32 1.0, %v2025
  %v2027 = vadd.f32 %v1985, %v1318
  %v2028 = vmul.f32 %v2011, %v2027
  %v2029 = vadd.f32 %v1926, %v2028
  %v2030 = vtanh.pop %v2029
  %v2031 = vsub.f32 %v1923, %v2030
  %v2032 = vmul.f32 %v2026, %v2031
  %v2033 = vadd.f32 %v2030, %v2032
  %v2034 = vld [vmem:[%s875] sm:$0xff]
  %v2035 = vld [vmem:[%s875 + $0x8] sm:$0xff]
  %v2036 = vld [vmem:[%s875 + $0x10] sm:$0xff]
  %2037 = vmatpush.msra.mxu0 %v1312
  %2038 = vmatpush.msra.mxu0 %v1309
  %2039 = vmatpush.msra.mxu0 %v1306
  %2040 = vmatpush.msra.mxu0 %v1303
  %2041 = vmatpush.msra.mxu0 %v1300
  %2042 = vmatpush.msra.mxu0 %v1297
  %2043 = vmatpush.msra.mxu0 %v1294
  %2044 = vmatpush.msra.mxu0 %v1291
  %2045 = vmatpush.msra.mxu0 %v1288
  %2046 = vmatpush.msra.mxu0 %v1285
  %2047 = vmatpush.msra.mxu0 %v1282
  %2048 = vmatpush.msra.mxu0 %v1279
  %2049 = vmatpush.msra.mxu0 %v1276
  %2050 = vmatpush.msra.mxu0 %v1273
  %2051 = vmatpush.msra.mxu0 %v1270
  %2052 = vmatpush.msra.mxu0 %v1267
  %2053 = vmatmul.f32.gmra.mxu0 %v2033
  %v2054 = vpop.f32.mrf.mxu0
  %v2055 = vadd.f32 0.0, %v2054
  %2056 = vdwg.mxu0
  %2057 = vmatpush.msra.mxu0 %v1313
  %2058 = vmatpush.msra.mxu0 %v1310
  %2059 = vmatpush.msra.mxu0 %v1307
  %2060 = vmatpush.msra.mxu0 %v1304
  %2061 = vmatpush.msra.mxu0 %v1301
  %2062 = vmatpush.msra.mxu0 %v1298
  %2063 = vmatpush.msra.mxu0 %v1295
  %2064 = vmatpush.msra.mxu0 %v1292
  %2065 = vmatpush.msra.mxu0 %v1289
  %2066 = vmatpush.msra.mxu0 %v1286
  %2067 = vmatpush.msra.mxu0 %v1283
  %2068 = vmatpush.msra.mxu0 %v1280
  %2069 = vmatpush.msra.mxu0 %v1277
  %2070 = vmatpush.msra.mxu0 %v1274
  %2071 = vmatpush.msra.mxu0 %v1271
  %2072 = vmatpush.msra.mxu0 %v1268
  %2073 = vmatmul.f32.gmra.mxu0 %v2033
  %v2074 = vpop.f32.mrf.mxu0
  %v2075 = vadd.f32 0.0, %v2074
  %2076 = vdwg.mxu0
  %2077 = vmatpush.msra.mxu0 %v1314
  %2078 = vmatpush.msra.mxu0 %v1311
  %2079 = vmatpush.msra.mxu0 %v1308
  %2080 = vmatpush.msra.mxu0 %v1305
  %2081 = vmatpush.msra.mxu0 %v1302
  %2082 = vmatpush.msra.mxu0 %v1299
  %2083 = vmatpush.msra.mxu0 %v1296
  %2084 = vmatpush.msra.mxu0 %v1293
  %2085 = vmatpush.msra.mxu0 %v1290
  %2086 = vmatpush.msra.mxu0 %v1287
  %2087 = vmatpush.msra.mxu0 %v1284
  %2088 = vmatpush.msra.mxu0 %v1281
  %2089 = vmatpush.msra.mxu0 %v1278
  %2090 = vmatpush.msra.mxu0 %v1275
  %2091 = vmatpush.msra.mxu0 %v1272
  %2092 = vmatpush.msra.mxu0 %v1269
  %2093 = vmatmul.f32.gmra.mxu0 %v2033
  %v2094 = vpop.f32.mrf.mxu0
  %v2095 = vadd.f32 0.0, %v2094
  %2096 = vdwg.mxu0
  %v2097 = vadd.f32 %v2034, %v2055
  %v2098 = vadd.f32 %v2035, %v2075
  %v2099 = vxor.u32 %v2097, 2147483648
  %v2100 = vxor.u32 %v2098, 2147483648
  %v2101 = vmul.f32 %v2099, 1.442695
  %v2102 = vpow.pop %v2101
  %v2103 = vmul.f32 %v2100, 1.442695
  %v2104 = vpow.pop %v2103
  %v2105 = vadd.f32 %v2102, 1.0
  %v2106 = vadd.f32 %v2104, 1.0
  %v2107 = vrcp.pop %v2105
  %v2108 = vmul.f32 %v2105, %v2107
  %v2109 = vsub.f32 1.0, %v2108
  %v2110 = vmul.f32 %v2107, %v2109
  %v2111 = vadd.f32 %v2107, %v2110
  %vm2112 = vweird.f32 %v2105
  %vm2113 = vweird.f32 %v2107
  %vm2114 = vmor %vm2112, %vm2113
  %v2115 = vsel %vm2114, %v2107, %v2111
  %v2116 = vand.u32 2147483647, %v2105
  %vm2117 = vcmp.eq.f32.partialorder %v2116, 8.507059e+37
  %v2118 = vand.u32 %v2105, 2147483648
  %v2119 = vor.u32 1.1754944e-38, %v2118
  %v2120 = vsel %vm2117, %v2119, %v2115
  %v2121 = vmul.f32 1.0, %v2120
  %v2122 = vrcp.pop %v2106
  %v2123 = vmul.f32 %v2106, %v2122
  %v2124 = vsub.f32 1.0, %v2123
  %v2125 = vmul.f32 %v2122, %v2124
  %v2126 = vadd.f32 %v2122, %v2125
  %vm2127 = vweird.f32 %v2106
  %vm2128 = vweird.f32 %v2122
  %vm2129 = vmor %vm2127, %vm2128
  %v2130 = vsel %vm2129, %v2122, %v2126
  %v2131 = vand.u32 2147483647, %v2106
  %vm2132 = vcmp.eq.f32.partialorder %v2131, 8.507059e+37
  %v2133 = vand.u32 %v2106, 2147483648
  %v2134 = vor.u32 1.1754944e-38, %v2133
  %v2135 = vsel %vm2132, %v2134, %v2130
  %v2136 = vmul.f32 1.0, %v2135
  %v2137 = vadd.f32 %v2095, %v1318
  %v2138 = vmul.f32 %v2121, %v2137
  %v2139 = vadd.f32 %v2036, %v2138
  %v2140 = vtanh.pop %v2139
  %v2141 = vsub.f32 %v2033, %v2140
  %v2142 = vmul.f32 %v2136, %v2141
  %v2143 = vadd.f32 %v2140, %v2142
  %v2144 = vld [vmem:[%s990] sm:$0xff]
  %v2145 = vld [vmem:[%s990 + $0x8] sm:$0xff]
  %v2146 = vld [vmem:[%s990 + $0x10] sm:$0xff]
  %2147 = vmatpush.msra.mxu0 %v1312
  %2148 = vmatpush.msra.mxu0 %v1309
  %2149 = vmatpush.msra.mxu0 %v1306
  %2150 = vmatpush.msra.mxu0 %v1303
  %2151 = vmatpush.msra.mxu0 %v1300
  %2152 = vmatpush.msra.mxu0 %v1297
  %2153 = vmatpush.msra.mxu0 %v1294
  %2154 = vmatpush.msra.mxu0 %v1291
  %2155 = vmatpush.msra.mxu0 %v1288
  %2156 = vmatpush.msra.mxu0 %v1285
  %2157 = vmatpush.msra.mxu0 %v1282
  %2158 = vmatpush.msra.mxu0 %v1279
  %2159 = vmatpush.msra.mxu0 %v1276
  %2160 = vmatpush.msra.mxu0 %v1273
  %2161 = vmatpush.msra.mxu0 %v1270
  %2162 = vmatpush.msra.mxu0 %v1267
  %2163 = vmatmul.f32.gmra.mxu0 %v2143
  %v2164 = vpop.f32.mrf.mxu0
  %v2165 = vadd.f32 0.0, %v2164
  %2166 = vdwg.mxu0
  %2167 = vmatpush.msra.mxu0 %v1313
  %2168 = vmatpush.msra.mxu0 %v1310
  %2169 = vmatpush.msra.mxu0 %v1307
  %2170 = vmatpush.msra.mxu0 %v1304
  %2171 = vmatpush.msra.mxu0 %v1301
  %2172 = vmatpush.msra.mxu0 %v1298
  %2173 = vmatpush.msra.mxu0 %v1295
  %2174 = vmatpush.msra.mxu0 %v1292
  %2175 = vmatpush.msra.mxu0 %v1289
  %2176 = vmatpush.msra.mxu0 %v1286
  %2177 = vmatpush.msra.mxu0 %v1283
  %2178 = vmatpush.msra.mxu0 %v1280
  %2179 = vmatpush.msra.mxu0 %v1277
  %2180 = vmatpush.msra.mxu0 %v1274
  %2181 = vmatpush.msra.mxu0 %v1271
  %2182 = vmatpush.msra.mxu0 %v1268
  %2183 = vmatmul.f32.gmra.mxu0 %v2143
  %v2184 = vpop.f32.mrf.mxu0
  %v2185 = vadd.f32 0.0, %v2184
  %2186 = vdwg.mxu0
  %2187 = vmatpush.msra.mxu0 %v1314
  %2188 = vmatpush.msra.mxu0 %v1311
  %2189 = vmatpush.msra.mxu0 %v1308
  %2190 = vmatpush.msra.mxu0 %v1305
  %2191 = vmatpush.msra.mxu0 %v1302
  %2192 = vmatpush.msra.mxu0 %v1299
  %2193 = vmatpush.msra.mxu0 %v1296
  %2194 = vmatpush.msra.mxu0 %v1293
  %2195 = vmatpush.msra.mxu0 %v1290
  %2196 = vmatpush.msra.mxu0 %v1287
  %2197 = vmatpush.msra.mxu0 %v1284
  %2198 = vmatpush.msra.mxu0 %v1281
  %2199 = vmatpush.msra.mxu0 %v1278
  %2200 = vmatpush.msra.mxu0 %v1275
  %2201 = vmatpush.msra.mxu0 %v1272
  %2202 = vmatpush.msra.mxu0 %v1269
  %2203 = vmatmul.f32.gmra.mxu0 %v2143
  %v2204 = vpop.f32.mrf.mxu0
  %v2205 = vadd.f32 0.0, %v2204
  %2206 = vdwg.mxu0
  %v2207 = vadd.f32 %v2144, %v2165
  %v2208 = vadd.f32 %v2145, %v2185
  %v2209 = vxor.u32 %v2207, 2147483648
  %v2210 = vxor.u32 %v2208, 2147483648
  %v2211 = vmul.f32 %v2209, 1.442695
  %v2212 = vpow.pop %v2211
  %v2213 = vmul.f32 %v2210, 1.442695
  %v2214 = vpow.pop %v2213
  %v2215 = vadd.f32 %v2212, 1.0
  %v2216 = vadd.f32 %v2214, 1.0
  %v2217 = vrcp.pop %v2215
  %v2218 = vmul.f32 %v2215, %v2217
  %v2219 = vsub.f32 1.0, %v2218
  %v2220 = vmul.f32 %v2217, %v2219
  %v2221 = vadd.f32 %v2217, %v2220
  %vm2222 = vweird.f32 %v2215
  %vm2223 = vweird.f32 %v2217
  %vm2224 = vmor %vm2222, %vm2223
  %v2225 = vsel %vm2224, %v2217, %v2221
  %v2226 = vand.u32 2147483647, %v2215
  %vm2227 = vcmp.eq.f32.partialorder %v2226, 8.507059e+37
  %v2228 = vand.u32 %v2215, 2147483648
  %v2229 = vor.u32 1.1754944e-38, %v2228
  %v2230 = vsel %vm2227, %v2229, %v2225
  %v2231 = vmul.f32 1.0, %v2230
  %v2232 = vrcp.pop %v2216
  %v2233 = vmul.f32 %v2216, %v2232
  %v2234 = vsub.f32 1.0, %v2233
  %v2235 = vmul.f32 %v2232, %v2234
  %v2236 = vadd.f32 %v2232, %v2235
  %vm2237 = vweird.f32 %v2216
  %vm2238 = vweird.f32 %v2232
  %vm2239 = vmor %vm2237, %vm2238
  %v2240 = vsel %vm2239, %v2232, %v2236
  %v2241 = vand.u32 2147483647, %v2216
  %vm2242 = vcmp.eq.f32.partialorder %v2241, 8.507059e+37
  %v2243 = vand.u32 %v2216, 2147483648
  %v2244 = vor.u32 1.1754944e-38, %v2243
  %v2245 = vsel %vm2242, %v2244, %v2240
  %v2246 = vmul.f32 1.0, %v2245
  %v2247 = vadd.f32 %v2205, %v1318
  %v2248 = vmul.f32 %v2231, %v2247
  %v2249 = vadd.f32 %v2146, %v2248
  %v2250 = vtanh.pop %v2249
  %v2251 = vsub.f32 %v2143, %v2250
  %v2252 = vmul.f32 %v2246, %v2251
  %v2253 = vadd.f32 %v2250, %v2252
  %v2254 = vld [vmem:[%s1105] sm:$0xff]
  %v2255 = vld [vmem:[%s1105 + $0x8] sm:$0xff]
  %v2256 = vld [vmem:[%s1105 + $0x10] sm:$0xff]
  %2257 = vmatpush.msra.mxu0 %v1312
  %2258 = vmatpush.msra.mxu0 %v1309
  %2259 = vmatpush.msra.mxu0 %v1306
  %2260 = vmatpush.msra.mxu0 %v1303
  %2261 = vmatpush.msra.mxu0 %v1300
  %2262 = vmatpush.msra.mxu0 %v1297
  %2263 = vmatpush.msra.mxu0 %v1294
  %2264 = vmatpush.msra.mxu0 %v1291
  %2265 = vmatpush.msra.mxu0 %v1288
  %2266 = vmatpush.msra.mxu0 %v1285
  %2267 = vmatpush.msra.mxu0 %v1282
  %2268 = vmatpush.msra.mxu0 %v1279
  %2269 = vmatpush.msra.mxu0 %v1276
  %2270 = vmatpush.msra.mxu0 %v1273
  %2271 = vmatpush.msra.mxu0 %v1270
  %2272 = vmatpush.msra.mxu0 %v1267
  %2273 = vmatmul.f32.gmra.mxu0 %v2253
  %v2274 = vpop.f32.mrf.mxu0
  %v2275 = vadd.f32 0.0, %v2274
  %2276 = vdwg.mxu0
  %2277 = vmatpush.msra.mxu0 %v1313
  %2278 = vmatpush.msra.mxu0 %v1310
  %2279 = vmatpush.msra.mxu0 %v1307
  %2280 = vmatpush.msra.mxu0 %v1304
  %2281 = vmatpush.msra.mxu0 %v1301
  %2282 = vmatpush.msra.mxu0 %v1298
  %2283 = vmatpush.msra.mxu0 %v1295
  %2284 = vmatpush.msra.mxu0 %v1292
  %2285 = vmatpush.msra.mxu0 %v1289
  %2286 = vmatpush.msra.mxu0 %v1286
  %2287 = vmatpush.msra.mxu0 %v1283
  %2288 = vmatpush.msra.mxu0 %v1280
  %2289 = vmatpush.msra.mxu0 %v1277
  %2290 = vmatpush.msra.mxu0 %v1274
  %2291 = vmatpush.msra.mxu0 %v1271
  %2292 = vmatpush.msra.mxu0 %v1268
  %2293 = vmatmul.f32.gmra.mxu0 %v2253
  %v2294 = vpop.f32.mrf.mxu0
  %v2295 = vadd.f32 0.0, %v2294
  %2296 = vdwg.mxu0
  %2297 = vmatpush.msra.mxu0 %v1314
  %2298 = vmatpush.msra.mxu0 %v1311
  %2299 = vmatpush.msra.mxu0 %v1308
  %2300 = vmatpush.msra.mxu0 %v1305
  %2301 = vmatpush.msra.mxu0 %v1302
  %2302 = vmatpush.msra.mxu0 %v1299
  %2303 = vmatpush.msra.mxu0 %v1296
  %2304 = vmatpush.msra.mxu0 %v1293
  %2305 = vmatpush.msra.mxu0 %v1290
  %2306 = vmatpush.msra.mxu0 %v1287
  %2307 = vmatpush.msra.mxu0 %v1284
  %2308 = vmatpush.msra.mxu0 %v1281
  %2309 = vmatpush.msra.mxu0 %v1278
  %2310 = vmatpush.msra.mxu0 %v1275
  %2311 = vmatpush.msra.mxu0 %v1272
  %2312 = vmatpush.msra.mxu0 %v1269
  %2313 = vmatmul.f32.gmra.mxu0 %v2253
  %v2314 = vpop.f32.mrf.mxu0
  %v2315 = vadd.f32 0.0, %v2314
  %2316 = vdwg.mxu0
  %v2317 = vadd.f32 %v2254, %v2275
  %v2318 = vadd.f32 %v2255, %v2295
  %v2319 = vxor.u32 %v2317, 2147483648
  %v2320 = vxor.u32 %v2318, 2147483648
  %v2321 = vmul.f32 %v2319, 1.442695
  %v2322 = vpow.pop %v2321
  %v2323 = vmul.f32 %v2320, 1.442695
  %v2324 = vpow.pop %v2323
  %v2325 = vadd.f32 %v2322, 1.0
  %v2326 = vadd.f32 %v2324, 1.0
  %v2327 = vrcp.pop %v2325
  %v2328 = vmul.f32 %v2325, %v2327
  %v2329 = vsub.f32 1.0, %v2328
  %v2330 = vmul.f32 %v2327, %v2329
  %v2331 = vadd.f32 %v2327, %v2330
  %vm2332 = vweird.f32 %v2325
  %vm2333 = vweird.f32 %v2327
  %vm2334 = vmor %vm2332, %vm2333
  %v2335 = vsel %vm2334, %v2327, %v2331
  %v2336 = vand.u32 2147483647, %v2325
  %vm2337 = vcmp.eq.f32.partialorder %v2336, 8.507059e+37
  %v2338 = vand.u32 %v2325, 2147483648
  %v2339 = vor.u32 1.1754944e-38, %v2338
  %v2340 = vsel %vm2337, %v2339, %v2335
  %v2341 = vmul.f32 1.0, %v2340
  %v2342 = vrcp.pop %v2326
  %v2343 = vmul.f32 %v2326, %v2342
  %v2344 = vsub.f32 1.0, %v2343
  %v2345 = vmul.f32 %v2342, %v2344
  %v2346 = vadd.f32 %v2342, %v2345
  %vm2347 = vweird.f32 %v2326
  %vm2348 = vweird.f32 %v2342
  %vm2349 = vmor %vm2347, %vm2348
  %v2350 = vsel %vm2349, %v2342, %v2346
  %v2351 = vand.u32 2147483647, %v2326
  %vm2352 = vcmp.eq.f32.partialorder %v2351, 8.507059e+37
  %v2353 = vand.u32 %v2326, 2147483648
  %v2354 = vor.u32 1.1754944e-38, %v2353
  %v2355 = vsel %vm2352, %v2354, %v2350
  %v2356 = vmul.f32 1.0, %v2355
  %v2357 = vadd.f32 %v2315, %v1318
  %v2358 = vmul.f32 %v2341, %v2357
  %v2359 = vadd.f32 %v2256, %v2358
  %v2360 = vtanh.pop %v2359
  %v2361 = vsub.f32 %v2253, %v2360
  %v2362 = vmul.f32 %v2356, %v2361
  %v2363 = vadd.f32 %v2360, %v2362
  %s2364 = scalar_lea.vmem %s13, 8
  %2365 = vst [vmem:[%s2364] sm:$0xff] %v2363
  %v2366 = vmax.f32 %v2363, 0.0
  %v2367 = vld [vmem:[%s10] sm:$0xff]
  %v2368 = vld [vmem:[%s10 + $0x8] sm:$0xff]
  %v2369 = vld [vmem:[%s10 + $0x10] sm:$0xff]
  %v2370 = vld [vmem:[%s10 + $0x18] sm:$0xff]
  %v2371 = vld [vmem:[%s10 + $0x20] sm:$0xff]
  %v2372 = vld [vmem:[%s10 + $0x28] sm:$0xff]
  %v2373 = vld [vmem:[%s10 + $0x30] sm:$0xff]
  %v2374 = vld [vmem:[%s10 + $0x38] sm:$0xff]
  %v2375 = vld [vmem:[%s10 + $0x40] sm:$0xff]
  %v2376 = vld [vmem:[%s10 + $0x48] sm:$0xff]
  %v2377 = vld [vmem:[%s10 + $0x50] sm:$0xff]
  %v2378 = vld [vmem:[%s10 + $0x58] sm:$0xff]
  %v2379 = vld [vmem:[%s10 + $0x60] sm:$0xff]
  %v2380 = vld [vmem:[%s10 + $0x68] sm:$0xff]
  %v2381 = vld [vmem:[%s10 + $0x70] sm:$0xff]
  %v2382 = vld [vmem:[%s10 + $0x78] sm:$0xff]
  %v2383 = vld [vmem:[%s11] sm:$0x1]
  %v2385 = vperm.slane %v2383, 0
  %2387 = vmatpush.msra.mxu0 %v2382
  %2388 = vmatpush.msra.mxu0 %v2381
  %2389 = vmatpush.msra.mxu0 %v2380
  %2390 = vmatpush.msra.mxu0 %v2379
  %2391 = vmatpush.msra.mxu0 %v2378
  %2392 = vmatpush.msra.mxu0 %v2377
  %2393 = vmatpush.msra.mxu0 %v2376
  %2394 = vmatpush.msra.mxu0 %v2375
  %2395 = vmatpush.msra.mxu0 %v2374
  %2396 = vmatpush.msra.mxu0 %v2373
  %2397 = vmatpush.msra.mxu0 %v2372
  %2398 = vmatpush.msra.mxu0 %v2371
  %2399 = vmatpush.msra.mxu0 %v2370
  %2400 = vmatpush.msra.mxu0 %v2369
  %2401 = vmatpush.msra.mxu0 %v2368
  %2402 = vmatpush.msra.mxu0 %v2367
  %2403 = vmatmul.f32.gmra.mxu0 %v2366
  %v2404 = vpop.f32.mrf.mxu0
  %v2405 = vadd.f32 %v2385, %v2404
  %2406 = vdwg.mxu0
  %2407 = vst [vmem:[%s12] sm:$0xff] %v2405
  // Predicated region
  $region50: #{_gru_forward_impl.1} parent=0 // pred_check
    _
  $region51: #{_gru_forward_impl.1} parent=0 // pred_check_branch
    %2409 = sbr.rel (0) target = $region53
  $region52: #{_gru_forward_impl.1} parent=0 // pred_region
    _
  $region53: #{_gru_forward_impl.1} parent=0 // pred_fallthru
    _
  // Predicated region
  $region54: #{_gru_forward_impl.1} parent=0 // pred_check
    _
  $region55: #{_gru_forward_impl.1} parent=0 // pred_check_branch
    %2411 = sbr.rel (0) target = $region57
  $region56: #{_gru_forward_impl.1} parent=0 // pred_region
    _
  $region57: #{_gru_forward_impl.1} parent=0 // pred_fallthru
    _
  // Predicated region
  $region58: #{_gru_forward_impl.1} parent=0 // pred_check
    _
  $region59: #{_gru_forward_impl.1} parent=0 // pred_check_branch
    %2413 = sbr.rel (0) target = $region61
  $region60: #{_gru_forward_impl.1} parent=0 // pred_region
    _
  $region61: #{_gru_forward_impl.1} parent=0 // pred_fallthru
    _
  // Predicated region
  $region62: #{_gru_forward_impl.1} parent=0 // pred_check
    _
  $region63: #{_gru_forward_impl.1} parent=0 // pred_check_branch
    %2415 = sbr.rel (0) target = $region65
  $region64: #{_gru_forward_impl.1} parent=0 // pred_region
    _
  $region65: #{_gru_forward_impl.1} parent=0 // pred_fallthru
    _

</llo_original>
